<compile_context>
chip_gen: v5e
topology: v5e:2x2
jax: 0.10.0
libtpu: 0.0.40
codegen_flags: <defaults>
</compile_context>

<pallas_src>
import functools
import math

import jax
import jax.numpy as jnp
from jax.experimental import pallas as pl
from jax.experimental.pallas import tpu as pltpu

_INV_SQRT2 = 1.0 / math.sqrt(2.0)


def _gelu_exact(h):
    # exact GELU (matches torch.nn.GELU default, approximate='none')
    return 0.5 * h * (1.0 + jax.lax.erf(h * _INV_SQRT2))


# ----------------------------------------------------------------------------
# Kernels
# ----------------------------------------------------------------------------
def _mlp_resident_kernel(x_ref, w1_ref, b1_ref, w2_ref, b2_ref, o_ref):
    # x_ref : (tm, D) bf16      w1_ref: (D, H) bf16 (resident)   b1_ref: (1, H) f32
    # w2_ref: (H, D) bf16 (resident)   b2_ref: (1, D) f32        o_ref : (tm, D)
    h = jnp.dot(x_ref[...], w1_ref[...], preferred_element_type=jnp.float32)
    h = _gelu_exact(h + b1_ref[...])
    y = jnp.dot(h.astype(w2_ref.dtype), w2_ref[...],
                preferred_element_type=jnp.float32)
    o_ref[...] = (y + b2_ref[...]).astype(o_ref.dtype)


def _mlp_chunked_kernel(x_ref, w1_ref, b1_ref, w2_ref, b2_ref, o_ref, acc_ref):
    # Hidden dim streamed in chunks of th; acc_ref (tm, D) f32 is resident
    # across the j ("arbitrary") axis.
    j = pl.program_id(1)

    @pl.when(j == 0)
    def _():
        # fold the fc2 bias into the accumulator init (free epilogue win)
        acc_ref[...] = jnp.broadcast_to(b2_ref[...], acc_ref.shape).astype(
            jnp.float32)

    h = jnp.dot(x_ref[...], w1_ref[...], preferred_element_type=jnp.float32)
    h = _gelu_exact(h + b1_ref[...])
    acc_ref[...] += jnp.dot(h.astype(w2_ref.dtype), w2_ref[...],
                            preferred_element_type=jnp.float32)

    @pl.when(j == pl.num_programs(1) - 1)
    def _():
        o_ref[...] = acc_ref[...].astype(o_ref.dtype)


# ----------------------------------------------------------------------------
# Wrapper
# ----------------------------------------------------------------------------
def _round_up(x, m):
    return (x + m - 1) // m * m


def _cdiv(a, b):
    return -(-a // b)


def _vmem_limit_bytes():
    """~75% of physical VMEM (capped at 100 MiB); safe fallback if unknown."""
    cap = 64 * 1024 * 1024
    try:
        info = pltpu.get_tpu_info()
        cap = int(getattr(info, "vmem_capacity_bytes", cap)) or cap
    except Exception:
        pass
    return min(int(cap * 0.75), 100 * 1024 * 1024)


def _pick_hidden_tile(H, target):
    """Largest multiple of 128 that divides H and is <= target (min 128)."""
    if H % 128 != 0 or H <= 128:
        return H  # tiny / odd hidden dim: full extent is the only clean block
    best = 128
    c = 128
    limit = min(target, H)
    while c <= limit:
        if H % c == 0:
            best = c
        c += 128
    return best


@functools.partial(jax.jit,
                   static_argnames=("tm", "th", "compute_dtype",
                                    "force_chunked"))
def mlp_pallas(x, w1, b1, w2, b2, *, tm=None, th=512,
               compute_dtype=jnp.bfloat16, force_chunked=False):
    """x: (..., dim). w1: (dim, 4*dim), b1: (4*dim,), w2: (4*dim, dim), b2: (dim,)."""
    orig_shape = x.shape
    D = orig_shape[-1]
    H = w1.shape[1]
    out_dtype = x.dtype

    x2 = x.reshape(-1, D)
    M = x2.shape[0]

    vmem_limit = _vmem_limit_bytes()
    budget = int(vmem_limit * 0.85)
    cbytes = jnp.dtype(compute_dtype).itemsize
    obytes = jnp.dtype(out_dtype).itemsize

    # ---- row tile ----------------------------------------------------------
    if tm is None:
        # bigger VMEM (v5e/v6e 128 MiB) -> bigger row tiles; v7x (64 MiB) smaller
        tm = 512 if vmem_limit > 64 * 1024 * 1024 else 384
    tm_eff = min(tm, _round_up(M, 8))
    # megacore (v7x): make sure the "parallel" M axis has >= 2 row tiles
    while tm_eff > 8 and _cdiv(M, tm_eff) < 2:
        tm_eff = max(8, _round_up(tm_eff // 2, 8))

    # ---- resident-weight fast path? ----------------------------------------
    weight_bytes = 2 * D * H * cbytes            # w1 + w2 (bf16)
    resident_cost = (
        2 * weight_bytes                          # default 2x-buffered weight blocks
        + 2 * tm_eff * D * cbytes                 # x tile (double-buffered)
        + 2 * tm_eff * D * obytes                 # out tile (double-buffered)
        + tm_eff * H * 4                          # (tm, H) f32 hidden intermediate
        + tm_eff * D * 4                          # f32 fc2 result before cast
        + 2 * (H + D) * 4                         # biases
    )
    use_resident = (resident_cost <= budget) and (not force_chunked)

    # ---- hidden tile (streamed path only) -----------------------------------
    th_eff = _pick_hidden_tile(H, th)
    if not use_resident:
        # shrink hidden/row tiles if the streamed working set would overflow VMEM
        def chunked_cost(tm_, th_):
            return (2 * (D * th_ + th_ * D) * cbytes      # w1/w2 chunks, 2x-buffered
                    + 2 * tm_ * D * (cbytes + obytes)     # x / out tiles
                    + tm_ * D * 4                         # f32 accumulator scratch
                    + tm_ * th_ * 4                       # (tm, th) f32 hidden tile
                    + 2 * (th_ + D) * 4)
        while chunked_cost(tm_eff, th_eff) > budget and th_eff % 256 == 0:
            th_eff //= 2
        while chunked_cost(tm_eff, th_eff) > budget and tm_eff > 8:
            tm_eff = max(8, _round_up(tm_eff // 2, 8))

    # ---- pad rows only if the last tile is ragged ---------------------------
    M_pad = _round_up(M, tm_eff)
    if M_pad != M:
        x2 = jnp.pad(x2, ((0, M_pad - M), (0, 0)))

    # one-time casts (no-ops if caller already supplies compute_dtype / f32)
    xc = x2.astype(compute_dtype)
    w1c = w1.astype(compute_dtype)
    w2c = w2.astype(compute_dtype)
    b1_2d = b1.reshape(1, H).astype(jnp.float32)
    b2_2d = b2.reshape(1, D).astype(jnp.float32)

    if use_resident:
        grid = (M_pad // tm_eff,)
        out = pl.pallas_call(
            _mlp_resident_kernel,
            out_shape=jax.ShapeDtypeStruct((M_pad, D), out_dtype),
            grid_spec=pltpu.PrefetchScalarGridSpec(
                num_scalar_prefetch=0,
                grid=grid,
                in_specs=[
                    pl.BlockSpec((tm_eff, D), lambda i: (i, 0)),   # x rows
                    pl.BlockSpec((D, H), lambda i: (0, 0)),        # w1 (resident)
                    pl.BlockSpec((1, H), lambda i: (0, 0)),        # b1
                    pl.BlockSpec((H, D), lambda i: (0, 0)),        # w2 (resident)
                    pl.BlockSpec((1, D), lambda i: (0, 0)),        # b2
                ],
                out_specs=pl.BlockSpec((tm_eff, D), lambda i: (i, 0)),
            ),
            compiler_params=pltpu.CompilerParams(
                dimension_semantics=("parallel",),
                vmem_limit_bytes=vmem_limit,
            ),
        )(xc, w1c, b1_2d, w2c, b2_2d)
    else:
        grid = (M_pad // tm_eff, H // th_eff)
        out = pl.pallas_call(
            _mlp_chunked_kernel,
            out_shape=jax.ShapeDtypeStruct((M_pad, D), out_dtype),
            grid_spec=pltpu.PrefetchScalarGridSpec(
                num_scalar_prefetch=0,
                grid=grid,
                in_specs=[
                    pl.BlockSpec((tm_eff, D), lambda i, j: (i, 0)),     # x rows
                    pl.BlockSpec((D, th_eff), lambda i, j: (0, j)),     # w1 chunk
                    pl.BlockSpec((1, th_eff), lambda i, j: (0, j)),     # b1 chunk
                    pl.BlockSpec((th_eff, D), lambda i, j: (j, 0)),     # w2 chunk
                    pl.BlockSpec((1, D), lambda i, j: (0, 0)),          # b2
                ],
                out_specs=pl.BlockSpec((tm_eff, D), lambda i, j: (i, 0)),
                scratch_shapes=[pltpu.VMEM((tm_eff, D), jnp.float32)],
            ),
            compiler_params=pltpu.CompilerParams(
                dimension_semantics=("parallel", "arbitrary"),
                vmem_limit_bytes=vmem_limit,
            ),
        )(xc, w1c, b1_2d, w2c, b2_2d)

    if M_pad != M:
        out = out[:M]
    return out.reshape(orig_shape)


# ----------------------------------------------------------------------------
# Init + reference
# ----------------------------------------------------------------------------
def init_mlp_params(key, dim, dtype=jnp.float32):
    """Deterministic init mimicking torch.nn.Linear default (Kaiming uniform)."""
    hidden = dim * 4
    k1, k2, k3, k4 = jax.random.split(key, 4)
    bound1 = 1.0 / math.sqrt(dim)
    w1 = jax.random.uniform(k1, (dim, hidden), dtype, -bound1, bound1)
    b1 = jax.random.uniform(k2, (hidden,), dtype, -bound1, bound1)
    bound2 = 1.0 / math.sqrt(hidden)
    w2 = jax.random.uniform(k3, (hidden, dim), dtype, -bound2, bound2)
    b2 = jax.random.uniform(k4, (dim,), dtype, -bound2, bound2)
    return w1, b1, w2, b2


def mlp_ref(x, w1, b1, w2, b2, compute_dtype=jnp.bfloat16):
    """Reference with the same bf16-input / f32-accumulate mixed precision."""
    xc = x.astype(compute_dtype)
    w1c = w1.astype(compute_dtype)
    w2c = w2.astype(compute_dtype)
    h = jnp.dot(xc, w1c, preferred_element_type=jnp.float32) + b1
    h = 0.5 * h * (1.0 + jax.lax.erf(h * _INV_SQRT2))
    y = jnp.dot(h.astype(compute_dtype), w2c,
                preferred_element_type=jnp.float32) + b2
    return y.astype(x.dtype)


if __name__ == "__main__":
    key = jax.random.PRNGKey(0)
    kx, kp = jax.random.split(key)

    # Small but lane-dense config: dim=128 -> hidden=512, M = 2*128 = 256 rows.
    batch, seq, dim = 2, 128, 128
    x = jax.random.normal(kx, (batch, seq, dim), jnp.float32)
    w1, b1, w2, b2 = init_mlp_params(kp, dim)

    y_ref = mlp_ref(x.reshape(-1, dim), w1, b1, w2, b2).reshape(x.shape)

    # Resident-weight fast path (weights trivially fit VMEM at this size).
    y = jax.block_until_ready(mlp_pallas(x, w1, b1, w2, b2))
    assert y.shape == x.shape
    assert jnp.allclose(y, y_ref, atol=1e-2, rtol=1e-2), "resident path mismatch"

    # Streamed / hidden-chunked fallback path, exercised explicitly.
    y2 = jax.block_until_ready(
        mlp_pallas(x, w1, b1, w2, b2, th=256, force_chunked=True))
    assert jnp.allclose(y2, y_ref, atol=1e-2, rtol=1e-2), "chunked path mismatch"

    print("KERNEL_OK")
</pallas_src>

<mosaic_0001>
module attributes {stable_mosaic.version = 11 : i64} {
  func.func @_mlp_resident_kernel(%arg0: i32, %arg1: memref<128x128xbf16, #tpu.memory_space<vmem>>, %arg2: memref<128x512xbf16, #tpu.memory_space<vmem>>, %arg3: memref<1x512xf32, #tpu.memory_space<vmem>>, %arg4: memref<512x128xbf16, #tpu.memory_space<vmem>>, %arg5: memref<1x128xf32, #tpu.memory_space<vmem>>, %arg6: memref<128x128xf32, #tpu.memory_space<vmem>>) attributes {dimension_semantics = [#tpu.dimension_semantics<parallel>], iteration_bounds = array<i64: 2>, scalar_prefetch = 0 : i64, scratch_operands = 0 : i64, tpu.core_type = #tpu.core_type<tc>, window_params = [{transform_indices = @transform_0, window_bounds = array<i64: 128, 128>}, {pipeline_mode = #tpu.pipeline_mode<synchronous>, transform_indices = @transform_1, window_bounds = array<i64: 128, 512>}, {pipeline_mode = #tpu.pipeline_mode<synchronous>, transform_indices = @transform_2, window_bounds = array<i64: 1, 512>}, {pipeline_mode = #tpu.pipeline_mode<synchronous>, transform_indices = @transform_3, window_bounds = array<i64: 512, 128>}, {pipeline_mode = #tpu.pipeline_mode<synchronous>, transform_indices = @transform_4, window_bounds = array<i64: 1, 128>}, {transform_indices = @transform_5, window_bounds = array<i64: 128, 128>}]} {
    %c0 = arith.constant 0 : index
    %c0_0 = arith.constant 0 : index
    %0 = vector.load %arg1[%c0, %c0_0] : memref<128x128xbf16, #tpu.memory_space<vmem>>, vector<128x128xbf16>
    %c0_1 = arith.constant 0 : index
    %c0_2 = arith.constant 0 : index
    %1 = vector.load %arg2[%c0_1, %c0_2] : memref<128x512xbf16, #tpu.memory_space<vmem>>, vector<128x512xbf16>
    %cst = arith.constant dense<0.000000e+00> : vector<128x512xf32>
    %2 = tpu.matmul %0, %1, %cst {dimension_numbers = #tpu.dot_dimension_numbers<[1], [0], [0], [1], [0, 0, 1, 1], [], []>} : vector<128x128xbf16>, vector<128x512xbf16>, vector<128x512xf32> -> vector<128x512xf32>
    %c0_3 = arith.constant 0 : index
    %c0_4 = arith.constant 0 : index
    %3 = vector.load %arg3[%c0_3, %c0_4] : memref<1x512xf32, #tpu.memory_space<vmem>>, vector<1x512xf32>
    %4 = vector.broadcast %3 : vector<1x512xf32> to vector<128x512xf32>
    %5 = arith.addf %2, %4 : vector<128x512xf32>
    %cst_5 = arith.constant 5.000000e-01 : f32
    %6 = vector.broadcast %cst_5 : f32 to vector<128x512xf32>
    %7 = arith.mulf %6, %5 : vector<128x512xf32>
    %cst_6 = arith.constant 0.707106769 : f32
    %8 = vector.broadcast %cst_6 : f32 to vector<128x512xf32>
    %9 = arith.mulf %5, %8 : vector<128x512xf32>
    %10 = math.erf %9 : vector<128x512xf32>
    %cst_7 = arith.constant 1.000000e+00 : f32
    %11 = vector.broadcast %cst_7 : f32 to vector<128x512xf32>
    %12 = arith.addf %11, %10 : vector<128x512xf32>
    %13 = arith.mulf %7, %12 : vector<128x512xf32>
    %14 = arith.truncf %13 : vector<128x512xf32> to vector<128x512xbf16>
    %c0_8 = arith.constant 0 : index
    %c0_9 = arith.constant 0 : index
    %15 = vector.load %arg4[%c0_8, %c0_9] : memref<512x128xbf16, #tpu.memory_space<vmem>>, vector<512x128xbf16>
    %cst_10 = arith.constant dense<0.000000e+00> : vector<128x128xf32>
    %16 = tpu.matmul %14, %15, %cst_10 {dimension_numbers = #tpu.dot_dimension_numbers<[1], [0], [0], [1], [0, 0, 1, 1], [], []>} : vector<128x512xbf16>, vector<512x128xbf16>, vector<128x128xf32> -> vector<128x128xf32>
    %c0_11 = arith.constant 0 : index
    %c0_12 = arith.constant 0 : index
    %17 = vector.load %arg5[%c0_11, %c0_12] : memref<1x128xf32, #tpu.memory_space<vmem>>, vector<1x128xf32>
    %18 = vector.broadcast %17 : vector<1x128xf32> to vector<128x128xf32>
    %19 = arith.addf %16, %18 : vector<128x128xf32>
    %c0_13 = arith.constant 0 : index
    %c0_14 = arith.constant 0 : index
    %20 = vector.load %arg6[%c0_13, %c0_14] : memref<128x128xf32, #tpu.memory_space<vmem>>, vector<128x128xf32>
    tpu.vector_store %arg6[%c0_13, %c0_14], %19 {strides = array<i32>} : memref<128x128xf32, #tpu.memory_space<vmem>>, vector<128x128xf32>,
    return
  }
  func.func @transform_0(%arg0: i32) -> (i32, i32) {
    %c0_i32 = arith.constant 0 : i32
    %c0_i32_0 = arith.constant 0 : i32
    return %arg0, %c0_i32 : i32, i32
  }
  func.func @transform_1(%arg0: i32) -> (i32, i32) {
    %c0_i32 = arith.constant 0 : i32
    %c0_i32_0 = arith.constant 0 : i32
    %c0_i32_1 = arith.constant 0 : i32
    return %c0_i32, %c0_i32_0 : i32, i32
  }
  func.func @transform_2(%arg0: i32) -> (i32, i32) {
    %c0_i32 = arith.constant 0 : i32
    %c0_i32_0 = arith.constant 0 : i32
    %c0_i32_1 = arith.constant 0 : i32
    return %c0_i32, %c0_i32_0 : i32, i32
  }
  func.func @transform_3(%arg0: i32) -> (i32, i32) {
    %c0_i32 = arith.constant 0 : i32
    %c0_i32_0 = arith.constant 0 : i32
    %c0_i32_1 = arith.constant 0 : i32
    return %c0_i32, %c0_i32_0 : i32, i32
  }
  func.func @transform_4(%arg0: i32) -> (i32, i32) {
    %c0_i32 = arith.constant 0 : i32
    %c0_i32_0 = arith.constant 0 : i32
    %c0_i32_1 = arith.constant 0 : i32
    return %c0_i32, %c0_i32_0 : i32, i32
  }
  func.func @transform_5(%arg0: i32) -> (i32, i32) {
    %c0_i32 = arith.constant 0 : i32
    %c0_i32_0 = arith.constant 0 : i32
    return %arg0, %c0_i32 : i32, i32
  }
}

</mosaic_0001>

<llo_original>
// kernel: mlp_pallas.1
$region0: #{mlp_pallas.1}
  #allocation0 [shape = 'u32[]', space=smem, size = 0x4, offset = 0x4, fixed_abs, tag = 'smem constant byte address 0x4 - core index']
  #allocation1 [shape = 'u32[72,128]{1,0:T(1,128)}', space=vmem, size = 0x9000, scoped, tag = 'internal scratch']
  %s0 = inlined_call_operand.vmem [shape: bf16[256,128], index: 0, kind: input, shape index: {}]
  %s1 = inlined_call_operand.vmem [shape: bf16[128,512], index: 1, kind: input, shape index: {}]
  %s2 = inlined_call_operand.vmem [shape: f32[1,512], index: 2, kind: input, shape index: {}]
  %s3 = inlined_call_operand.vmem [shape: bf16[512,128], index: 3, kind: input, shape index: {}]
  %s4 = inlined_call_operand.vmem [shape: f32[1,128], index: 4, kind: input, shape index: {}]
  %s5 = inlined_call_operand.hbm [shape: f32[256,128], index: 5, kind: output, shape index: {}]
  %s6 = sld [smem:[#allocation0]]
  $region53: #{mlp_pallas.1} parent=0
    _
  %s8 = ssub.s32 1, %s6
  %s9 = scalar_select 0, %s8, %s6
  $region1: #{mlp_pallas.1} parent=0
    #allocation2 [shape = 'u8[131072]{0}', space=vmem, size = 0x20000, scoped, tag = 'output window, operand 0']
    #allocation3 [shape = 's32[2]{0}', space=sflag, size = 0x8, scoped, tag = 'scoped memory for mlp_pallas.1']
    %10 = vsyncpa [#allocation3], 0
    %s11 = scalar_lea.sflag [#allocation3], 1
    %12 = vsyncpa %s11, 0
    loop: start=0, step=1, limit=4
    $region2: #{mlp_pallas.1} parent=1 // loop_pre_header
      _
    $region3: #{mlp_pallas.1} parent=1 // loop_header
      %s14 = sphi 0, %s18
      %p15 = scmp.ge.s32.totalorder %s14, 4
      %s24 = sphi 0, %s26
      %s27 = sphi 0, %s24
      %s28 = sphi 0, %s27
      %s44 = sphi 0, %s28
      %s48 = sphi 0, %s48
      %s50 = sphi 0, %s48
      %s51 = sphi 0, %s50
      %s65 = sphi 0, %s51
      %s69 = sphi 0, %s69
      %s71 = sphi 0, %s69
      %s72 = sphi 0, %s71
      %s86 = sphi 0, %s72
      %s90 = sphi 0, %s90
      %s92 = sphi 0, %s90
      %s93 = sphi 0, %s92
      %s107 = sphi 0, %s93
      %s111 = sphi 0, %s111
      %s113 = sphi 0, %s111
      %s114 = sphi 0, %s113
      %s128 = sphi 0, %s114
      %s134 = sphi 0, %s136
      %s137 = sphi 0, %s134
      %s138 = sphi 0, %s137
      %s154 = sphi 0, %s138
    $region4: #{mlp_pallas.1} parent=1 // loop_header_branch
      %17 = sbr.rel (%p15) target = $region8
    $region5: #{mlp_pallas.1} parent=1 // loop_body
      %s19 = ssub.s32 %s14, 1
      %s20 = ssub.s32 %s14, 2
      %s21 = sadd.s32 %s14, 1
      %s22 = ssub.s32 %s14, %s21
      %p23 = scmp.eq.s32.totalorder %s22, 0
      %s25 = sadd.s32 %s24, 1
      %s26 = scalar_select %p23, %s24, %s25
      %p29 = pneg %p23
      %p30 = scmp.eq.s32.totalorder %s14, 1
      %p31 = por %p29, %p30
      %p32 = scmp.ne.s32.totalorder %s24, %s27
      %p33 = scmp.eq.s32.totalorder %s14, 0
      %p34 = por %p32, %p33
      %p35 = scmp.ne.s32.totalorder %s24, %s27
      %p36 = scmp.eq.s32.totalorder %s19, 1
      %p37 = por %p35, %p36
      %p38 = scmp.ne.s32.totalorder %s27, %s28
      %p39 = scmp.eq.s32.totalorder %s19, 0
      %p40 = por %p38, %p39
      %p41 = scmp.ne.s32.totalorder %s27, %s28
      %p42 = scmp.eq.s32.totalorder %s20, 1
      %p43 = por %p41, %p42
      %p45 = scmp.ne.s32.totalorder %s28, %s44
      %p46 = scmp.eq.s32.totalorder %s20, 0
      %p47 = por %p45, %p46
      %s49 = sadd.s32 %s48, 1
      %p52 = scmp.eq.s32.totalorder %s14, 1
      %p53 = scmp.ne.s32.totalorder %s48, %s50
      %p54 = scmp.eq.s32.totalorder %s14, 0
      %p55 = por %p53, %p54
      %p56 = scmp.ne.s32.totalorder %s48, %s50
      %p57 = scmp.eq.s32.totalorder %s19, 1
      %p58 = por %p56, %p57
      %p59 = scmp.ne.s32.totalorder %s50, %s51
      %p60 = scmp.eq.s32.totalorder %s19, 0
      %p61 = por %p59, %p60
      %p62 = scmp.ne.s32.totalorder %s50, %s51
      %p63 = scmp.eq.s32.totalorder %s20, 1
      %p64 = por %p62, %p63
      %p66 = scmp.ne.s32.totalorder %s51, %s65
      %p67 = scmp.eq.s32.totalorder %s20, 0
      %p68 = por %p66, %p67
      %s70 = sadd.s32 %s69, 1
      %p73 = scmp.eq.s32.totalorder %s14, 1
      %p74 = scmp.ne.s32.totalorder %s69, %s71
      %p75 = scmp.eq.s32.totalorder %s14, 0
      %p76 = por %p74, %p75
      %p77 = scmp.ne.s32.totalorder %s69, %s71
      %p78 = scmp.eq.s32.totalorder %s19, 1
      %p79 = por %p77, %p78
      %p80 = scmp.ne.s32.totalorder %s71, %s72
      %p81 = scmp.eq.s32.totalorder %s19, 0
      %p82 = por %p80, %p81
      %p83 = scmp.ne.s32.totalorder %s71, %s72
      %p84 = scmp.eq.s32.totalorder %s20, 1
      %p85 = por %p83, %p84
      %p87 = scmp.ne.s32.totalorder %s72, %s86
      %p88 = scmp.eq.s32.totalorder %s20, 0
      %p89 = por %p87, %p88
      %s91 = sadd.s32 %s90, 1
      %p94 = scmp.eq.s32.totalorder %s14, 1
      %p95 = scmp.ne.s32.totalorder %s90, %s92
      %p96 = scmp.eq.s32.totalorder %s14, 0
      %p97 = por %p95, %p96
      %p98 = scmp.ne.s32.totalorder %s90, %s92
      %p99 = scmp.eq.s32.totalorder %s19, 1
      %p100 = por %p98, %p99
      %p101 = scmp.ne.s32.totalorder %s92, %s93
      %p102 = scmp.eq.s32.totalorder %s19, 0
      %p103 = por %p101, %p102
      %p104 = scmp.ne.s32.totalorder %s92, %s93
      %p105 = scmp.eq.s32.totalorder %s20, 1
      %p106 = por %p104, %p105
      %p108 = scmp.ne.s32.totalorder %s93, %s107
      %p109 = scmp.eq.s32.totalorder %s20, 0
      %p110 = por %p108, %p109
      %s112 = sadd.s32 %s111, 1
      %p115 = scmp.eq.s32.totalorder %s14, 1
      %p116 = scmp.ne.s32.totalorder %s111, %s113
      %p117 = scmp.eq.s32.totalorder %s14, 0
      %p118 = por %p116, %p117
      %p119 = scmp.ne.s32.totalorder %s111, %s113
      %p120 = scmp.eq.s32.totalorder %s19, 1
      %p121 = por %p119, %p120
      %p122 = scmp.ne.s32.totalorder %s113, %s114
      %p123 = scmp.eq.s32.totalorder %s19, 0
      %p124 = por %p122, %p123
      %p125 = scmp.ne.s32.totalorder %s113, %s114
      %p126 = scmp.eq.s32.totalorder %s20, 1
      %p127 = por %p125, %p126
      %p129 = scmp.ne.s32.totalorder %s114, %s128
      %p130 = scmp.eq.s32.totalorder %s20, 0
      %p131 = por %p129, %p130
      %s132 = ssub.s32 %s14, %s21
      %p133 = scmp.eq.s32.totalorder %s132, 0
      %s135 = sadd.s32 %s134, 1
      %s136 = scalar_select %p133, %s134, %s135
      %p139 = pneg %p133
      %p140 = scmp.eq.s32.totalorder %s14, 1
      %p141 = por %p139, %p140
      %p142 = scmp.ne.s32.totalorder %s134, %s137
      %p143 = scmp.eq.s32.totalorder %s14, 0
      %p144 = por %p142, %p143
      %p145 = scmp.ne.s32.totalorder %s134, %s137
      %p146 = scmp.eq.s32.totalorder %s19, 1
      %p147 = por %p145, %p146
      %p148 = scmp.ne.s32.totalorder %s137, %s138
      %p149 = scmp.eq.s32.totalorder %s19, 0
      %p150 = por %p148, %p149
      %p151 = scmp.ne.s32.totalorder %s137, %s138
      %p152 = scmp.eq.s32.totalorder %s20, 1
      %p153 = por %p151, %p152
      %p155 = scmp.ne.s32.totalorder %s138, %s154
      %p156 = scmp.eq.s32.totalorder %s20, 0
      %p157 = por %p155, %p156
      %p158 = scmp.le.s32.totalorder 1, %s14
      %p159 = scmp.lt.s32.totalorder %s14, 3
      %p160 = pnand %p158, %p159
      %p161 = pneg %p160
      // Predicated region
      $region9: #{mlp_pallas.1} parent=5 // pred_check
        _
      $region10: #{mlp_pallas.1} parent=5 // pred_check_branch
        %163 = sbr.rel (%p160) target = $region12
      $region11: #{mlp_pallas.1} parent=5 // pred_region
        %s164 = ssub.s32 %s14, 1
        // Predicated region
        $region13: #{mlp_pallas.1} parent=11 // pred_check
          %p165 = pneg %p61
        $region14: #{mlp_pallas.1} parent=11 // pred_check_branch
          %167 = sbr.rel (%p165) target = $region16
        $region15: #{mlp_pallas.1} parent=11 // pred_region
          _
        $region16: #{mlp_pallas.1} parent=11 // pred_fallthru
          _
        // Predicated region
        $region17: #{mlp_pallas.1} parent=11 // pred_check
          %p168 = pneg %p82
        $region18: #{mlp_pallas.1} parent=11 // pred_check_branch
          %170 = sbr.rel (%p168) target = $region20
        $region19: #{mlp_pallas.1} parent=11 // pred_region
          _
        $region20: #{mlp_pallas.1} parent=11 // pred_fallthru
          _
        // Predicated region
        $region21: #{mlp_pallas.1} parent=11 // pred_check
          %p171 = pneg %p103
        $region22: #{mlp_pallas.1} parent=11 // pred_check_branch
          %173 = sbr.rel (%p171) target = $region24
        $region23: #{mlp_pallas.1} parent=11 // pred_region
          _
        $region24: #{mlp_pallas.1} parent=11 // pred_fallthru
          _
        // Predicated region
        $region25: #{mlp_pallas.1} parent=11 // pred_check
          %p174 = pneg %p124
        $region26: #{mlp_pallas.1} parent=11 // pred_check_branch
          %176 = sbr.rel (%p174) target = $region28
        $region27: #{mlp_pallas.1} parent=11 // pred_region
          _
        $region28: #{mlp_pallas.1} parent=11 // pred_fallthru
          _
      $region12: #{mlp_pallas.1} parent=5 // pred_fallthru
        _
      %p177 = scmp.lt.s32.totalorder %s14, 2
      // Predicated region
      $region29: #{mlp_pallas.1} parent=5 // pred_check
        %p178 = pneg %p177
      $region30: #{mlp_pallas.1} parent=5 // pred_check_branch
        %180 = sbr.rel (%p178) target = $region32
      $region31: #{mlp_pallas.1} parent=5 // pred_region
        // Predicated region
        $region33: #{mlp_pallas.1} parent=31 // pred_check
          %p181 = pneg %p34
        $region34: #{mlp_pallas.1} parent=31 // pred_check_branch
          %183 = sbr.rel (%p181) target = $region36
        $region35: #{mlp_pallas.1} parent=31 // pred_region
          %s184 = smul.u32 16, %s14
          %p185 = scmp.lt.s32.totalorder %s184, 31
          %s186 = scalar_select %p185, %s184, 31
          %s187 = smul.addr %s186, 4
          %s188 = scalar_lea.vmem %s0, %s187
          %s189 = smul.u32 16, %s14
        $region36: #{mlp_pallas.1} parent=31 // pred_fallthru
          _
      $region32: #{mlp_pallas.1} parent=5 // pred_fallthru
        _
      %p190 = scmp.le.s32.totalorder 1, %s14
      %p191 = scmp.lt.s32.totalorder %s14, 3
      %p192 = pnand %p190, %p191
      %p193 = pneg %p192
      // Predicated region
      $region37: #{mlp_pallas.1} parent=5 // pred_check
        _
      $region38: #{mlp_pallas.1} parent=5 // pred_check_branch
        %195 = sbr.rel (%p192) target = $region40
      $region39: #{mlp_pallas.1} parent=5 // pred_region
        %s196 = ssub.s32 %s14, 1
        %s197 = smul.u32 16, %s19
        %p198 = scmp.lt.s32.totalorder %s197, 31
        %s199 = scalar_select %p198, %s197, 31
        %s200 = smul.addr %s199, 4
        %s201 = scalar_lea.vmem %s0, %s200
        %p202 = pneg %p40
        %p203 = pneg %p37
        %p204 = pneg %p61
        %p205 = pneg %p58
        %p206 = pneg %p82
        %p207 = pneg %p79
        %p208 = pneg %p103
        %p209 = pneg %p100
        %p210 = pneg %p124
        %p211 = pneg %p121
        %p212 = pneg %p150
        %p213 = pneg %p147
        %s214 = sand.u32 %s137, 1
        %s215 = scalar_lea.sflag [#allocation3], %s214
        %s216 = sand.u32 %s137, 1
        %s217 = smul.addr %s216, 128
        %s218 = scalar_lea.vmem [#allocation2], %s217
        %s219 = smul.u32 16, %s19
        %p220 = scmp.lt.s32.totalorder %s219, 31
        %s221 = scalar_select %p220, %s219, 31
        %s222 = smul.addr %s221, 4
        %s223 = scalar_lea.vmem %s0, %s222
        %s224 = smul.u32 16, %s19
        %s225 = smul.u32 16, %s19
        %v226 = vld [vmem:[%s223] sm:$0xf]
        %v227 = vld [vmem:[%s223 + $0x4] sm:$0xf]
        %v228 = vld [vmem:[%s223 + $0x8] sm:$0xf]
        %v229 = vld [vmem:[%s223 + $0xc] sm:$0xf]
        %v230 = vld [vmem:[%s223 + $0x10] sm:$0xf]
        %v231 = vld [vmem:[%s223 + $0x14] sm:$0xf]
        %v232 = vld [vmem:[%s223 + $0x18] sm:$0xf]
        %v233 = vld [vmem:[%s223 + $0x1c] sm:$0xf]
        %v234 = vld [vmem:[%s223 + $0x20] sm:$0xf]
        %v235 = vld [vmem:[%s223 + $0x24] sm:$0xf]
        %v236 = vld [vmem:[%s223 + $0x28] sm:$0xf]
        %v237 = vld [vmem:[%s223 + $0x2c] sm:$0xf]
        %v238 = vld [vmem:[%s223 + $0x30] sm:$0xf]
        %v239 = vld [vmem:[%s223 + $0x34] sm:$0xf]
        %v240 = vld [vmem:[%s223 + $0x38] sm:$0xf]
        %v241 = vld [vmem:[%s223 + $0x3c] sm:$0xf]
        %v242 = vld [vmem:[%s1] sm:$0xff]
        %v243 = vld [vmem:[%s1 + $0x8] sm:$0xff]
        %v244 = vld [vmem:[%s1 + $0x10] sm:$0xff]
        %v245 = vld [vmem:[%s1 + $0x18] sm:$0xff]
        %v246 = vld [vmem:[%s1 + $0x20] sm:$0xff]
        %v247 = vld [vmem:[%s1 + $0x28] sm:$0xff]
        %v248 = vld [vmem:[%s1 + $0x30] sm:$0xff]
        %v249 = vld [vmem:[%s1 + $0x38] sm:$0xff]
        %v250 = vld [vmem:[%s1 + $0x40] sm:$0xff]
        %v251 = vld [vmem:[%s1 + $0x48] sm:$0xff]
        %v252 = vld [vmem:[%s1 + $0x50] sm:$0xff]
        %v253 = vld [vmem:[%s1 + $0x58] sm:$0xff]
        %v254 = vld [vmem:[%s1 + $0x60] sm:$0xff]
        %v255 = vld [vmem:[%s1 + $0x68] sm:$0xff]
        %v256 = vld [vmem:[%s1 + $0x70] sm:$0xff]
        %v257 = vld [vmem:[%s1 + $0x78] sm:$0xff]
        %v258 = vld [vmem:[%s1 + $0x80] sm:$0xff]
        %v259 = vld [vmem:[%s1 + $0x88] sm:$0xff]
        %v260 = vld [vmem:[%s1 + $0x90] sm:$0xff]
        %v261 = vld [vmem:[%s1 + $0x98] sm:$0xff]
        %v262 = vld [vmem:[%s1 + $0xa0] sm:$0xff]
        %v263 = vld [vmem:[%s1 + $0xa8] sm:$0xff]
        %v264 = vld [vmem:[%s1 + $0xb0] sm:$0xff]
        %v265 = vld [vmem:[%s1 + $0xb8] sm:$0xff]
        %v266 = vld [vmem:[%s1 + $0xc0] sm:$0xff]
        %v267 = vld [vmem:[%s1 + $0xc8] sm:$0xff]
        %v268 = vld [vmem:[%s1 + $0xd0] sm:$0xff]
        %v269 = vld [vmem:[%s1 + $0xd8] sm:$0xff]
        %v270 = vld [vmem:[%s1 + $0xe0] sm:$0xff]
        %v271 = vld [vmem:[%s1 + $0xe8] sm:$0xff]
        %v272 = vld [vmem:[%s1 + $0xf0] sm:$0xff]
        %v273 = vld [vmem:[%s1 + $0xf8] sm:$0xff]
        %v274 = vld [vmem:[%s2] sm:$0xf]
        %v276 = vperm.slane %v274, 0
        %v277 = vperm.slane %v274, 1
        %v278 = vperm.slane %v274, 2
        %v279 = vperm.slane %v274, 3
        %v300 = vunpack.c.l.b16 %v226
        %v301 = vunpack.c.l.b16 %v227
        %v302 = vunpack.c.l.b16 %v228
        %v303 = vunpack.c.l.b16 %v229
        %v304 = vunpack.c.l.b16 %v230
        %v305 = vunpack.c.l.b16 %v231
        %v306 = vunpack.c.l.b16 %v232
        %v307 = vunpack.c.l.b16 %v233
        %v308 = vunpack.c.l.b16 %v234
        %v309 = vunpack.c.l.b16 %v235
        %v310 = vunpack.c.l.b16 %v236
        %v311 = vunpack.c.l.b16 %v237
        %v312 = vunpack.c.l.b16 %v238
        %v313 = vunpack.c.l.b16 %v239
        %v314 = vunpack.c.l.b16 %v240
        %v315 = vunpack.c.l.b16 %v241
        %v316 = vpack.c.b16 %v301, %v300
        %v317 = vpack.c.b16 %v303, %v302
        %v318 = vpack.c.b16 %v305, %v304
        %v319 = vpack.c.b16 %v307, %v306
        %v320 = vpack.c.b16 %v309, %v308
        %v321 = vpack.c.b16 %v311, %v310
        %v322 = vpack.c.b16 %v313, %v312
        %v323 = vpack.c.b16 %v315, %v314
        %v364 = vunpack.c.l.b16 %v242
        %v365 = vunpack.c.h.b16 %v242
        %v366 = vunpack.c.l.b16 %v243
        %v367 = vunpack.c.h.b16 %v243
        %v368 = vunpack.c.l.b16 %v244
        %v369 = vunpack.c.h.b16 %v244
        %v370 = vunpack.c.l.b16 %v245
        %v371 = vunpack.c.h.b16 %v245
        %v372 = vunpack.c.l.b16 %v246
        %v373 = vunpack.c.h.b16 %v246
        %v374 = vunpack.c.l.b16 %v247
        %v375 = vunpack.c.h.b16 %v247
        %v376 = vunpack.c.l.b16 %v248
        %v377 = vunpack.c.h.b16 %v248
        %v378 = vunpack.c.l.b16 %v249
        %v379 = vunpack.c.h.b16 %v249
        %v380 = vunpack.c.l.b16 %v250
        %v381 = vunpack.c.h.b16 %v250
        %v382 = vunpack.c.l.b16 %v251
        %v383 = vunpack.c.h.b16 %v251
        %v384 = vunpack.c.l.b16 %v252
        %v385 = vunpack.c.h.b16 %v252
        %v386 = vunpack.c.l.b16 %v253
        %v387 = vunpack.c.h.b16 %v253
        %v388 = vunpack.c.l.b16 %v254
        %v389 = vunpack.c.h.b16 %v254
        %v390 = vunpack.c.l.b16 %v255
        %v391 = vunpack.c.h.b16 %v255
        %v392 = vunpack.c.l.b16 %v256
        %v393 = vunpack.c.h.b16 %v256
        %v394 = vunpack.c.l.b16 %v257
        %v395 = vunpack.c.h.b16 %v257
        %v396 = vunpack.c.l.b16 %v258
        %v397 = vunpack.c.h.b16 %v258
        %v398 = vunpack.c.l.b16 %v259
        %v399 = vunpack.c.h.b16 %v259
        %v400 = vunpack.c.l.b16 %v260
        %v401 = vunpack.c.h.b16 %v260
        %v402 = vunpack.c.l.b16 %v261
        %v403 = vunpack.c.h.b16 %v261
        %v404 = vunpack.c.l.b16 %v262
        %v405 = vunpack.c.h.b16 %v262
        %v406 = vunpack.c.l.b16 %v263
        %v407 = vunpack.c.h.b16 %v263
        %v408 = vunpack.c.l.b16 %v264
        %v409 = vunpack.c.h.b16 %v264
        %v410 = vunpack.c.l.b16 %v265
        %v411 = vunpack.c.h.b16 %v265
        %v412 = vunpack.c.l.b16 %v266
        %v413 = vunpack.c.h.b16 %v266
        %v414 = vunpack.c.l.b16 %v267
        %v415 = vunpack.c.h.b16 %v267
        %v416 = vunpack.c.l.b16 %v268
        %v417 = vunpack.c.h.b16 %v268
        %v418 = vunpack.c.l.b16 %v269
        %v419 = vunpack.c.h.b16 %v269
        %v420 = vunpack.c.l.b16 %v270
        %v421 = vunpack.c.h.b16 %v270
        %v422 = vunpack.c.l.b16 %v271
        %v423 = vunpack.c.h.b16 %v271
        %v424 = vunpack.c.l.b16 %v272
        %v425 = vunpack.c.h.b16 %v272
        %v426 = vunpack.c.l.b16 %v273
        %v427 = vunpack.c.h.b16 %v273
        %v428 = vpack.c.b16 %v368, %v364
        %v429 = vpack.c.b16 %v369, %v365
        %v430 = vpack.c.b16 %v370, %v366
        %v431 = vpack.c.b16 %v371, %v367
        %v432 = vpack.c.b16 %v376, %v372
        %v433 = vpack.c.b16 %v377, %v373
        %v434 = vpack.c.b16 %v378, %v374
        %v435 = vpack.c.b16 %v379, %v375
        %v436 = vpack.c.b16 %v384, %v380
        %v437 = vpack.c.b16 %v385, %v381
        %v438 = vpack.c.b16 %v386, %v382
        %v439 = vpack.c.b16 %v387, %v383
        %v440 = vpack.c.b16 %v392, %v388
        %v441 = vpack.c.b16 %v393, %v389
        %v442 = vpack.c.b16 %v394, %v390
        %v443 = vpack.c.b16 %v395, %v391
        %v444 = vpack.c.b16 %v400, %v396
        %v445 = vpack.c.b16 %v401, %v397
        %v446 = vpack.c.b16 %v402, %v398
        %v447 = vpack.c.b16 %v403, %v399
        %v448 = vpack.c.b16 %v408, %v404
        %v449 = vpack.c.b16 %v409, %v405
        %v450 = vpack.c.b16 %v410, %v406
        %v451 = vpack.c.b16 %v411, %v407
        %v452 = vpack.c.b16 %v416, %v412
        %v453 = vpack.c.b16 %v417, %v413
        %v454 = vpack.c.b16 %v418, %v414
        %v455 = vpack.c.b16 %v419, %v415
        %v456 = vpack.c.b16 %v424, %v420
        %v457 = vpack.c.b16 %v425, %v421
        %v458 = vpack.c.b16 %v426, %v422
        %v459 = vpack.c.b16 %v427, %v423
        %492 = vmatpush.bf16.msra.mxu0 %v456
        %493 = vmatpush.bf16.msra.mxu0 %v452
        %494 = vmatpush.bf16.msra.mxu0 %v448
        %495 = vmatpush.bf16.msra.mxu0 %v444
        %496 = vmatpush.bf16.msra.mxu0 %v440
        %497 = vmatpush.bf16.msra.mxu0 %v436
        %498 = vmatpush.bf16.msra.mxu0 %v432
        %499 = vmatpush.bf16.msra.mxu0 %v428
        %500 = vmatmul.bf16.gmra.mxu0 %v316
        %v501 = vpop.f32.mrf.mxu0
        %v502 = vadd.f32 %v276, %v501
        %v503 = vpop.f32.mrf.mxu0
        %v504 = vadd.f32 %v276, %v503
        %505 = vmatmul.bf16.gmra.mxu0 %v317
        %v506 = vpop.f32.mrf.mxu0
        %v507 = vadd.f32 %v276, %v506
        %v508 = vpop.f32.mrf.mxu0
        %v509 = vadd.f32 %v276, %v508
        %510 = vmatmul.bf16.gmra.mxu0 %v318
        %v511 = vpop.f32.mrf.mxu0
        %v512 = vadd.f32 %v276, %v511
        %v513 = vpop.f32.mrf.mxu0
        %v514 = vadd.f32 %v276, %v513
        %515 = vmatmul.bf16.gmra.mxu0 %v319
        %v516 = vpop.f32.mrf.mxu0
        %v517 = vadd.f32 %v276, %v516
        %v518 = vpop.f32.mrf.mxu0
        %v519 = vadd.f32 %v276, %v518
        %520 = vmatmul.bf16.gmra.mxu0 %v320
        %v521 = vpop.f32.mrf.mxu0
        %v522 = vadd.f32 %v276, %v521
        %v523 = vpop.f32.mrf.mxu0
        %v524 = vadd.f32 %v276, %v523
        %525 = vmatmul.bf16.gmra.mxu0 %v321
        %v526 = vpop.f32.mrf.mxu0
        %v527 = vadd.f32 %v276, %v526
        %v528 = vpop.f32.mrf.mxu0
        %v529 = vadd.f32 %v276, %v528
        %530 = vmatmul.bf16.gmra.mxu0 %v322
        %v531 = vpop.f32.mrf.mxu0
        %v532 = vadd.f32 %v276, %v531
        %v533 = vpop.f32.mrf.mxu0
        %v534 = vadd.f32 %v276, %v533
        %535 = vmatmul.bf16.gmra.mxu0 %v323
        %v536 = vpop.f32.mrf.mxu0
        %v537 = vadd.f32 %v276, %v536
        %v538 = vpop.f32.mrf.mxu0
        %v539 = vadd.f32 %v276, %v538
        %540 = vdwg.mxu0
        %541 = vmatpush.bf16.msra.mxu0 %v457
        %542 = vmatpush.bf16.msra.mxu0 %v453
        %543 = vmatpush.bf16.msra.mxu0 %v449
        %544 = vmatpush.bf16.msra.mxu0 %v445
        %545 = vmatpush.bf16.msra.mxu0 %v441
        %546 = vmatpush.bf16.msra.mxu0 %v437
        %547 = vmatpush.bf16.msra.mxu0 %v433
        %548 = vmatpush.bf16.msra.mxu0 %v429
        %549 = vmatmul.bf16.gmra.mxu0 %v316
        %v550 = vpop.f32.mrf.mxu0
        %v551 = vadd.f32 %v277, %v550
        %v552 = vpop.f32.mrf.mxu0
        %v553 = vadd.f32 %v277, %v552
        %554 = vmatmul.bf16.gmra.mxu0 %v317
        %v555 = vpop.f32.mrf.mxu0
        %v556 = vadd.f32 %v277, %v555
        %v557 = vpop.f32.mrf.mxu0
        %v558 = vadd.f32 %v277, %v557
        %559 = vmatmul.bf16.gmra.mxu0 %v318
        %v560 = vpop.f32.mrf.mxu0
        %v561 = vadd.f32 %v277, %v560
        %v562 = vpop.f32.mrf.mxu0
        %v563 = vadd.f32 %v277, %v562
        %564 = vmatmul.bf16.gmra.mxu0 %v319
        %v565 = vpop.f32.mrf.mxu0
        %v566 = vadd.f32 %v277, %v565
        %v567 = vpop.f32.mrf.mxu0
        %v568 = vadd.f32 %v277, %v567
        %569 = vmatmul.bf16.gmra.mxu0 %v320
        %v570 = vpop.f32.mrf.mxu0
        %v571 = vadd.f32 %v277, %v570
        %v572 = vpop.f32.mrf.mxu0
        %v573 = vadd.f32 %v277, %v572
        %574 = vmatmul.bf16.gmra.mxu0 %v321
        %v575 = vpop.f32.mrf.mxu0
        %v576 = vadd.f32 %v277, %v575
        %v577 = vpop.f32.mrf.mxu0
        %v578 = vadd.f32 %v277, %v577
        %579 = vmatmul.bf16.gmra.mxu0 %v322
        %v580 = vpop.f32.mrf.mxu0
        %v581 = vadd.f32 %v277, %v580
        %v582 = vpop.f32.mrf.mxu0
        %v583 = vadd.f32 %v277, %v582
        %584 = vmatmul.bf16.gmra.mxu0 %v323
        %v585 = vpop.f32.mrf.mxu0
        %v586 = vadd.f32 %v277, %v585
        %v587 = vpop.f32.mrf.mxu0
        %v588 = vadd.f32 %v277, %v587
        %589 = vdwg.mxu0
        %590 = vmatpush.bf16.msra.mxu0 %v458
        %591 = vmatpush.bf16.msra.mxu0 %v454
        %592 = vmatpush.bf16.msra.mxu0 %v450
        %593 = vmatpush.bf16.msra.mxu0 %v446
        %594 = vmatpush.bf16.msra.mxu0 %v442
        %595 = vmatpush.bf16.msra.mxu0 %v438
        %596 = vmatpush.bf16.msra.mxu0 %v434
        %597 = vmatpush.bf16.msra.mxu0 %v430
        %598 = vmatmul.bf16.gmra.mxu0 %v316
        %v599 = vpop.f32.mrf.mxu0
        %v600 = vadd.f32 %v278, %v599
        %v601 = vpop.f32.mrf.mxu0
        %v602 = vadd.f32 %v278, %v601
        %603 = vmatmul.bf16.gmra.mxu0 %v317
        %v604 = vpop.f32.mrf.mxu0
        %v605 = vadd.f32 %v278, %v604
        %v606 = vpop.f32.mrf.mxu0
        %v607 = vadd.f32 %v278, %v606
        %608 = vmatmul.bf16.gmra.mxu0 %v318
        %v609 = vpop.f32.mrf.mxu0
        %v610 = vadd.f32 %v278, %v609
        %v611 = vpop.f32.mrf.mxu0
        %v612 = vadd.f32 %v278, %v611
        %613 = vmatmul.bf16.gmra.mxu0 %v319
        %v614 = vpop.f32.mrf.mxu0
        %v615 = vadd.f32 %v278, %v614
        %v616 = vpop.f32.mrf.mxu0
        %v617 = vadd.f32 %v278, %v616
        %618 = vmatmul.bf16.gmra.mxu0 %v320
        %v619 = vpop.f32.mrf.mxu0
        %v620 = vadd.f32 %v278, %v619
        %v621 = vpop.f32.mrf.mxu0
        %v622 = vadd.f32 %v278, %v621
        %623 = vmatmul.bf16.gmra.mxu0 %v321
        %v624 = vpop.f32.mrf.mxu0
        %v625 = vadd.f32 %v278, %v624
        %v626 = vpop.f32.mrf.mxu0
        %v627 = vadd.f32 %v278, %v626
        %628 = vmatmul.bf16.gmra.mxu0 %v322
        %v629 = vpop.f32.mrf.mxu0
        %v630 = vadd.f32 %v278, %v629
        %v631 = vpop.f32.mrf.mxu0
        %v632 = vadd.f32 %v278, %v631
        %633 = vmatmul.bf16.gmra.mxu0 %v323
        %v634 = vpop.f32.mrf.mxu0
        %v635 = vadd.f32 %v278, %v634
        %v636 = vpop.f32.mrf.mxu0
        %v637 = vadd.f32 %v278, %v636
        %638 = vdwg.mxu0
        %639 = vmatpush.bf16.msra.mxu0 %v459
        %640 = vmatpush.bf16.msra.mxu0 %v455
        %641 = vmatpush.bf16.msra.mxu0 %v451
        %642 = vmatpush.bf16.msra.mxu0 %v447
        %643 = vmatpush.bf16.msra.mxu0 %v443
        %644 = vmatpush.bf16.msra.mxu0 %v439
        %645 = vmatpush.bf16.msra.mxu0 %v435
        %646 = vmatpush.bf16.msra.mxu0 %v431
        %647 = vmatmul.bf16.gmra.mxu0 %v316
        %v648 = vpop.f32.mrf.mxu0
        %v649 = vadd.f32 %v279, %v648
        %v650 = vpop.f32.mrf.mxu0
        %v651 = vadd.f32 %v279, %v650
        %652 = vmatmul.bf16.gmra.mxu0 %v317
        %v653 = vpop.f32.mrf.mxu0
        %v654 = vadd.f32 %v279, %v653
        %v655 = vpop.f32.mrf.mxu0
        %v656 = vadd.f32 %v279, %v655
        %657 = vmatmul.bf16.gmra.mxu0 %v318
        %v658 = vpop.f32.mrf.mxu0
        %v659 = vadd.f32 %v279, %v658
        %v660 = vpop.f32.mrf.mxu0
        %v661 = vadd.f32 %v279, %v660
        %662 = vmatmul.bf16.gmra.mxu0 %v319
        %v663 = vpop.f32.mrf.mxu0
        %v664 = vadd.f32 %v279, %v663
        %v665 = vpop.f32.mrf.mxu0
        %v666 = vadd.f32 %v279, %v665
        %667 = vmatmul.bf16.gmra.mxu0 %v320
        %v668 = vpop.f32.mrf.mxu0
        %v669 = vadd.f32 %v279, %v668
        %v670 = vpop.f32.mrf.mxu0
        %v671 = vadd.f32 %v279, %v670
        %672 = vmatmul.bf16.gmra.mxu0 %v321
        %v673 = vpop.f32.mrf.mxu0
        %v674 = vadd.f32 %v279, %v673
        %v675 = vpop.f32.mrf.mxu0
        %v676 = vadd.f32 %v279, %v675
        %677 = vmatmul.bf16.gmra.mxu0 %v322
        %v678 = vpop.f32.mrf.mxu0
        %v679 = vadd.f32 %v279, %v678
        %v680 = vpop.f32.mrf.mxu0
        %v681 = vadd.f32 %v279, %v680
        %682 = vmatmul.bf16.gmra.mxu0 %v323
        %v683 = vpop.f32.mrf.mxu0
        %v684 = vadd.f32 %v279, %v683
        %v685 = vpop.f32.mrf.mxu0
        %v686 = vadd.f32 %v279, %v685
        %687 = vdwg.mxu0
        %v688 = vmul.f32 %v502, 0.5
        %v689 = vmul.f32 %v551, 0.5
        %v690 = vmul.f32 %v600, 0.5
        %v691 = vmul.f32 %v649, 0.5
        %v692 = vmul.f32 %v504, 0.5
        %v693 = vmul.f32 %v553, 0.5
        %v694 = vmul.f32 %v602, 0.5
        %v695 = vmul.f32 %v651, 0.5
        %v696 = vmul.f32 %v507, 0.5
        %v697 = vmul.f32 %v556, 0.5
        %v698 = vmul.f32 %v605, 0.5
        %v699 = vmul.f32 %v654, 0.5
        %v700 = vmul.f32 %v509, 0.5
        %v701 = vmul.f32 %v558, 0.5
        %v702 = vmul.f32 %v607, 0.5
        %v703 = vmul.f32 %v656, 0.5
        %v704 = vmul.f32 %v512, 0.5
        %v705 = vmul.f32 %v561, 0.5
        %v706 = vmul.f32 %v610, 0.5
        %v707 = vmul.f32 %v659, 0.5
        %v708 = vmul.f32 %v514, 0.5
        %v709 = vmul.f32 %v563, 0.5
        %v710 = vmul.f32 %v612, 0.5
        %v711 = vmul.f32 %v661, 0.5
        %v712 = vmul.f32 %v517, 0.5
        %v713 = vmul.f32 %v566, 0.5
        %v714 = vmul.f32 %v615, 0.5
        %v715 = vmul.f32 %v664, 0.5
        %v716 = vmul.f32 %v519, 0.5
        %v717 = vmul.f32 %v568, 0.5
        %v718 = vmul.f32 %v617, 0.5
        %v719 = vmul.f32 %v666, 0.5
        %v720 = vmul.f32 %v522, 0.5
        %v721 = vmul.f32 %v571, 0.5
        %v722 = vmul.f32 %v620, 0.5
        %v723 = vmul.f32 %v669, 0.5
        %v724 = vmul.f32 %v524, 0.5
        %v725 = vmul.f32 %v573, 0.5
        %v726 = vmul.f32 %v622, 0.5
        %v727 = vmul.f32 %v671, 0.5
        %v728 = vmul.f32 %v527, 0.5
        %v729 = vmul.f32 %v576, 0.5
        %v730 = vmul.f32 %v625, 0.5
        %v731 = vmul.f32 %v674, 0.5
        %v732 = vmul.f32 %v529, 0.5
        %v733 = vmul.f32 %v578, 0.5
        %v734 = vmul.f32 %v627, 0.5
        %v735 = vmul.f32 %v676, 0.5
        %v736 = vmul.f32 %v532, 0.5
        %v737 = vmul.f32 %v581, 0.5
        %v738 = vmul.f32 %v630, 0.5
        %v739 = vmul.f32 %v679, 0.5
        %v740 = vmul.f32 %v534, 0.5
        %v741 = vmul.f32 %v583, 0.5
        %v742 = vmul.f32 %v632, 0.5
        %v743 = vmul.f32 %v681, 0.5
        %v744 = vmul.f32 %v537, 0.5
        %v745 = vmul.f32 %v586, 0.5
        %v746 = vmul.f32 %v635, 0.5
        %v747 = vmul.f32 %v684, 0.5
        %v748 = vmul.f32 %v539, 0.5
        %v749 = vmul.f32 %v588, 0.5
        %v750 = vmul.f32 %v637, 0.5
        %v751 = vmul.f32 %v686, 0.5
        %v752 = vmul.f32 %v502, 0.70710677
        %v753 = vmul.f32 %v551, 0.70710677
        %v754 = vmul.f32 %v600, 0.70710677
        %v755 = vmul.f32 %v649, 0.70710677
        %v756 = vmul.f32 %v504, 0.70710677
        %v757 = vmul.f32 %v553, 0.70710677
        %v758 = vmul.f32 %v602, 0.70710677
        %v759 = vmul.f32 %v651, 0.70710677
        %v760 = vmul.f32 %v507, 0.70710677
        %v761 = vmul.f32 %v556, 0.70710677
        %v762 = vmul.f32 %v605, 0.70710677
        %v763 = vmul.f32 %v654, 0.70710677
        %v764 = vmul.f32 %v509, 0.70710677
        %v765 = vmul.f32 %v558, 0.70710677
        %v766 = vmul.f32 %v607, 0.70710677
        %v767 = vmul.f32 %v656, 0.70710677
        %v768 = vmul.f32 %v512, 0.70710677
        %v769 = vmul.f32 %v561, 0.70710677
        %v770 = vmul.f32 %v610, 0.70710677
        %v771 = vmul.f32 %v659, 0.70710677
        %v772 = vmul.f32 %v514, 0.70710677
        %v773 = vmul.f32 %v563, 0.70710677
        %v774 = vmul.f32 %v612, 0.70710677
        %v775 = vmul.f32 %v661, 0.70710677
        %v776 = vmul.f32 %v517, 0.70710677
        %v777 = vmul.f32 %v566, 0.70710677
        %v778 = vmul.f32 %v615, 0.70710677
        %v779 = vmul.f32 %v664, 0.70710677
        %v780 = vmul.f32 %v519, 0.70710677
        %v781 = vmul.f32 %v568, 0.70710677
        %v782 = vmul.f32 %v617, 0.70710677
        %v783 = vmul.f32 %v666, 0.70710677
        %v784 = vmul.f32 %v522, 0.70710677
        %v785 = vmul.f32 %v571, 0.70710677
        %v786 = vmul.f32 %v620, 0.70710677
        %v787 = vmul.f32 %v669, 0.70710677
        %v788 = vmul.f32 %v524, 0.70710677
        %v789 = vmul.f32 %v573, 0.70710677
        %v790 = vmul.f32 %v622, 0.70710677
        %v791 = vmul.f32 %v671, 0.70710677
        %v792 = vmul.f32 %v527, 0.70710677
        %v793 = vmul.f32 %v576, 0.70710677
        %v794 = vmul.f32 %v625, 0.70710677
        %v795 = vmul.f32 %v674, 0.70710677
        %v796 = vmul.f32 %v529, 0.70710677
        %v797 = vmul.f32 %v578, 0.70710677
        %v798 = vmul.f32 %v627, 0.70710677
        %v799 = vmul.f32 %v676, 0.70710677
        %v800 = vmul.f32 %v532, 0.70710677
        %v801 = vmul.f32 %v581, 0.70710677
        %v802 = vmul.f32 %v630, 0.70710677
        %v803 = vmul.f32 %v679, 0.70710677
        %v804 = vmul.f32 %v534, 0.70710677
        %v805 = vmul.f32 %v583, 0.70710677
        %v806 = vmul.f32 %v632, 0.70710677
        %v807 = vmul.f32 %v681, 0.70710677
        %v808 = vmul.f32 %v537, 0.70710677
        %v809 = vmul.f32 %v586, 0.70710677
        %v810 = vmul.f32 %v635, 0.70710677
        %v811 = vmul.f32 %v684, 0.70710677
        %v812 = vmul.f32 %v539, 0.70710677
        %v813 = vmul.f32 %v588, 0.70710677
        %v814 = vmul.f32 %v637, 0.70710677
        %v815 = vmul.f32 %v686, 0.70710677
        %v816 = vmul.f32 %v752, %v752
        %v817 = vmin.f32 16.0, %v816
        %v818 = vmul.f32 %v817, 2.1237322e-06
        %v819 = vadd.f32 %v818, 0.00028619796
        %v820 = vmul.f32 %v817, %v819
        %v821 = vadd.f32 %v820, 0.0036580483
        %v822 = vmul.f32 %v817, %v821
        %v823 = vadd.f32 %v822, 0.05243302
        %v824 = vmul.f32 %v817, %v823
        %v825 = vadd.f32 %v824, 0.18741608
        %v826 = vmul.f32 %v817, %v825
        %v827 = vadd.f32 %v826, 1.1283791
        %v828 = vmul.f32 %v752, %v827
        %v829 = vmul.f32 %v817, 3.8918573e-05
        %v830 = vadd.f32 %v829, 0.001143296
        %v831 = vmul.f32 %v817, %v830
        %v832 = vadd.f32 %v831, 0.014752088
        %v833 = vmul.f32 %v817, %v832
        %v834 = vadd.f32 %v833, 0.112945676
        %v835 = vmul.f32 %v817, %v834
        %v836 = vadd.f32 %v835, 0.4994258
        %v837 = vmul.f32 %v817, %v836
        %v838 = vadd.f32 %v837, 1.0
        %v839 = vrcp.pop %v838
        %v840 = vmul.f32 %v838, %v839
        %v841 = vsub.f32 1.0, %v840
        %v842 = vmul.f32 %v839, %v841
        %v843 = vadd.f32 %v839, %v842
        %vm844 = vweird.f32 %v838
        %vm845 = vweird.f32 %v839
        %vm846 = vmor %vm844, %vm845
        %v847 = vsel %vm846, %v839, %v843
        %v848 = vand.u32 2147483647, %v838
        %vm849 = vcmp.eq.f32.partialorder %v848, 8.507059e+37
        %v850 = vand.u32 %v838, 2147483648
        %v851 = vor.u32 1.1754944e-38, %v850
        %v852 = vsel %vm849, %v851, %v847
        %v853 = vmul.f32 %v828, %v852
        %v854 = vmin.f32 %v853, 1.0
        %v855 = vmax.f32 %v854, -1.0
        %v856 = vmul.f32 %v753, %v753
        %v857 = vmin.f32 16.0, %v856
        %v858 = vmul.f32 %v857, 2.1237322e-06
        %v859 = vadd.f32 %v858, 0.00028619796
        %v860 = vmul.f32 %v857, %v859
        %v861 = vadd.f32 %v860, 0.0036580483
        %v862 = vmul.f32 %v857, %v861
        %v863 = vadd.f32 %v862, 0.05243302
        %v864 = vmul.f32 %v857, %v863
        %v865 = vadd.f32 %v864, 0.18741608
        %v866 = vmul.f32 %v857, %v865
        %v867 = vadd.f32 %v866, 1.1283791
        %v868 = vmul.f32 %v753, %v867
        %v869 = vmul.f32 %v857, 3.8918573e-05
        %v870 = vadd.f32 %v869, 0.001143296
        %v871 = vmul.f32 %v857, %v870
        %v872 = vadd.f32 %v871, 0.014752088
        %v873 = vmul.f32 %v857, %v872
        %v874 = vadd.f32 %v873, 0.112945676
        %v875 = vmul.f32 %v857, %v874
        %v876 = vadd.f32 %v875, 0.4994258
        %v877 = vmul.f32 %v857, %v876
        %v878 = vadd.f32 %v877, 1.0
        %v879 = vrcp.pop %v878
        %v880 = vmul.f32 %v878, %v879
        %v881 = vsub.f32 1.0, %v880
        %v882 = vmul.f32 %v879, %v881
        %v883 = vadd.f32 %v879, %v882
        %vm884 = vweird.f32 %v878
        %vm885 = vweird.f32 %v879
        %vm886 = vmor %vm884, %vm885
        %v887 = vsel %vm886, %v879, %v883
        %v888 = vand.u32 2147483647, %v878
        %vm889 = vcmp.eq.f32.partialorder %v888, 8.507059e+37
        %v890 = vand.u32 %v878, 2147483648
        %v891 = vor.u32 1.1754944e-38, %v890
        %v892 = vsel %vm889, %v891, %v887
        %v893 = vmul.f32 %v868, %v892
        %v894 = vmin.f32 %v893, 1.0
        %v895 = vmax.f32 %v894, -1.0
        %v896 = vmul.f32 %v754, %v754
        %v897 = vmin.f32 16.0, %v896
        %v898 = vmul.f32 %v897, 2.1237322e-06
        %v899 = vadd.f32 %v898, 0.00028619796
        %v900 = vmul.f32 %v897, %v899
        %v901 = vadd.f32 %v900, 0.0036580483
        %v902 = vmul.f32 %v897, %v901
        %v903 = vadd.f32 %v902, 0.05243302
        %v904 = vmul.f32 %v897, %v903
        %v905 = vadd.f32 %v904, 0.18741608
        %v906 = vmul.f32 %v897, %v905
        %v907 = vadd.f32 %v906, 1.1283791
        %v908 = vmul.f32 %v754, %v907
        %v909 = vmul.f32 %v897, 3.8918573e-05
        %v910 = vadd.f32 %v909, 0.001143296
        %v911 = vmul.f32 %v897, %v910
        %v912 = vadd.f32 %v911, 0.014752088
        %v913 = vmul.f32 %v897, %v912
        %v914 = vadd.f32 %v913, 0.112945676
        %v915 = vmul.f32 %v897, %v914
        %v916 = vadd.f32 %v915, 0.4994258
        %v917 = vmul.f32 %v897, %v916
        %v918 = vadd.f32 %v917, 1.0
        %v919 = vrcp.pop %v918
        %v920 = vmul.f32 %v918, %v919
        %v921 = vsub.f32 1.0, %v920
        %v922 = vmul.f32 %v919, %v921
        %v923 = vadd.f32 %v919, %v922
        %vm924 = vweird.f32 %v918
        %vm925 = vweird.f32 %v919
        %vm926 = vmor %vm924, %vm925
        %v927 = vsel %vm926, %v919, %v923
        %v928 = vand.u32 2147483647, %v918
        %vm929 = vcmp.eq.f32.partialorder %v928, 8.507059e+37
        %v930 = vand.u32 %v918, 2147483648
        %v931 = vor.u32 1.1754944e-38, %v930
        %v932 = vsel %vm929, %v931, %v927
        %v933 = vmul.f32 %v908, %v932
        %v934 = vmin.f32 %v933, 1.0
        %v935 = vmax.f32 %v934, -1.0
        %v936 = vmul.f32 %v755, %v755
        %v937 = vmin.f32 16.0, %v936
        %v938 = vmul.f32 %v937, 2.1237322e-06
        %v939 = vadd.f32 %v938, 0.00028619796
        %v940 = vmul.f32 %v937, %v939
        %v941 = vadd.f32 %v940, 0.0036580483
        %v942 = vmul.f32 %v937, %v941
        %v943 = vadd.f32 %v942, 0.05243302
        %v944 = vmul.f32 %v937, %v943
        %v945 = vadd.f32 %v944, 0.18741608
        %v946 = vmul.f32 %v937, %v945
        %v947 = vadd.f32 %v946, 1.1283791
        %v948 = vmul.f32 %v755, %v947
        %v949 = vmul.f32 %v937, 3.8918573e-05
        %v950 = vadd.f32 %v949, 0.001143296
        %v951 = vmul.f32 %v937, %v950
        %v952 = vadd.f32 %v951, 0.014752088
        %v953 = vmul.f32 %v937, %v952
        %v954 = vadd.f32 %v953, 0.112945676
        %v955 = vmul.f32 %v937, %v954
        %v956 = vadd.f32 %v955, 0.4994258
        %v957 = vmul.f32 %v937, %v956
        %v958 = vadd.f32 %v957, 1.0
        %v959 = vrcp.pop %v958
        %v960 = vmul.f32 %v958, %v959
        %v961 = vsub.f32 1.0, %v960
        %v962 = vmul.f32 %v959, %v961
        %v963 = vadd.f32 %v959, %v962
        %vm964 = vweird.f32 %v958
        %vm965 = vweird.f32 %v959
        %vm966 = vmor %vm964, %vm965
        %v967 = vsel %vm966, %v959, %v963
        %v968 = vand.u32 2147483647, %v958
        %vm969 = vcmp.eq.f32.partialorder %v968, 8.507059e+37
        %v970 = vand.u32 %v958, 2147483648
        %v971 = vor.u32 1.1754944e-38, %v970
        %v972 = vsel %vm969, %v971, %v967
        %v973 = vmul.f32 %v948, %v972
        %v974 = vmin.f32 %v973, 1.0
        %v975 = vmax.f32 %v974, -1.0
        %v976 = vmul.f32 %v756, %v756
        %v977 = vmin.f32 16.0, %v976
        %v978 = vmul.f32 %v977, 2.1237322e-06
        %v979 = vadd.f32 %v978, 0.00028619796
        %v980 = vmul.f32 %v977, %v979
        %v981 = vadd.f32 %v980, 0.0036580483
        %v982 = vmul.f32 %v977, %v981
        %v983 = vadd.f32 %v982, 0.05243302
        %v984 = vmul.f32 %v977, %v983
        %v985 = vadd.f32 %v984, 0.18741608
        %v986 = vmul.f32 %v977, %v985
        %v987 = vadd.f32 %v986, 1.1283791
        %v988 = vmul.f32 %v756, %v987
        %v989 = vmul.f32 %v977, 3.8918573e-05
        %v990 = vadd.f32 %v989, 0.001143296
        %v991 = vmul.f32 %v977, %v990
        %v992 = vadd.f32 %v991, 0.014752088
        %v993 = vmul.f32 %v977, %v992
        %v994 = vadd.f32 %v993, 0.112945676
        %v995 = vmul.f32 %v977, %v994
        %v996 = vadd.f32 %v995, 0.4994258
        %v997 = vmul.f32 %v977, %v996
        %v998 = vadd.f32 %v997, 1.0
        %v999 = vrcp.pop %v998
        %v1000 = vmul.f32 %v998, %v999
        %v1001 = vsub.f32 1.0, %v1000
        %v1002 = vmul.f32 %v999, %v1001
        %v1003 = vadd.f32 %v999, %v1002
        %vm1004 = vweird.f32 %v998
        %vm1005 = vweird.f32 %v999
        %vm1006 = vmor %vm1004, %vm1005
        %v1007 = vsel %vm1006, %v999, %v1003
        %v1008 = vand.u32 2147483647, %v998
        %vm1009 = vcmp.eq.f32.partialorder %v1008, 8.507059e+37
        %v1010 = vand.u32 %v998, 2147483648
        %v1011 = vor.u32 1.1754944e-38, %v1010
        %v1012 = vsel %vm1009, %v1011, %v1007
        %v1013 = vmul.f32 %v988, %v1012
        %v1014 = vmin.f32 %v1013, 1.0
        %v1015 = vmax.f32 %v1014, -1.0
        %v1016 = vmul.f32 %v757, %v757
        %v1017 = vmin.f32 16.0, %v1016
        %v1018 = vmul.f32 %v1017, 2.1237322e-06
        %v1019 = vadd.f32 %v1018, 0.00028619796
        %v1020 = vmul.f32 %v1017, %v1019
        %v1021 = vadd.f32 %v1020, 0.0036580483
        %v1022 = vmul.f32 %v1017, %v1021
        %v1023 = vadd.f32 %v1022, 0.05243302
        %v1024 = vmul.f32 %v1017, %v1023
        %v1025 = vadd.f32 %v1024, 0.18741608
        %v1026 = vmul.f32 %v1017, %v1025
        %v1027 = vadd.f32 %v1026, 1.1283791
        %v1028 = vmul.f32 %v757, %v1027
        %v1029 = vmul.f32 %v1017, 3.8918573e-05
        %v1030 = vadd.f32 %v1029, 0.001143296
        %v1031 = vmul.f32 %v1017, %v1030
        %v1032 = vadd.f32 %v1031, 0.014752088
        %v1033 = vmul.f32 %v1017, %v1032
        %v1034 = vadd.f32 %v1033, 0.112945676
        %v1035 = vmul.f32 %v1017, %v1034
        %v1036 = vadd.f32 %v1035, 0.4994258
        %v1037 = vmul.f32 %v1017, %v1036
        %v1038 = vadd.f32 %v1037, 1.0
        %v1039 = vrcp.pop %v1038
        %v1040 = vmul.f32 %v1038, %v1039
        %v1041 = vsub.f32 1.0, %v1040
        %v1042 = vmul.f32 %v1039, %v1041
        %v1043 = vadd.f32 %v1039, %v1042
        %vm1044 = vweird.f32 %v1038
        %vm1045 = vweird.f32 %v1039
        %vm1046 = vmor %vm1044, %vm1045
        %v1047 = vsel %vm1046, %v1039, %v1043
        %v1048 = vand.u32 2147483647, %v1038
        %vm1049 = vcmp.eq.f32.partialorder %v1048, 8.507059e+37
        %v1050 = vand.u32 %v1038, 2147483648
        %v1051 = vor.u32 1.1754944e-38, %v1050
        %v1052 = vsel %vm1049, %v1051, %v1047
        %v1053 = vmul.f32 %v1028, %v1052
        %v1054 = vmin.f32 %v1053, 1.0
        %v1055 = vmax.f32 %v1054, -1.0
        %v1056 = vmul.f32 %v758, %v758
        %v1057 = vmin.f32 16.0, %v1056
        %v1058 = vmul.f32 %v1057, 2.1237322e-06
        %v1059 = vadd.f32 %v1058, 0.00028619796
        %v1060 = vmul.f32 %v1057, %v1059
        %v1061 = vadd.f32 %v1060, 0.0036580483
        %v1062 = vmul.f32 %v1057, %v1061
        %v1063 = vadd.f32 %v1062, 0.05243302
        %v1064 = vmul.f32 %v1057, %v1063
        %v1065 = vadd.f32 %v1064, 0.18741608
        %v1066 = vmul.f32 %v1057, %v1065
        %v1067 = vadd.f32 %v1066, 1.1283791
        %v1068 = vmul.f32 %v758, %v1067
        %v1069 = vmul.f32 %v1057, 3.8918573e-05
        %v1070 = vadd.f32 %v1069, 0.001143296
        %v1071 = vmul.f32 %v1057, %v1070
        %v1072 = vadd.f32 %v1071, 0.014752088
        %v1073 = vmul.f32 %v1057, %v1072
        %v1074 = vadd.f32 %v1073, 0.112945676
        %v1075 = vmul.f32 %v1057, %v1074
        %v1076 = vadd.f32 %v1075, 0.4994258
        %v1077 = vmul.f32 %v1057, %v1076
        %v1078 = vadd.f32 %v1077, 1.0
        %v1079 = vrcp.pop %v1078
        %v1080 = vmul.f32 %v1078, %v1079
        %v1081 = vsub.f32 1.0, %v1080
        %v1082 = vmul.f32 %v1079, %v1081
        %v1083 = vadd.f32 %v1079, %v1082
        %vm1084 = vweird.f32 %v1078
        %vm1085 = vweird.f32 %v1079
        %vm1086 = vmor %vm1084, %vm1085
        %v1087 = vsel %vm1086, %v1079, %v1083
        %v1088 = vand.u32 2147483647, %v1078
        %vm1089 = vcmp.eq.f32.partialorder %v1088, 8.507059e+37
        %v1090 = vand.u32 %v1078, 2147483648
        %v1091 = vor.u32 1.1754944e-38, %v1090
        %v1092 = vsel %vm1089, %v1091, %v1087
        %v1093 = vmul.f32 %v1068, %v1092
        %v1094 = vmin.f32 %v1093, 1.0
        %v1095 = vmax.f32 %v1094, -1.0
        %v1096 = vmul.f32 %v759, %v759
        %v1097 = vmin.f32 16.0, %v1096
        %v1098 = vmul.f32 %v1097, 2.1237322e-06
        %v1099 = vadd.f32 %v1098, 0.00028619796
        %v1100 = vmul.f32 %v1097, %v1099
        %v1101 = vadd.f32 %v1100, 0.0036580483
        %v1102 = vmul.f32 %v1097, %v1101
        %v1103 = vadd.f32 %v1102, 0.05243302
        %v1104 = vmul.f32 %v1097, %v1103
        %v1105 = vadd.f32 %v1104, 0.18741608
        %v1106 = vmul.f32 %v1097, %v1105
        %v1107 = vadd.f32 %v1106, 1.1283791
        %v1108 = vmul.f32 %v759, %v1107
        %v1109 = vmul.f32 %v1097, 3.8918573e-05
        %v1110 = vadd.f32 %v1109, 0.001143296
        %v1111 = vmul.f32 %v1097, %v1110
        %v1112 = vadd.f32 %v1111, 0.014752088
        %v1113 = vmul.f32 %v1097, %v1112
        %v1114 = vadd.f32 %v1113, 0.112945676
        %v1115 = vmul.f32 %v1097, %v1114
        %v1116 = vadd.f32 %v1115, 0.4994258
        %v1117 = vmul.f32 %v1097, %v1116
        %v1118 = vadd.f32 %v1117, 1.0
        %v1119 = vrcp.pop %v1118
        %v1120 = vmul.f32 %v1118, %v1119
        %v1121 = vsub.f32 1.0, %v1120
        %v1122 = vmul.f32 %v1119, %v1121
        %v1123 = vadd.f32 %v1119, %v1122
        %vm1124 = vweird.f32 %v1118
        %vm1125 = vweird.f32 %v1119
        %vm1126 = vmor %vm1124, %vm1125
        %v1127 = vsel %vm1126, %v1119, %v1123
        %v1128 = vand.u32 2147483647, %v1118
        %vm1129 = vcmp.eq.f32.partialorder %v1128, 8.507059e+37
        %v1130 = vand.u32 %v1118, 2147483648
        %v1131 = vor.u32 1.1754944e-38, %v1130
        %v1132 = vsel %vm1129, %v1131, %v1127
        %v1133 = vmul.f32 %v1108, %v1132
        %v1134 = vmin.f32 %v1133, 1.0
        %v1135 = vmax.f32 %v1134, -1.0
        %v1136 = vmul.f32 %v760, %v760
        %v1137 = vmin.f32 16.0, %v1136
        %v1138 = vmul.f32 %v1137, 2.1237322e-06
        %v1139 = vadd.f32 %v1138, 0.00028619796
        %v1140 = vmul.f32 %v1137, %v1139
        %v1141 = vadd.f32 %v1140, 0.0036580483
        %v1142 = vmul.f32 %v1137, %v1141
        %v1143 = vadd.f32 %v1142, 0.05243302
        %v1144 = vmul.f32 %v1137, %v1143
        %v1145 = vadd.f32 %v1144, 0.18741608
        %v1146 = vmul.f32 %v1137, %v1145
        %v1147 = vadd.f32 %v1146, 1.1283791
        %v1148 = vmul.f32 %v760, %v1147
        %v1149 = vmul.f32 %v1137, 3.8918573e-05
        %v1150 = vadd.f32 %v1149, 0.001143296
        %v1151 = vmul.f32 %v1137, %v1150
        %v1152 = vadd.f32 %v1151, 0.014752088
        %v1153 = vmul.f32 %v1137, %v1152
        %v1154 = vadd.f32 %v1153, 0.112945676
        %v1155 = vmul.f32 %v1137, %v1154
        %v1156 = vadd.f32 %v1155, 0.4994258
        %v1157 = vmul.f32 %v1137, %v1156
        %v1158 = vadd.f32 %v1157, 1.0
        %v1159 = vrcp.pop %v1158
        %v1160 = vmul.f32 %v1158, %v1159
        %v1161 = vsub.f32 1.0, %v1160
        %v1162 = vmul.f32 %v1159, %v1161
        %v1163 = vadd.f32 %v1159, %v1162
        %vm1164 = vweird.f32 %v1158
        %vm1165 = vweird.f32 %v1159
        %vm1166 = vmor %vm1164, %vm1165
        %v1167 = vsel %vm1166, %v1159, %v1163
        %v1168 = vand.u32 2147483647, %v1158
        %vm1169 = vcmp.eq.f32.partialorder %v1168, 8.507059e+37
        %v1170 = vand.u32 %v1158, 2147483648
        %v1171 = vor.u32 1.1754944e-38, %v1170
        %v1172 = vsel %vm1169, %v1171, %v1167
        %v1173 = vmul.f32 %v1148, %v1172
        %v1174 = vmin.f32 %v1173, 1.0
        %v1175 = vmax.f32 %v1174, -1.0
        %v1176 = vmul.f32 %v761, %v761
        %v1177 = vmin.f32 16.0, %v1176
        %v1178 = vmul.f32 %v1177, 2.1237322e-06
        %v1179 = vadd.f32 %v1178, 0.00028619796
        %v1180 = vmul.f32 %v1177, %v1179
        %v1181 = vadd.f32 %v1180, 0.0036580483
        %v1182 = vmul.f32 %v1177, %v1181
        %v1183 = vadd.f32 %v1182, 0.05243302
        %v1184 = vmul.f32 %v1177, %v1183
        %v1185 = vadd.f32 %v1184, 0.18741608
        %v1186 = vmul.f32 %v1177, %v1185
        %v1187 = vadd.f32 %v1186, 1.1283791
        %v1188 = vmul.f32 %v761, %v1187
        %v1189 = vmul.f32 %v1177, 3.8918573e-05
        %v1190 = vadd.f32 %v1189, 0.001143296
        %v1191 = vmul.f32 %v1177, %v1190
        %v1192 = vadd.f32 %v1191, 0.014752088
        %v1193 = vmul.f32 %v1177, %v1192
        %v1194 = vadd.f32 %v1193, 0.112945676
        %v1195 = vmul.f32 %v1177, %v1194
        %v1196 = vadd.f32 %v1195, 0.4994258
        %v1197 = vmul.f32 %v1177, %v1196
        %v1198 = vadd.f32 %v1197, 1.0
        %v1199 = vrcp.pop %v1198
        %v1200 = vmul.f32 %v1198, %v1199
        %v1201 = vsub.f32 1.0, %v1200
        %v1202 = vmul.f32 %v1199, %v1201
        %v1203 = vadd.f32 %v1199, %v1202
        %vm1204 = vweird.f32 %v1198
        %vm1205 = vweird.f32 %v1199
        %vm1206 = vmor %vm1204, %vm1205
        %v1207 = vsel %vm1206, %v1199, %v1203
        %v1208 = vand.u32 2147483647, %v1198
        %vm1209 = vcmp.eq.f32.partialorder %v1208, 8.507059e+37
        %v1210 = vand.u32 %v1198, 2147483648
        %v1211 = vor.u32 1.1754944e-38, %v1210
        %v1212 = vsel %vm1209, %v1211, %v1207
        %v1213 = vmul.f32 %v1188, %v1212
        %v1214 = vmin.f32 %v1213, 1.0
        %v1215 = vmax.f32 %v1214, -1.0
        %v1216 = vmul.f32 %v762, %v762
        %v1217 = vmin.f32 16.0, %v1216
        %v1218 = vmul.f32 %v1217, 2.1237322e-06
        %v1219 = vadd.f32 %v1218, 0.00028619796
        %v1220 = vmul.f32 %v1217, %v1219
        %v1221 = vadd.f32 %v1220, 0.0036580483
        %v1222 = vmul.f32 %v1217, %v1221
        %v1223 = vadd.f32 %v1222, 0.05243302
        %v1224 = vmul.f32 %v1217, %v1223
        %v1225 = vadd.f32 %v1224, 0.18741608
        %v1226 = vmul.f32 %v1217, %v1225
        %v1227 = vadd.f32 %v1226, 1.1283791
        %v1228 = vmul.f32 %v762, %v1227
        %v1229 = vmul.f32 %v1217, 3.8918573e-05
        %v1230 = vadd.f32 %v1229, 0.001143296
        %v1231 = vmul.f32 %v1217, %v1230
        %v1232 = vadd.f32 %v1231, 0.014752088
        %v1233 = vmul.f32 %v1217, %v1232
        %v1234 = vadd.f32 %v1233, 0.112945676
        %v1235 = vmul.f32 %v1217, %v1234
        %v1236 = vadd.f32 %v1235, 0.4994258
        %v1237 = vmul.f32 %v1217, %v1236
        %v1238 = vadd.f32 %v1237, 1.0
        %v1239 = vrcp.pop %v1238
        %v1240 = vmul.f32 %v1238, %v1239
        %v1241 = vsub.f32 1.0, %v1240
        %v1242 = vmul.f32 %v1239, %v1241
        %v1243 = vadd.f32 %v1239, %v1242
        %vm1244 = vweird.f32 %v1238
        %vm1245 = vweird.f32 %v1239
        %vm1246 = vmor %vm1244, %vm1245
        %v1247 = vsel %vm1246, %v1239, %v1243
        %v1248 = vand.u32 2147483647, %v1238
        %vm1249 = vcmp.eq.f32.partialorder %v1248, 8.507059e+37
        %v1250 = vand.u32 %v1238, 2147483648
        %v1251 = vor.u32 1.1754944e-38, %v1250
        %v1252 = vsel %vm1249, %v1251, %v1247
        %v1253 = vmul.f32 %v1228, %v1252
        %v1254 = vmin.f32 %v1253, 1.0
        %v1255 = vmax.f32 %v1254, -1.0
        %v1256 = vmul.f32 %v763, %v763
        %v1257 = vmin.f32 16.0, %v1256
        %v1258 = vmul.f32 %v1257, 2.1237322e-06
        %v1259 = vadd.f32 %v1258, 0.00028619796
        %v1260 = vmul.f32 %v1257, %v1259
        %v1261 = vadd.f32 %v1260, 0.0036580483
        %v1262 = vmul.f32 %v1257, %v1261
        %v1263 = vadd.f32 %v1262, 0.05243302
        %v1264 = vmul.f32 %v1257, %v1263
        %v1265 = vadd.f32 %v1264, 0.18741608
        %v1266 = vmul.f32 %v1257, %v1265
        %v1267 = vadd.f32 %v1266, 1.1283791
        %v1268 = vmul.f32 %v763, %v1267
        %v1269 = vmul.f32 %v1257, 3.8918573e-05
        %v1270 = vadd.f32 %v1269, 0.001143296
        %v1271 = vmul.f32 %v1257, %v1270
        %v1272 = vadd.f32 %v1271, 0.014752088
        %v1273 = vmul.f32 %v1257, %v1272
        %v1274 = vadd.f32 %v1273, 0.112945676
        %v1275 = vmul.f32 %v1257, %v1274
        %v1276 = vadd.f32 %v1275, 0.4994258
        %v1277 = vmul.f32 %v1257, %v1276
        %v1278 = vadd.f32 %v1277, 1.0
        %v1279 = vrcp.pop %v1278
        %v1280 = vmul.f32 %v1278, %v1279
        %v1281 = vsub.f32 1.0, %v1280
        %v1282 = vmul.f32 %v1279, %v1281
        %v1283 = vadd.f32 %v1279, %v1282
        %vm1284 = vweird.f32 %v1278
        %vm1285 = vweird.f32 %v1279
        %vm1286 = vmor %vm1284, %vm1285
        %v1287 = vsel %vm1286, %v1279, %v1283
        %v1288 = vand.u32 2147483647, %v1278
        %vm1289 = vcmp.eq.f32.partialorder %v1288, 8.507059e+37
        %v1290 = vand.u32 %v1278, 2147483648
        %v1291 = vor.u32 1.1754944e-38, %v1290
        %v1292 = vsel %vm1289, %v1291, %v1287
        %v1293 = vmul.f32 %v1268, %v1292
        %v1294 = vmin.f32 %v1293, 1.0
        %v1295 = vmax.f32 %v1294, -1.0
        %v1296 = vmul.f32 %v764, %v764
        %v1297 = vmin.f32 16.0, %v1296
        %v1298 = vmul.f32 %v1297, 2.1237322e-06
        %v1299 = vadd.f32 %v1298, 0.00028619796
        %v1300 = vmul.f32 %v1297, %v1299
        %v1301 = vadd.f32 %v1300, 0.0036580483
        %v1302 = vmul.f32 %v1297, %v1301
        %v1303 = vadd.f32 %v1302, 0.05243302
        %v1304 = vmul.f32 %v1297, %v1303
        %v1305 = vadd.f32 %v1304, 0.18741608
        %v1306 = vmul.f32 %v1297, %v1305
        %v1307 = vadd.f32 %v1306, 1.1283791
        %v1308 = vmul.f32 %v764, %v1307
        %v1309 = vmul.f32 %v1297, 3.8918573e-05
        %v1310 = vadd.f32 %v1309, 0.001143296
        %v1311 = vmul.f32 %v1297, %v1310
        %v1312 = vadd.f32 %v1311, 0.014752088
        %v1313 = vmul.f32 %v1297, %v1312
        %v1314 = vadd.f32 %v1313, 0.112945676
        %v1315 = vmul.f32 %v1297, %v1314
        %v1316 = vadd.f32 %v1315, 0.4994258
        %v1317 = vmul.f32 %v1297, %v1316
        %v1318 = vadd.f32 %v1317, 1.0
        %v1319 = vrcp.pop %v1318
        %v1320 = vmul.f32 %v1318, %v1319
        %v1321 = vsub.f32 1.0, %v1320
        %v1322 = vmul.f32 %v1319, %v1321
        %v1323 = vadd.f32 %v1319, %v1322
        %vm1324 = vweird.f32 %v1318
        %vm1325 = vweird.f32 %v1319
        %vm1326 = vmor %vm1324, %vm1325
        %v1327 = vsel %vm1326, %v1319, %v1323
        %v1328 = vand.u32 2147483647, %v1318
        %vm1329 = vcmp.eq.f32.partialorder %v1328, 8.507059e+37
        %v1330 = vand.u32 %v1318, 2147483648
        %v1331 = vor.u32 1.1754944e-38, %v1330
        %v1332 = vsel %vm1329, %v1331, %v1327
        %v1333 = vmul.f32 %v1308, %v1332
        %v1334 = vmin.f32 %v1333, 1.0
        %v1335 = vmax.f32 %v1334, -1.0
        %v1336 = vmul.f32 %v765, %v765
        %v1337 = vmin.f32 16.0, %v1336
        %v1338 = vmul.f32 %v1337, 2.1237322e-06
        %v1339 = vadd.f32 %v1338, 0.00028619796
        %v1340 = vmul.f32 %v1337, %v1339
        %v1341 = vadd.f32 %v1340, 0.0036580483
        %v1342 = vmul.f32 %v1337, %v1341
        %v1343 = vadd.f32 %v1342, 0.05243302
        %v1344 = vmul.f32 %v1337, %v1343
        %v1345 = vadd.f32 %v1344, 0.18741608
        %v1346 = vmul.f32 %v1337, %v1345
        %v1347 = vadd.f32 %v1346, 1.1283791
        %v1348 = vmul.f32 %v765, %v1347
        %v1349 = vmul.f32 %v1337, 3.8918573e-05
        %v1350 = vadd.f32 %v1349, 0.001143296
        %v1351 = vmul.f32 %v1337, %v1350
        %v1352 = vadd.f32 %v1351, 0.014752088
        %v1353 = vmul.f32 %v1337, %v1352
        %v1354 = vadd.f32 %v1353, 0.112945676
        %v1355 = vmul.f32 %v1337, %v1354
        %v1356 = vadd.f32 %v1355, 0.4994258
        %v1357 = vmul.f32 %v1337, %v1356
        %v1358 = vadd.f32 %v1357, 1.0
        %v1359 = vrcp.pop %v1358
        %v1360 = vmul.f32 %v1358, %v1359
        %v1361 = vsub.f32 1.0, %v1360
        %v1362 = vmul.f32 %v1359, %v1361
        %v1363 = vadd.f32 %v1359, %v1362
        %vm1364 = vweird.f32 %v1358
        %vm1365 = vweird.f32 %v1359
        %vm1366 = vmor %vm1364, %vm1365
        %v1367 = vsel %vm1366, %v1359, %v1363
        %v1368 = vand.u32 2147483647, %v1358
        %vm1369 = vcmp.eq.f32.partialorder %v1368, 8.507059e+37
        %v1370 = vand.u32 %v1358, 2147483648
        %v1371 = vor.u32 1.1754944e-38, %v1370
        %v1372 = vsel %vm1369, %v1371, %v1367
        %v1373 = vmul.f32 %v1348, %v1372
        %v1374 = vmin.f32 %v1373, 1.0
        %v1375 = vmax.f32 %v1374, -1.0
        %v1376 = vmul.f32 %v766, %v766
        %v1377 = vmin.f32 16.0, %v1376
        %v1378 = vmul.f32 %v1377, 2.1237322e-06
        %v1379 = vadd.f32 %v1378, 0.00028619796
        %v1380 = vmul.f32 %v1377, %v1379
        %v1381 = vadd.f32 %v1380, 0.0036580483
        %v1382 = vmul.f32 %v1377, %v1381
        %v1383 = vadd.f32 %v1382, 0.05243302
        %v1384 = vmul.f32 %v1377, %v1383
        %v1385 = vadd.f32 %v1384, 0.18741608
        %v1386 = vmul.f32 %v1377, %v1385
        %v1387 = vadd.f32 %v1386, 1.1283791
        %v1388 = vmul.f32 %v766, %v1387
        %v1389 = vmul.f32 %v1377, 3.8918573e-05
        %v1390 = vadd.f32 %v1389, 0.001143296
        %v1391 = vmul.f32 %v1377, %v1390
        %v1392 = vadd.f32 %v1391, 0.014752088
        %v1393 = vmul.f32 %v1377, %v1392
        %v1394 = vadd.f32 %v1393, 0.112945676
        %v1395 = vmul.f32 %v1377, %v1394
        %v1396 = vadd.f32 %v1395, 0.4994258
        %v1397 = vmul.f32 %v1377, %v1396
        %v1398 = vadd.f32 %v1397, 1.0
        %v1399 = vrcp.pop %v1398
        %v1400 = vmul.f32 %v1398, %v1399
        %v1401 = vsub.f32 1.0, %v1400
        %v1402 = vmul.f32 %v1399, %v1401
        %v1403 = vadd.f32 %v1399, %v1402
        %vm1404 = vweird.f32 %v1398
        %vm1405 = vweird.f32 %v1399
        %vm1406 = vmor %vm1404, %vm1405
        %v1407 = vsel %vm1406, %v1399, %v1403
        %v1408 = vand.u32 2147483647, %v1398
        %vm1409 = vcmp.eq.f32.partialorder %v1408, 8.507059e+37
        %v1410 = vand.u32 %v1398, 2147483648
        %v1411 = vor.u32 1.1754944e-38, %v1410
        %v1412 = vsel %vm1409, %v1411, %v1407
        %v1413 = vmul.f32 %v1388, %v1412
        %v1414 = vmin.f32 %v1413, 1.0
        %v1415 = vmax.f32 %v1414, -1.0
        %v1416 = vmul.f32 %v767, %v767
        %v1417 = vmin.f32 16.0, %v1416
        %v1418 = vmul.f32 %v1417, 2.1237322e-06
        %v1419 = vadd.f32 %v1418, 0.00028619796
        %v1420 = vmul.f32 %v1417, %v1419
        %v1421 = vadd.f32 %v1420, 0.0036580483
        %v1422 = vmul.f32 %v1417, %v1421
        %v1423 = vadd.f32 %v1422, 0.05243302
        %v1424 = vmul.f32 %v1417, %v1423
        %v1425 = vadd.f32 %v1424, 0.18741608
        %v1426 = vmul.f32 %v1417, %v1425
        %v1427 = vadd.f32 %v1426, 1.1283791
        %v1428 = vmul.f32 %v767, %v1427
        %v1429 = vmul.f32 %v1417, 3.8918573e-05
        %v1430 = vadd.f32 %v1429, 0.001143296
        %v1431 = vmul.f32 %v1417, %v1430
        %v1432 = vadd.f32 %v1431, 0.014752088
        %v1433 = vmul.f32 %v1417, %v1432
        %v1434 = vadd.f32 %v1433, 0.112945676
        %v1435 = vmul.f32 %v1417, %v1434
        %v1436 = vadd.f32 %v1435, 0.4994258
        %v1437 = vmul.f32 %v1417, %v1436
        %v1438 = vadd.f32 %v1437, 1.0
        %v1439 = vrcp.pop %v1438
        %v1440 = vmul.f32 %v1438, %v1439
        %v1441 = vsub.f32 1.0, %v1440
        %v1442 = vmul.f32 %v1439, %v1441
        %v1443 = vadd.f32 %v1439, %v1442
        %vm1444 = vweird.f32 %v1438
        %vm1445 = vweird.f32 %v1439
        %vm1446 = vmor %vm1444, %vm1445
        %v1447 = vsel %vm1446, %v1439, %v1443
        %v1448 = vand.u32 2147483647, %v1438
        %vm1449 = vcmp.eq.f32.partialorder %v1448, 8.507059e+37
        %v1450 = vand.u32 %v1438, 2147483648
        %v1451 = vor.u32 1.1754944e-38, %v1450
        %v1452 = vsel %vm1449, %v1451, %v1447
        %v1453 = vmul.f32 %v1428, %v1452
        %v1454 = vmin.f32 %v1453, 1.0
        %v1455 = vmax.f32 %v1454, -1.0
        %v1456 = vmul.f32 %v768, %v768
        %v1457 = vmin.f32 16.0, %v1456
        %v1458 = vmul.f32 %v1457, 2.1237322e-06
        %v1459 = vadd.f32 %v1458, 0.00028619796
        %v1460 = vmul.f32 %v1457, %v1459
        %v1461 = vadd.f32 %v1460, 0.0036580483
        %v1462 = vmul.f32 %v1457, %v1461
        %v1463 = vadd.f32 %v1462, 0.05243302
        %v1464 = vmul.f32 %v1457, %v1463
        %v1465 = vadd.f32 %v1464, 0.18741608
        %v1466 = vmul.f32 %v1457, %v1465
        %v1467 = vadd.f32 %v1466, 1.1283791
        %v1468 = vmul.f32 %v768, %v1467
        %v1469 = vmul.f32 %v1457, 3.8918573e-05
        %v1470 = vadd.f32 %v1469, 0.001143296
        %v1471 = vmul.f32 %v1457, %v1470
        %v1472 = vadd.f32 %v1471, 0.014752088
        %v1473 = vmul.f32 %v1457, %v1472
        %v1474 = vadd.f32 %v1473, 0.112945676
        %v1475 = vmul.f32 %v1457, %v1474
        %v1476 = vadd.f32 %v1475, 0.4994258
        %v1477 = vmul.f32 %v1457, %v1476
        %v1478 = vadd.f32 %v1477, 1.0
        %v1479 = vrcp.pop %v1478
        %v1480 = vmul.f32 %v1478, %v1479
        %v1481 = vsub.f32 1.0, %v1480
        %v1482 = vmul.f32 %v1479, %v1481
        %v1483 = vadd.f32 %v1479, %v1482
        %vm1484 = vweird.f32 %v1478
        %vm1485 = vweird.f32 %v1479
        %vm1486 = vmor %vm1484, %vm1485
        %v1487 = vsel %vm1486, %v1479, %v1483
        %v1488 = vand.u32 2147483647, %v1478
        %vm1489 = vcmp.eq.f32.partialorder %v1488, 8.507059e+37
        %v1490 = vand.u32 %v1478, 2147483648
        %v1491 = vor.u32 1.1754944e-38, %v1490
        %v1492 = vsel %vm1489, %v1491, %v1487
        %v1493 = vmul.f32 %v1468, %v1492
        %v1494 = vmin.f32 %v1493, 1.0
        %v1495 = vmax.f32 %v1494, -1.0
        %v1496 = vmul.f32 %v769, %v769
        %v1497 = vmin.f32 16.0, %v1496
        %v1498 = vmul.f32 %v1497, 2.1237322e-06
        %v1499 = vadd.f32 %v1498, 0.00028619796
        %v1500 = vmul.f32 %v1497, %v1499
        %v1501 = vadd.f32 %v1500, 0.0036580483
        %v1502 = vmul.f32 %v1497, %v1501
        %v1503 = vadd.f32 %v1502, 0.05243302
        %v1504 = vmul.f32 %v1497, %v1503
        %v1505 = vadd.f32 %v1504, 0.18741608
        %v1506 = vmul.f32 %v1497, %v1505
        %v1507 = vadd.f32 %v1506, 1.1283791
        %v1508 = vmul.f32 %v769, %v1507
        %v1509 = vmul.f32 %v1497, 3.8918573e-05
        %v1510 = vadd.f32 %v1509, 0.001143296
        %v1511 = vmul.f32 %v1497, %v1510
        %v1512 = vadd.f32 %v1511, 0.014752088
        %v1513 = vmul.f32 %v1497, %v1512
        %v1514 = vadd.f32 %v1513, 0.112945676
        %v1515 = vmul.f32 %v1497, %v1514
        %v1516 = vadd.f32 %v1515, 0.4994258
        %v1517 = vmul.f32 %v1497, %v1516
        %v1518 = vadd.f32 %v1517, 1.0
        %v1519 = vrcp.pop %v1518
        %v1520 = vmul.f32 %v1518, %v1519
        %v1521 = vsub.f32 1.0, %v1520
        %v1522 = vmul.f32 %v1519, %v1521
        %v1523 = vadd.f32 %v1519, %v1522
        %vm1524 = vweird.f32 %v1518
        %vm1525 = vweird.f32 %v1519
        %vm1526 = vmor %vm1524, %vm1525
        %v1527 = vsel %vm1526, %v1519, %v1523
        %v1528 = vand.u32 2147483647, %v1518
        %vm1529 = vcmp.eq.f32.partialorder %v1528, 8.507059e+37
        %v1530 = vand.u32 %v1518, 2147483648
        %v1531 = vor.u32 1.1754944e-38, %v1530
        %v1532 = vsel %vm1529, %v1531, %v1527
        %v1533 = vmul.f32 %v1508, %v1532
        %v1534 = vmin.f32 %v1533, 1.0
        %v1535 = vmax.f32 %v1534, -1.0
        %v1536 = vmul.f32 %v770, %v770
        %v1537 = vmin.f32 16.0, %v1536
        %v1538 = vmul.f32 %v1537, 2.1237322e-06
        %v1539 = vadd.f32 %v1538, 0.00028619796
        %v1540 = vmul.f32 %v1537, %v1539
        %v1541 = vadd.f32 %v1540, 0.0036580483
        %v1542 = vmul.f32 %v1537, %v1541
        %v1543 = vadd.f32 %v1542, 0.05243302
        %v1544 = vmul.f32 %v1537, %v1543
        %v1545 = vadd.f32 %v1544, 0.18741608
        %v1546 = vmul.f32 %v1537, %v1545
        %v1547 = vadd.f32 %v1546, 1.1283791
        %v1548 = vmul.f32 %v770, %v1547
        %v1549 = vmul.f32 %v1537, 3.8918573e-05
        %v1550 = vadd.f32 %v1549, 0.001143296
        %v1551 = vmul.f32 %v1537, %v1550
        %v1552 = vadd.f32 %v1551, 0.014752088
        %v1553 = vmul.f32 %v1537, %v1552
        %v1554 = vadd.f32 %v1553, 0.112945676
        %v1555 = vmul.f32 %v1537, %v1554
        %v1556 = vadd.f32 %v1555, 0.4994258
        %v1557 = vmul.f32 %v1537, %v1556
        %v1558 = vadd.f32 %v1557, 1.0
        %v1559 = vrcp.pop %v1558
        %v1560 = vmul.f32 %v1558, %v1559
        %v1561 = vsub.f32 1.0, %v1560
        %v1562 = vmul.f32 %v1559, %v1561
        %v1563 = vadd.f32 %v1559, %v1562
        %vm1564 = vweird.f32 %v1558
        %vm1565 = vweird.f32 %v1559
        %vm1566 = vmor %vm1564, %vm1565
        %v1567 = vsel %vm1566, %v1559, %v1563
        %v1568 = vand.u32 2147483647, %v1558
        %vm1569 = vcmp.eq.f32.partialorder %v1568, 8.507059e+37
        %v1570 = vand.u32 %v1558, 2147483648
        %v1571 = vor.u32 1.1754944e-38, %v1570
        %v1572 = vsel %vm1569, %v1571, %v1567
        %v1573 = vmul.f32 %v1548, %v1572
        %v1574 = vmin.f32 %v1573, 1.0
        %v1575 = vmax.f32 %v1574, -1.0
        %v1576 = vmul.f32 %v771, %v771
        %v1577 = vmin.f32 16.0, %v1576
        %v1578 = vmul.f32 %v1577, 2.1237322e-06
        %v1579 = vadd.f32 %v1578, 0.00028619796
        %v1580 = vmul.f32 %v1577, %v1579
        %v1581 = vadd.f32 %v1580, 0.0036580483
        %v1582 = vmul.f32 %v1577, %v1581
        %v1583 = vadd.f32 %v1582, 0.05243302
        %v1584 = vmul.f32 %v1577, %v1583
        %v1585 = vadd.f32 %v1584, 0.18741608
        %v1586 = vmul.f32 %v1577, %v1585
        %v1587 = vadd.f32 %v1586, 1.1283791
        %v1588 = vmul.f32 %v771, %v1587
        %v1589 = vmul.f32 %v1577, 3.8918573e-05
        %v1590 = vadd.f32 %v1589, 0.001143296
        %v1591 = vmul.f32 %v1577, %v1590
        %v1592 = vadd.f32 %v1591, 0.014752088
        %v1593 = vmul.f32 %v1577, %v1592
        %v1594 = vadd.f32 %v1593, 0.112945676
        %v1595 = vmul.f32 %v1577, %v1594
        %v1596 = vadd.f32 %v1595, 0.4994258
        %v1597 = vmul.f32 %v1577, %v1596
        %v1598 = vadd.f32 %v1597, 1.0
        %v1599 = vrcp.pop %v1598
        %v1600 = vmul.f32 %v1598, %v1599
        %v1601 = vsub.f32 1.0, %v1600
        %v1602 = vmul.f32 %v1599, %v1601
        %v1603 = vadd.f32 %v1599, %v1602
        %vm1604 = vweird.f32 %v1598
        %vm1605 = vweird.f32 %v1599
        %vm1606 = vmor %vm1604, %vm1605
        %v1607 = vsel %vm1606, %v1599, %v1603
        %v1608 = vand.u32 2147483647, %v1598
        %vm1609 = vcmp.eq.f32.partialorder %v1608, 8.507059e+37
        %v1610 = vand.u32 %v1598, 2147483648
        %v1611 = vor.u32 1.1754944e-38, %v1610
        %v1612 = vsel %vm1609, %v1611, %v1607
        %v1613 = vmul.f32 %v1588, %v1612
        %v1614 = vmin.f32 %v1613, 1.0
        %v1615 = vmax.f32 %v1614, -1.0
        %v1616 = vmul.f32 %v772, %v772
        %v1617 = vmin.f32 16.0, %v1616
        %v1618 = vmul.f32 %v1617, 2.1237322e-06
        %v1619 = vadd.f32 %v1618, 0.00028619796
        %v1620 = vmul.f32 %v1617, %v1619
        %v1621 = vadd.f32 %v1620, 0.0036580483
        %v1622 = vmul.f32 %v1617, %v1621
        %v1623 = vadd.f32 %v1622, 0.05243302
        %v1624 = vmul.f32 %v1617, %v1623
        %v1625 = vadd.f32 %v1624, 0.18741608
        %v1626 = vmul.f32 %v1617, %v1625
        %v1627 = vadd.f32 %v1626, 1.1283791
        %v1628 = vmul.f32 %v772, %v1627
        %v1629 = vmul.f32 %v1617, 3.8918573e-05
        %v1630 = vadd.f32 %v1629, 0.001143296
        %v1631 = vmul.f32 %v1617, %v1630
        %v1632 = vadd.f32 %v1631, 0.014752088
        %v1633 = vmul.f32 %v1617, %v1632
        %v1634 = vadd.f32 %v1633, 0.112945676
        %v1635 = vmul.f32 %v1617, %v1634
        %v1636 = vadd.f32 %v1635, 0.4994258
        %v1637 = vmul.f32 %v1617, %v1636
        %v1638 = vadd.f32 %v1637, 1.0
        %v1639 = vrcp.pop %v1638
        %v1640 = vmul.f32 %v1638, %v1639
        %v1641 = vsub.f32 1.0, %v1640
        %v1642 = vmul.f32 %v1639, %v1641
        %v1643 = vadd.f32 %v1639, %v1642
        %vm1644 = vweird.f32 %v1638
        %vm1645 = vweird.f32 %v1639
        %vm1646 = vmor %vm1644, %vm1645
        %v1647 = vsel %vm1646, %v1639, %v1643
        %v1648 = vand.u32 2147483647, %v1638
        %vm1649 = vcmp.eq.f32.partialorder %v1648, 8.507059e+37
        %v1650 = vand.u32 %v1638, 2147483648
        %v1651 = vor.u32 1.1754944e-38, %v1650
        %v1652 = vsel %vm1649, %v1651, %v1647
        %v1653 = vmul.f32 %v1628, %v1652
        %v1654 = vmin.f32 %v1653, 1.0
        %v1655 = vmax.f32 %v1654, -1.0
        %v1656 = vmul.f32 %v773, %v773
        %v1657 = vmin.f32 16.0, %v1656
        %v1658 = vmul.f32 %v1657, 2.1237322e-06
        %v1659 = vadd.f32 %v1658, 0.00028619796
        %v1660 = vmul.f32 %v1657, %v1659
        %v1661 = vadd.f32 %v1660, 0.0036580483
        %v1662 = vmul.f32 %v1657, %v1661
        %v1663 = vadd.f32 %v1662, 0.05243302
        %v1664 = vmul.f32 %v1657, %v1663
        %v1665 = vadd.f32 %v1664, 0.18741608
        %v1666 = vmul.f32 %v1657, %v1665
        %v1667 = vadd.f32 %v1666, 1.1283791
        %v1668 = vmul.f32 %v773, %v1667
        %v1669 = vmul.f32 %v1657, 3.8918573e-05
        %v1670 = vadd.f32 %v1669, 0.001143296
        %v1671 = vmul.f32 %v1657, %v1670
        %v1672 = vadd.f32 %v1671, 0.014752088
        %v1673 = vmul.f32 %v1657, %v1672
        %v1674 = vadd.f32 %v1673, 0.112945676
        %v1675 = vmul.f32 %v1657, %v1674
        %v1676 = vadd.f32 %v1675, 0.4994258
        %v1677 = vmul.f32 %v1657, %v1676
        %v1678 = vadd.f32 %v1677, 1.0
        %v1679 = vrcp.pop %v1678
        %v1680 = vmul.f32 %v1678, %v1679
        %v1681 = vsub.f32 1.0, %v1680
        %v1682 = vmul.f32 %v1679, %v1681
        %v1683 = vadd.f32 %v1679, %v1682
        %vm1684 = vweird.f32 %v1678
        %vm1685 = vweird.f32 %v1679
        %vm1686 = vmor %vm1684, %vm1685
        %v1687 = vsel %vm1686, %v1679, %v1683
        %v1688 = vand.u32 2147483647, %v1678
        %vm1689 = vcmp.eq.f32.partialorder %v1688, 8.507059e+37
        %v1690 = vand.u32 %v1678, 2147483648
        %v1691 = vor.u32 1.1754944e-38, %v1690
        %v1692 = vsel %vm1689, %v1691, %v1687
        %v1693 = vmul.f32 %v1668, %v1692
        %v1694 = vmin.f32 %v1693, 1.0
        %v1695 = vmax.f32 %v1694, -1.0
        %v1696 = vmul.f32 %v774, %v774
        %v1697 = vmin.f32 16.0, %v1696
        %v1698 = vmul.f32 %v1697, 2.1237322e-06
        %v1699 = vadd.f32 %v1698, 0.00028619796
        %v1700 = vmul.f32 %v1697, %v1699
        %v1701 = vadd.f32 %v1700, 0.0036580483
        %v1702 = vmul.f32 %v1697, %v1701
        %v1703 = vadd.f32 %v1702, 0.05243302
        %v1704 = vmul.f32 %v1697, %v1703
        %v1705 = vadd.f32 %v1704, 0.18741608
        %v1706 = vmul.f32 %v1697, %v1705
        %v1707 = vadd.f32 %v1706, 1.1283791
        %v1708 = vmul.f32 %v774, %v1707
        %v1709 = vmul.f32 %v1697, 3.8918573e-05
        %v1710 = vadd.f32 %v1709, 0.001143296
        %v1711 = vmul.f32 %v1697, %v1710
        %v1712 = vadd.f32 %v1711, 0.014752088
        %v1713 = vmul.f32 %v1697, %v1712
        %v1714 = vadd.f32 %v1713, 0.112945676
        %v1715 = vmul.f32 %v1697, %v1714
        %v1716 = vadd.f32 %v1715, 0.4994258
        %v1717 = vmul.f32 %v1697, %v1716
        %v1718 = vadd.f32 %v1717, 1.0
        %v1719 = vrcp.pop %v1718
        %v1720 = vmul.f32 %v1718, %v1719
        %v1721 = vsub.f32 1.0, %v1720
        %v1722 = vmul.f32 %v1719, %v1721
        %v1723 = vadd.f32 %v1719, %v1722
        %vm1724 = vweird.f32 %v1718
        %vm1725 = vweird.f32 %v1719
        %vm1726 = vmor %vm1724, %vm1725
        %v1727 = vsel %vm1726, %v1719, %v1723
        %v1728 = vand.u32 2147483647, %v1718
        %vm1729 = vcmp.eq.f32.partialorder %v1728, 8.507059e+37
        %v1730 = vand.u32 %v1718, 2147483648
        %v1731 = vor.u32 1.1754944e-38, %v1730
        %v1732 = vsel %vm1729, %v1731, %v1727
        %v1733 = vmul.f32 %v1708, %v1732
        %v1734 = vmin.f32 %v1733, 1.0
        %v1735 = vmax.f32 %v1734, -1.0
        %v1736 = vmul.f32 %v775, %v775
        %v1737 = vmin.f32 16.0, %v1736
        %v1738 = vmul.f32 %v1737, 2.1237322e-06
        %v1739 = vadd.f32 %v1738, 0.00028619796
        %v1740 = vmul.f32 %v1737, %v1739
        %v1741 = vadd.f32 %v1740, 0.0036580483
        %v1742 = vmul.f32 %v1737, %v1741
        %v1743 = vadd.f32 %v1742, 0.05243302
        %v1744 = vmul.f32 %v1737, %v1743
        %v1745 = vadd.f32 %v1744, 0.18741608
        %v1746 = vmul.f32 %v1737, %v1745
        %v1747 = vadd.f32 %v1746, 1.1283791
        %v1748 = vmul.f32 %v775, %v1747
        %v1749 = vmul.f32 %v1737, 3.8918573e-05
        %v1750 = vadd.f32 %v1749, 0.001143296
        %v1751 = vmul.f32 %v1737, %v1750
        %v1752 = vadd.f32 %v1751, 0.014752088
        %v1753 = vmul.f32 %v1737, %v1752
        %v1754 = vadd.f32 %v1753, 0.112945676
        %v1755 = vmul.f32 %v1737, %v1754
        %v1756 = vadd.f32 %v1755, 0.4994258
        %v1757 = vmul.f32 %v1737, %v1756
        %v1758 = vadd.f32 %v1757, 1.0
        %v1759 = vrcp.pop %v1758
        %v1760 = vmul.f32 %v1758, %v1759
        %v1761 = vsub.f32 1.0, %v1760
        %v1762 = vmul.f32 %v1759, %v1761
        %v1763 = vadd.f32 %v1759, %v1762
        %vm1764 = vweird.f32 %v1758
        %vm1765 = vweird.f32 %v1759
        %vm1766 = vmor %vm1764, %vm1765
        %v1767 = vsel %vm1766, %v1759, %v1763
        %v1768 = vand.u32 2147483647, %v1758
        %vm1769 = vcmp.eq.f32.partialorder %v1768, 8.507059e+37
        %v1770 = vand.u32 %v1758, 2147483648
        %v1771 = vor.u32 1.1754944e-38, %v1770
        %v1772 = vsel %vm1769, %v1771, %v1767
        %v1773 = vmul.f32 %v1748, %v1772
        %v1774 = vmin.f32 %v1773, 1.0
        %v1775 = vmax.f32 %v1774, -1.0
        %v1776 = vmul.f32 %v776, %v776
        %v1777 = vmin.f32 16.0, %v1776
        %v1778 = vmul.f32 %v1777, 2.1237322e-06
        %v1779 = vadd.f32 %v1778, 0.00028619796
        %v1780 = vmul.f32 %v1777, %v1779
        %v1781 = vadd.f32 %v1780, 0.0036580483
        %v1782 = vmul.f32 %v1777, %v1781
        %v1783 = vadd.f32 %v1782, 0.05243302
        %v1784 = vmul.f32 %v1777, %v1783
        %v1785 = vadd.f32 %v1784, 0.18741608
        %v1786 = vmul.f32 %v1777, %v1785
        %v1787 = vadd.f32 %v1786, 1.1283791
        %v1788 = vmul.f32 %v776, %v1787
        %v1789 = vmul.f32 %v1777, 3.8918573e-05
        %v1790 = vadd.f32 %v1789, 0.001143296
        %v1791 = vmul.f32 %v1777, %v1790
        %v1792 = vadd.f32 %v1791, 0.014752088
        %v1793 = vmul.f32 %v1777, %v1792
        %v1794 = vadd.f32 %v1793, 0.112945676
        %v1795 = vmul.f32 %v1777, %v1794
        %v1796 = vadd.f32 %v1795, 0.4994258
        %v1797 = vmul.f32 %v1777, %v1796
        %v1798 = vadd.f32 %v1797, 1.0
        %v1799 = vrcp.pop %v1798
        %v1800 = vmul.f32 %v1798, %v1799
        %v1801 = vsub.f32 1.0, %v1800
        %v1802 = vmul.f32 %v1799, %v1801
        %v1803 = vadd.f32 %v1799, %v1802
        %vm1804 = vweird.f32 %v1798
        %vm1805 = vweird.f32 %v1799
        %vm1806 = vmor %vm1804, %vm1805
        %v1807 = vsel %vm1806, %v1799, %v1803
        %v1808 = vand.u32 2147483647, %v1798
        %vm1809 = vcmp.eq.f32.partialorder %v1808, 8.507059e+37
        %v1810 = vand.u32 %v1798, 2147483648
        %v1811 = vor.u32 1.1754944e-38, %v1810
        %v1812 = vsel %vm1809, %v1811, %v1807
        %v1813 = vmul.f32 %v1788, %v1812
        %v1814 = vmin.f32 %v1813, 1.0
        %v1815 = vmax.f32 %v1814, -1.0
        %v1816 = vmul.f32 %v777, %v777
        %v1817 = vmin.f32 16.0, %v1816
        %v1818 = vmul.f32 %v1817, 2.1237322e-06
        %v1819 = vadd.f32 %v1818, 0.00028619796
        %v1820 = vmul.f32 %v1817, %v1819
        %v1821 = vadd.f32 %v1820, 0.0036580483
        %v1822 = vmul.f32 %v1817, %v1821
        %v1823 = vadd.f32 %v1822, 0.05243302
        %v1824 = vmul.f32 %v1817, %v1823
        %v1825 = vadd.f32 %v1824, 0.18741608
        %v1826 = vmul.f32 %v1817, %v1825
        %v1827 = vadd.f32 %v1826, 1.1283791
        %v1828 = vmul.f32 %v777, %v1827
        %v1829 = vmul.f32 %v1817, 3.8918573e-05
        %v1830 = vadd.f32 %v1829, 0.001143296
        %v1831 = vmul.f32 %v1817, %v1830
        %v1832 = vadd.f32 %v1831, 0.014752088
        %v1833 = vmul.f32 %v1817, %v1832
        %v1834 = vadd.f32 %v1833, 0.112945676
        %v1835 = vmul.f32 %v1817, %v1834
        %v1836 = vadd.f32 %v1835, 0.4994258
        %v1837 = vmul.f32 %v1817, %v1836
        %v1838 = vadd.f32 %v1837, 1.0
        %v1839 = vrcp.pop %v1838
        %v1840 = vmul.f32 %v1838, %v1839
        %v1841 = vsub.f32 1.0, %v1840
        %v1842 = vmul.f32 %v1839, %v1841
        %v1843 = vadd.f32 %v1839, %v1842
        %vm1844 = vweird.f32 %v1838
        %vm1845 = vweird.f32 %v1839
        %vm1846 = vmor %vm1844, %vm1845
        %v1847 = vsel %vm1846, %v1839, %v1843
        %v1848 = vand.u32 2147483647, %v1838
        %vm1849 = vcmp.eq.f32.partialorder %v1848, 8.507059e+37
        %v1850 = vand.u32 %v1838, 2147483648
        %v1851 = vor.u32 1.1754944e-38, %v1850
        %v1852 = vsel %vm1849, %v1851, %v1847
        %v1853 = vmul.f32 %v1828, %v1852
        %v1854 = vmin.f32 %v1853, 1.0
        %v1855 = vmax.f32 %v1854, -1.0
        %v1856 = vmul.f32 %v778, %v778
        %v1857 = vmin.f32 16.0, %v1856
        %v1858 = vmul.f32 %v1857, 2.1237322e-06
        %v1859 = vadd.f32 %v1858, 0.00028619796
        %v1860 = vmul.f32 %v1857, %v1859
        %v1861 = vadd.f32 %v1860, 0.0036580483
        %v1862 = vmul.f32 %v1857, %v1861
        %v1863 = vadd.f32 %v1862, 0.05243302
        %v1864 = vmul.f32 %v1857, %v1863
        %v1865 = vadd.f32 %v1864, 0.18741608
        %v1866 = vmul.f32 %v1857, %v1865
        %v1867 = vadd.f32 %v1866, 1.1283791
        %v1868 = vmul.f32 %v778, %v1867
        %v1869 = vmul.f32 %v1857, 3.8918573e-05
        %v1870 = vadd.f32 %v1869, 0.001143296
        %v1871 = vmul.f32 %v1857, %v1870
        %v1872 = vadd.f32 %v1871, 0.014752088
        %v1873 = vmul.f32 %v1857, %v1872
        %v1874 = vadd.f32 %v1873, 0.112945676
        %v1875 = vmul.f32 %v1857, %v1874
        %v1876 = vadd.f32 %v1875, 0.4994258
        %v1877 = vmul.f32 %v1857, %v1876
        %v1878 = vadd.f32 %v1877, 1.0
        %v1879 = vrcp.pop %v1878
        %v1880 = vmul.f32 %v1878, %v1879
        %v1881 = vsub.f32 1.0, %v1880
        %v1882 = vmul.f32 %v1879, %v1881
        %v1883 = vadd.f32 %v1879, %v1882
        %vm1884 = vweird.f32 %v1878
        %vm1885 = vweird.f32 %v1879
        %vm1886 = vmor %vm1884, %vm1885
        %v1887 = vsel %vm1886, %v1879, %v1883
        %v1888 = vand.u32 2147483647, %v1878
        %vm1889 = vcmp.eq.f32.partialorder %v1888, 8.507059e+37
        %v1890 = vand.u32 %v1878, 2147483648
        %v1891 = vor.u32 1.1754944e-38, %v1890
        %v1892 = vsel %vm1889, %v1891, %v1887
        %v1893 = vmul.f32 %v1868, %v1892
        %v1894 = vmin.f32 %v1893, 1.0
        %v1895 = vmax.f32 %v1894, -1.0
        %v1896 = vmul.f32 %v779, %v779
        %v1897 = vmin.f32 16.0, %v1896
        %v1898 = vmul.f32 %v1897, 2.1237322e-06
        %v1899 = vadd.f32 %v1898, 0.00028619796
        %v1900 = vmul.f32 %v1897, %v1899
        %v1901 = vadd.f32 %v1900, 0.0036580483
        %v1902 = vmul.f32 %v1897, %v1901
        %v1903 = vadd.f32 %v1902, 0.05243302
        %v1904 = vmul.f32 %v1897, %v1903
        %v1905 = vadd.f32 %v1904, 0.18741608
        %v1906 = vmul.f32 %v1897, %v1905
        %v1907 = vadd.f32 %v1906, 1.1283791
        %v1908 = vmul.f32 %v779, %v1907
        %v1909 = vmul.f32 %v1897, 3.8918573e-05
        %v1910 = vadd.f32 %v1909, 0.001143296
        %v1911 = vmul.f32 %v1897, %v1910
        %v1912 = vadd.f32 %v1911, 0.014752088
        %v1913 = vmul.f32 %v1897, %v1912
        %v1914 = vadd.f32 %v1913, 0.112945676
        %v1915 = vmul.f32 %v1897, %v1914
        %v1916 = vadd.f32 %v1915, 0.4994258
        %v1917 = vmul.f32 %v1897, %v1916
        %v1918 = vadd.f32 %v1917, 1.0
        %v1919 = vrcp.pop %v1918
        %v1920 = vmul.f32 %v1918, %v1919
        %v1921 = vsub.f32 1.0, %v1920
        %v1922 = vmul.f32 %v1919, %v1921
        %v1923 = vadd.f32 %v1919, %v1922
        %vm1924 = vweird.f32 %v1918
        %vm1925 = vweird.f32 %v1919
        %vm1926 = vmor %vm1924, %vm1925
        %v1927 = vsel %vm1926, %v1919, %v1923
        %v1928 = vand.u32 2147483647, %v1918
        %vm1929 = vcmp.eq.f32.partialorder %v1928, 8.507059e+37
        %v1930 = vand.u32 %v1918, 2147483648
        %v1931 = vor.u32 1.1754944e-38, %v1930
        %v1932 = vsel %vm1929, %v1931, %v1927
        %v1933 = vmul.f32 %v1908, %v1932
        %v1934 = vmin.f32 %v1933, 1.0
        %v1935 = vmax.f32 %v1934, -1.0
        %v1936 = vmul.f32 %v780, %v780
        %v1937 = vmin.f32 16.0, %v1936
        %v1938 = vmul.f32 %v1937, 2.1237322e-06
        %v1939 = vadd.f32 %v1938, 0.00028619796
        %v1940 = vmul.f32 %v1937, %v1939
        %v1941 = vadd.f32 %v1940, 0.0036580483
        %v1942 = vmul.f32 %v1937, %v1941
        %v1943 = vadd.f32 %v1942, 0.05243302
        %v1944 = vmul.f32 %v1937, %v1943
        %v1945 = vadd.f32 %v1944, 0.18741608
        %v1946 = vmul.f32 %v1937, %v1945
        %v1947 = vadd.f32 %v1946, 1.1283791
        %v1948 = vmul.f32 %v780, %v1947
        %v1949 = vmul.f32 %v1937, 3.8918573e-05
        %v1950 = vadd.f32 %v1949, 0.001143296
        %v1951 = vmul.f32 %v1937, %v1950
        %v1952 = vadd.f32 %v1951, 0.014752088
        %v1953 = vmul.f32 %v1937, %v1952
        %v1954 = vadd.f32 %v1953, 0.112945676
        %v1955 = vmul.f32 %v1937, %v1954
        %v1956 = vadd.f32 %v1955, 0.4994258
        %v1957 = vmul.f32 %v1937, %v1956
        %v1958 = vadd.f32 %v1957, 1.0
        %v1959 = vrcp.pop %v1958
        %v1960 = vmul.f32 %v1958, %v1959
        %v1961 = vsub.f32 1.0, %v1960
        %v1962 = vmul.f32 %v1959, %v1961
        %v1963 = vadd.f32 %v1959, %v1962
        %vm1964 = vweird.f32 %v1958
        %vm1965 = vweird.f32 %v1959
        %vm1966 = vmor %vm1964, %vm1965
        %v1967 = vsel %vm1966, %v1959, %v1963
        %v1968 = vand.u32 2147483647, %v1958
        %vm1969 = vcmp.eq.f32.partialorder %v1968, 8.507059e+37
        %v1970 = vand.u32 %v1958, 2147483648
        %v1971 = vor.u32 1.1754944e-38, %v1970
        %v1972 = vsel %vm1969, %v1971, %v1967
        %v1973 = vmul.f32 %v1948, %v1972
        %v1974 = vmin.f32 %v1973, 1.0
        %v1975 = vmax.f32 %v1974, -1.0
        %v1976 = vmul.f32 %v781, %v781
        %v1977 = vmin.f32 16.0, %v1976
        %v1978 = vmul.f32 %v1977, 2.1237322e-06
        %v1979 = vadd.f32 %v1978, 0.00028619796
        %v1980 = vmul.f32 %v1977, %v1979
        %v1981 = vadd.f32 %v1980, 0.0036580483
        %v1982 = vmul.f32 %v1977, %v1981
        %v1983 = vadd.f32 %v1982, 0.05243302
        %v1984 = vmul.f32 %v1977, %v1983
        %v1985 = vadd.f32 %v1984, 0.18741608
        %v1986 = vmul.f32 %v1977, %v1985
        %v1987 = vadd.f32 %v1986, 1.1283791
        %v1988 = vmul.f32 %v781, %v1987
        %v1989 = vmul.f32 %v1977, 3.8918573e-05
        %v1990 = vadd.f32 %v1989, 0.001143296
        %v1991 = vmul.f32 %v1977, %v1990
        %v1992 = vadd.f32 %v1991, 0.014752088
        %v1993 = vmul.f32 %v1977, %v1992
        %v1994 = vadd.f32 %v1993, 0.112945676
        %v1995 = vmul.f32 %v1977, %v1994
        %v1996 = vadd.f32 %v1995, 0.4994258
        %v1997 = vmul.f32 %v1977, %v1996
        %v1998 = vadd.f32 %v1997, 1.0
        %v1999 = vrcp.pop %v1998
        %v2000 = vmul.f32 %v1998, %v1999
        %v2001 = vsub.f32 1.0, %v2000
        %v2002 = vmul.f32 %v1999, %v2001
        %v2003 = vadd.f32 %v1999, %v2002
        %vm2004 = vweird.f32 %v1998
        %vm2005 = vweird.f32 %v1999
        %vm2006 = vmor %vm2004, %vm2005
        %v2007 = vsel %vm2006, %v1999, %v2003
        %v2008 = vand.u32 2147483647, %v1998
        %vm2009 = vcmp.eq.f32.partialorder %v2008, 8.507059e+37
        %v2010 = vand.u32 %v1998, 2147483648
        %v2011 = vor.u32 1.1754944e-38, %v2010
        %v2012 = vsel %vm2009, %v2011, %v2007
        %v2013 = vmul.f32 %v1988, %v2012
        %v2014 = vmin.f32 %v2013, 1.0
        %v2015 = vmax.f32 %v2014, -1.0
        %v2016 = vmul.f32 %v782, %v782
        %v2017 = vmin.f32 16.0, %v2016
        %v2018 = vmul.f32 %v2017, 2.1237322e-06
        %v2019 = vadd.f32 %v2018, 0.00028619796
        %v2020 = vmul.f32 %v2017, %v2019
        %v2021 = vadd.f32 %v2020, 0.0036580483
        %v2022 = vmul.f32 %v2017, %v2021
        %v2023 = vadd.f32 %v2022, 0.05243302
        %v2024 = vmul.f32 %v2017, %v2023
        %v2025 = vadd.f32 %v2024, 0.18741608
        %v2026 = vmul.f32 %v2017, %v2025
        %v2027 = vadd.f32 %v2026, 1.1283791
        %v2028 = vmul.f32 %v782, %v2027
        %v2029 = vmul.f32 %v2017, 3.8918573e-05
        %v2030 = vadd.f32 %v2029, 0.001143296
        %v2031 = vmul.f32 %v2017, %v2030
        %v2032 = vadd.f32 %v2031, 0.014752088
        %v2033 = vmul.f32 %v2017, %v2032
        %v2034 = vadd.f32 %v2033, 0.112945676
        %v2035 = vmul.f32 %v2017, %v2034
        %v2036 = vadd.f32 %v2035, 0.4994258
        %v2037 = vmul.f32 %v2017, %v2036
        %v2038 = vadd.f32 %v2037, 1.0
        %v2039 = vrcp.pop %v2038
        %v2040 = vmul.f32 %v2038, %v2039
        %v2041 = vsub.f32 1.0, %v2040
        %v2042 = vmul.f32 %v2039, %v2041
        %v2043 = vadd.f32 %v2039, %v2042
        %vm2044 = vweird.f32 %v2038
        %vm2045 = vweird.f32 %v2039
        %vm2046 = vmor %vm2044, %vm2045
        %v2047 = vsel %vm2046, %v2039, %v2043
        %v2048 = vand.u32 2147483647, %v2038
        %vm2049 = vcmp.eq.f32.partialorder %v2048, 8.507059e+37
        %v2050 = vand.u32 %v2038, 2147483648
        %v2051 = vor.u32 1.1754944e-38, %v2050
        %v2052 = vsel %vm2049, %v2051, %v2047
        %v2053 = vmul.f32 %v2028, %v2052
        %v2054 = vmin.f32 %v2053, 1.0
        %v2055 = vmax.f32 %v2054, -1.0
        %v2056 = vmul.f32 %v783, %v783
        %v2057 = vmin.f32 16.0, %v2056
        %v2058 = vmul.f32 %v2057, 2.1237322e-06
        %v2059 = vadd.f32 %v2058, 0.00028619796
        %v2060 = vmul.f32 %v2057, %v2059
        %v2061 = vadd.f32 %v2060, 0.0036580483
        %v2062 = vmul.f32 %v2057, %v2061
        %v2063 = vadd.f32 %v2062, 0.05243302
        %v2064 = vmul.f32 %v2057, %v2063
        %v2065 = vadd.f32 %v2064, 0.18741608
        %v2066 = vmul.f32 %v2057, %v2065
        %v2067 = vadd.f32 %v2066, 1.1283791
        %v2068 = vmul.f32 %v783, %v2067
        %v2069 = vmul.f32 %v2057, 3.8918573e-05
        %v2070 = vadd.f32 %v2069, 0.001143296
        %v2071 = vmul.f32 %v2057, %v2070
        %v2072 = vadd.f32 %v2071, 0.014752088
        %v2073 = vmul.f32 %v2057, %v2072
        %v2074 = vadd.f32 %v2073, 0.112945676
        %v2075 = vmul.f32 %v2057, %v2074
        %v2076 = vadd.f32 %v2075, 0.4994258
        %v2077 = vmul.f32 %v2057, %v2076
        %v2078 = vadd.f32 %v2077, 1.0
        %v2079 = vrcp.pop %v2078
        %v2080 = vmul.f32 %v2078, %v2079
        %v2081 = vsub.f32 1.0, %v2080
        %v2082 = vmul.f32 %v2079, %v2081
        %v2083 = vadd.f32 %v2079, %v2082
        %vm2084 = vweird.f32 %v2078
        %vm2085 = vweird.f32 %v2079
        %vm2086 = vmor %vm2084, %vm2085
        %v2087 = vsel %vm2086, %v2079, %v2083
        %v2088 = vand.u32 2147483647, %v2078
        %vm2089 = vcmp.eq.f32.partialorder %v2088, 8.507059e+37
        %v2090 = vand.u32 %v2078, 2147483648
        %v2091 = vor.u32 1.1754944e-38, %v2090
        %v2092 = vsel %vm2089, %v2091, %v2087
        %v2093 = vmul.f32 %v2068, %v2092
        %v2094 = vmin.f32 %v2093, 1.0
        %v2095 = vmax.f32 %v2094, -1.0
        %v2096 = vmul.f32 %v784, %v784
        %v2097 = vmin.f32 16.0, %v2096
        %v2098 = vmul.f32 %v2097, 2.1237322e-06
        %v2099 = vadd.f32 %v2098, 0.00028619796
        %v2100 = vmul.f32 %v2097, %v2099
        %v2101 = vadd.f32 %v2100, 0.0036580483
        %v2102 = vmul.f32 %v2097, %v2101
        %v2103 = vadd.f32 %v2102, 0.05243302
        %v2104 = vmul.f32 %v2097, %v2103
        %v2105 = vadd.f32 %v2104, 0.18741608
        %v2106 = vmul.f32 %v2097, %v2105
        %v2107 = vadd.f32 %v2106, 1.1283791
        %v2108 = vmul.f32 %v784, %v2107
        %v2109 = vmul.f32 %v2097, 3.8918573e-05
        %v2110 = vadd.f32 %v2109, 0.001143296
        %v2111 = vmul.f32 %v2097, %v2110
        %v2112 = vadd.f32 %v2111, 0.014752088
        %v2113 = vmul.f32 %v2097, %v2112
        %v2114 = vadd.f32 %v2113, 0.112945676
        %v2115 = vmul.f32 %v2097, %v2114
        %v2116 = vadd.f32 %v2115, 0.4994258
        %v2117 = vmul.f32 %v2097, %v2116
        %v2118 = vadd.f32 %v2117, 1.0
        %v2119 = vrcp.pop %v2118
        %v2120 = vmul.f32 %v2118, %v2119
        %v2121 = vsub.f32 1.0, %v2120
        %v2122 = vmul.f32 %v2119, %v2121
        %v2123 = vadd.f32 %v2119, %v2122
        %vm2124 = vweird.f32 %v2118
        %vm2125 = vweird.f32 %v2119
        %vm2126 = vmor %vm2124, %vm2125
        %v2127 = vsel %vm2126, %v2119, %v2123
        %v2128 = vand.u32 2147483647, %v2118
        %vm2129 = vcmp.eq.f32.partialorder %v2128, 8.507059e+37
        %v2130 = vand.u32 %v2118, 2147483648
        %v2131 = vor.u32 1.1754944e-38, %v2130
        %v2132 = vsel %vm2129, %v2131, %v2127
        %v2133 = vmul.f32 %v2108, %v2132
        %v2134 = vmin.f32 %v2133, 1.0
        %v2135 = vmax.f32 %v2134, -1.0
        %v2136 = vmul.f32 %v785, %v785
        %v2137 = vmin.f32 16.0, %v2136
        %v2138 = vmul.f32 %v2137, 2.1237322e-06
        %v2139 = vadd.f32 %v2138, 0.00028619796
        %v2140 = vmul.f32 %v2137, %v2139
        %v2141 = vadd.f32 %v2140, 0.0036580483
        %v2142 = vmul.f32 %v2137, %v2141
        %v2143 = vadd.f32 %v2142, 0.05243302
        %v2144 = vmul.f32 %v2137, %v2143
        %v2145 = vadd.f32 %v2144, 0.18741608
        %v2146 = vmul.f32 %v2137, %v2145
        %v2147 = vadd.f32 %v2146, 1.1283791
        %v2148 = vmul.f32 %v785, %v2147
        %v2149 = vmul.f32 %v2137, 3.8918573e-05
        %v2150 = vadd.f32 %v2149, 0.001143296
        %v2151 = vmul.f32 %v2137, %v2150
        %v2152 = vadd.f32 %v2151, 0.014752088
        %v2153 = vmul.f32 %v2137, %v2152
        %v2154 = vadd.f32 %v2153, 0.112945676
        %v2155 = vmul.f32 %v2137, %v2154
        %v2156 = vadd.f32 %v2155, 0.4994258
        %v2157 = vmul.f32 %v2137, %v2156
        %v2158 = vadd.f32 %v2157, 1.0
        %v2159 = vrcp.pop %v2158
        %v2160 = vmul.f32 %v2158, %v2159
        %v2161 = vsub.f32 1.0, %v2160
        %v2162 = vmul.f32 %v2159, %v2161
        %v2163 = vadd.f32 %v2159, %v2162
        %vm2164 = vweird.f32 %v2158
        %vm2165 = vweird.f32 %v2159
        %vm2166 = vmor %vm2164, %vm2165
        %v2167 = vsel %vm2166, %v2159, %v2163
        %v2168 = vand.u32 2147483647, %v2158
        %vm2169 = vcmp.eq.f32.partialorder %v2168, 8.507059e+37
        %v2170 = vand.u32 %v2158, 2147483648
        %v2171 = vor.u32 1.1754944e-38, %v2170
        %v2172 = vsel %vm2169, %v2171, %v2167
        %v2173 = vmul.f32 %v2148, %v2172
        %v2174 = vmin.f32 %v2173, 1.0
        %v2175 = vmax.f32 %v2174, -1.0
        %v2176 = vmul.f32 %v786, %v786
        %v2177 = vmin.f32 16.0, %v2176
        %v2178 = vmul.f32 %v2177, 2.1237322e-06
        %v2179 = vadd.f32 %v2178, 0.00028619796
        %v2180 = vmul.f32 %v2177, %v2179
        %v2181 = vadd.f32 %v2180, 0.0036580483
        %v2182 = vmul.f32 %v2177, %v2181
        %v2183 = vadd.f32 %v2182, 0.05243302
        %v2184 = vmul.f32 %v2177, %v2183
        %v2185 = vadd.f32 %v2184, 0.18741608
        %v2186 = vmul.f32 %v2177, %v2185
        %v2187 = vadd.f32 %v2186, 1.1283791
        %v2188 = vmul.f32 %v786, %v2187
        %v2189 = vmul.f32 %v2177, 3.8918573e-05
        %v2190 = vadd.f32 %v2189, 0.001143296
        %v2191 = vmul.f32 %v2177, %v2190
        %v2192 = vadd.f32 %v2191, 0.014752088
        %v2193 = vmul.f32 %v2177, %v2192
        %v2194 = vadd.f32 %v2193, 0.112945676
        %v2195 = vmul.f32 %v2177, %v2194
        %v2196 = vadd.f32 %v2195, 0.4994258
        %v2197 = vmul.f32 %v2177, %v2196
        %v2198 = vadd.f32 %v2197, 1.0
        %v2199 = vrcp.pop %v2198
        %v2200 = vmul.f32 %v2198, %v2199
        %v2201 = vsub.f32 1.0, %v2200
        %v2202 = vmul.f32 %v2199, %v2201
        %v2203 = vadd.f32 %v2199, %v2202
        %vm2204 = vweird.f32 %v2198
        %vm2205 = vweird.f32 %v2199
        %vm2206 = vmor %vm2204, %vm2205
        %v2207 = vsel %vm2206, %v2199, %v2203
        %v2208 = vand.u32 2147483647, %v2198
        %vm2209 = vcmp.eq.f32.partialorder %v2208, 8.507059e+37
        %v2210 = vand.u32 %v2198, 2147483648
        %v2211 = vor.u32 1.1754944e-38, %v2210
        %v2212 = vsel %vm2209, %v2211, %v2207
        %v2213 = vmul.f32 %v2188, %v2212
        %v2214 = vmin.f32 %v2213, 1.0
        %v2215 = vmax.f32 %v2214, -1.0
        %v2216 = vmul.f32 %v787, %v787
        %v2217 = vmin.f32 16.0, %v2216
        %v2218 = vmul.f32 %v2217, 2.1237322e-06
        %v2219 = vadd.f32 %v2218, 0.00028619796
        %v2220 = vmul.f32 %v2217, %v2219
        %v2221 = vadd.f32 %v2220, 0.0036580483
        %v2222 = vmul.f32 %v2217, %v2221
        %v2223 = vadd.f32 %v2222, 0.05243302
        %v2224 = vmul.f32 %v2217, %v2223
        %v2225 = vadd.f32 %v2224, 0.18741608
        %v2226 = vmul.f32 %v2217, %v2225
        %v2227 = vadd.f32 %v2226, 1.1283791
        %v2228 = vmul.f32 %v787, %v2227
        %v2229 = vmul.f32 %v2217, 3.8918573e-05
        %v2230 = vadd.f32 %v2229, 0.001143296
        %v2231 = vmul.f32 %v2217, %v2230
        %v2232 = vadd.f32 %v2231, 0.014752088
        %v2233 = vmul.f32 %v2217, %v2232
        %v2234 = vadd.f32 %v2233, 0.112945676
        %v2235 = vmul.f32 %v2217, %v2234
        %v2236 = vadd.f32 %v2235, 0.4994258
        %v2237 = vmul.f32 %v2217, %v2236
        %v2238 = vadd.f32 %v2237, 1.0
        %v2239 = vrcp.pop %v2238
        %v2240 = vmul.f32 %v2238, %v2239
        %v2241 = vsub.f32 1.0, %v2240
        %v2242 = vmul.f32 %v2239, %v2241
        %v2243 = vadd.f32 %v2239, %v2242
        %vm2244 = vweird.f32 %v2238
        %vm2245 = vweird.f32 %v2239
        %vm2246 = vmor %vm2244, %vm2245
        %v2247 = vsel %vm2246, %v2239, %v2243
        %v2248 = vand.u32 2147483647, %v2238
        %vm2249 = vcmp.eq.f32.partialorder %v2248, 8.507059e+37
        %v2250 = vand.u32 %v2238, 2147483648
        %v2251 = vor.u32 1.1754944e-38, %v2250
        %v2252 = vsel %vm2249, %v2251, %v2247
        %v2253 = vmul.f32 %v2228, %v2252
        %v2254 = vmin.f32 %v2253, 1.0
        %v2255 = vmax.f32 %v2254, -1.0
        %v2256 = vmul.f32 %v788, %v788
        %v2257 = vmin.f32 16.0, %v2256
        %v2258 = vmul.f32 %v2257, 2.1237322e-06
        %v2259 = vadd.f32 %v2258, 0.00028619796
        %v2260 = vmul.f32 %v2257, %v2259
        %v2261 = vadd.f32 %v2260, 0.0036580483
        %v2262 = vmul.f32 %v2257, %v2261
        %v2263 = vadd.f32 %v2262, 0.05243302
        %v2264 = vmul.f32 %v2257, %v2263
        %v2265 = vadd.f32 %v2264, 0.18741608
        %v2266 = vmul.f32 %v2257, %v2265
        %v2267 = vadd.f32 %v2266, 1.1283791
        %v2268 = vmul.f32 %v788, %v2267
        %v2269 = vmul.f32 %v2257, 3.8918573e-05
        %v2270 = vadd.f32 %v2269, 0.001143296
        %v2271 = vmul.f32 %v2257, %v2270
        %v2272 = vadd.f32 %v2271, 0.014752088
        %v2273 = vmul.f32 %v2257, %v2272
        %v2274 = vadd.f32 %v2273, 0.112945676
        %v2275 = vmul.f32 %v2257, %v2274
        %v2276 = vadd.f32 %v2275, 0.4994258
        %v2277 = vmul.f32 %v2257, %v2276
        %v2278 = vadd.f32 %v2277, 1.0
        %v2279 = vrcp.pop %v2278
        %v2280 = vmul.f32 %v2278, %v2279
        %v2281 = vsub.f32 1.0, %v2280
        %v2282 = vmul.f32 %v2279, %v2281
        %v2283 = vadd.f32 %v2279, %v2282
        %vm2284 = vweird.f32 %v2278
        %vm2285 = vweird.f32 %v2279
        %vm2286 = vmor %vm2284, %vm2285
        %v2287 = vsel %vm2286, %v2279, %v2283
        %v2288 = vand.u32 2147483647, %v2278
        %vm2289 = vcmp.eq.f32.partialorder %v2288, 8.507059e+37
        %v2290 = vand.u32 %v2278, 2147483648
        %v2291 = vor.u32 1.1754944e-38, %v2290
        %v2292 = vsel %vm2289, %v2291, %v2287
        %v2293 = vmul.f32 %v2268, %v2292
        %v2294 = vmin.f32 %v2293, 1.0
        %v2295 = vmax.f32 %v2294, -1.0
        %v2296 = vmul.f32 %v789, %v789
        %v2297 = vmin.f32 16.0, %v2296
        %v2298 = vmul.f32 %v2297, 2.1237322e-06
        %v2299 = vadd.f32 %v2298, 0.00028619796
        %v2300 = vmul.f32 %v2297, %v2299
        %v2301 = vadd.f32 %v2300, 0.0036580483
        %v2302 = vmul.f32 %v2297, %v2301
        %v2303 = vadd.f32 %v2302, 0.05243302
        %v2304 = vmul.f32 %v2297, %v2303
        %v2305 = vadd.f32 %v2304, 0.18741608
        %v2306 = vmul.f32 %v2297, %v2305
        %v2307 = vadd.f32 %v2306, 1.1283791
        %v2308 = vmul.f32 %v789, %v2307
        %v2309 = vmul.f32 %v2297, 3.8918573e-05
        %v2310 = vadd.f32 %v2309, 0.001143296
        %v2311 = vmul.f32 %v2297, %v2310
        %v2312 = vadd.f32 %v2311, 0.014752088
        %v2313 = vmul.f32 %v2297, %v2312
        %v2314 = vadd.f32 %v2313, 0.112945676
        %v2315 = vmul.f32 %v2297, %v2314
        %v2316 = vadd.f32 %v2315, 0.4994258
        %v2317 = vmul.f32 %v2297, %v2316
        %v2318 = vadd.f32 %v2317, 1.0
        %v2319 = vrcp.pop %v2318
        %v2320 = vmul.f32 %v2318, %v2319
        %v2321 = vsub.f32 1.0, %v2320
        %v2322 = vmul.f32 %v2319, %v2321
        %v2323 = vadd.f32 %v2319, %v2322
        %vm2324 = vweird.f32 %v2318
        %vm2325 = vweird.f32 %v2319
        %vm2326 = vmor %vm2324, %vm2325
        %v2327 = vsel %vm2326, %v2319, %v2323
        %v2328 = vand.u32 2147483647, %v2318
        %vm2329 = vcmp.eq.f32.partialorder %v2328, 8.507059e+37
        %v2330 = vand.u32 %v2318, 2147483648
        %v2331 = vor.u32 1.1754944e-38, %v2330
        %v2332 = vsel %vm2329, %v2331, %v2327
        %v2333 = vmul.f32 %v2308, %v2332
        %v2334 = vmin.f32 %v2333, 1.0
        %v2335 = vmax.f32 %v2334, -1.0
        %v2336 = vmul.f32 %v790, %v790
        %v2337 = vmin.f32 16.0, %v2336
        %v2338 = vmul.f32 %v2337, 2.1237322e-06
        %v2339 = vadd.f32 %v2338, 0.00028619796
        %v2340 = vmul.f32 %v2337, %v2339
        %v2341 = vadd.f32 %v2340, 0.0036580483
        %v2342 = vmul.f32 %v2337, %v2341
        %v2343 = vadd.f32 %v2342, 0.05243302
        %v2344 = vmul.f32 %v2337, %v2343
        %v2345 = vadd.f32 %v2344, 0.18741608
        %v2346 = vmul.f32 %v2337, %v2345
        %v2347 = vadd.f32 %v2346, 1.1283791
        %v2348 = vmul.f32 %v790, %v2347
        %v2349 = vmul.f32 %v2337, 3.8918573e-05
        %v2350 = vadd.f32 %v2349, 0.001143296
        %v2351 = vmul.f32 %v2337, %v2350
        %v2352 = vadd.f32 %v2351, 0.014752088
        %v2353 = vmul.f32 %v2337, %v2352
        %v2354 = vadd.f32 %v2353, 0.112945676
        %v2355 = vmul.f32 %v2337, %v2354
        %v2356 = vadd.f32 %v2355, 0.4994258
        %v2357 = vmul.f32 %v2337, %v2356
        %v2358 = vadd.f32 %v2357, 1.0
        %v2359 = vrcp.pop %v2358
        %v2360 = vmul.f32 %v2358, %v2359
        %v2361 = vsub.f32 1.0, %v2360
        %v2362 = vmul.f32 %v2359, %v2361
        %v2363 = vadd.f32 %v2359, %v2362
        %vm2364 = vweird.f32 %v2358
        %vm2365 = vweird.f32 %v2359
        %vm2366 = vmor %vm2364, %vm2365
        %v2367 = vsel %vm2366, %v2359, %v2363
        %v2368 = vand.u32 2147483647, %v2358
        %vm2369 = vcmp.eq.f32.partialorder %v2368, 8.507059e+37
        %v2370 = vand.u32 %v2358, 2147483648
        %v2371 = vor.u32 1.1754944e-38, %v2370
        %v2372 = vsel %vm2369, %v2371, %v2367
        %v2373 = vmul.f32 %v2348, %v2372
        %v2374 = vmin.f32 %v2373, 1.0
        %v2375 = vmax.f32 %v2374, -1.0
        %v2376 = vmul.f32 %v791, %v791
        %v2377 = vmin.f32 16.0, %v2376
        %v2378 = vmul.f32 %v2377, 2.1237322e-06
        %v2379 = vadd.f32 %v2378, 0.00028619796
        %v2380 = vmul.f32 %v2377, %v2379
        %v2381 = vadd.f32 %v2380, 0.0036580483
        %v2382 = vmul.f32 %v2377, %v2381
        %v2383 = vadd.f32 %v2382, 0.05243302
        %v2384 = vmul.f32 %v2377, %v2383
        %v2385 = vadd.f32 %v2384, 0.18741608
        %v2386 = vmul.f32 %v2377, %v2385
        %v2387 = vadd.f32 %v2386, 1.1283791
        %v2388 = vmul.f32 %v791, %v2387
        %v2389 = vmul.f32 %v2377, 3.8918573e-05
        %v2390 = vadd.f32 %v2389, 0.001143296
        %v2391 = vmul.f32 %v2377, %v2390
        %v2392 = vadd.f32 %v2391, 0.014752088
        %v2393 = vmul.f32 %v2377, %v2392
        %v2394 = vadd.f32 %v2393, 0.112945676
        %v2395 = vmul.f32 %v2377, %v2394
        %v2396 = vadd.f32 %v2395, 0.4994258
        %v2397 = vmul.f32 %v2377, %v2396
        %v2398 = vadd.f32 %v2397, 1.0
        %v2399 = vrcp.pop %v2398
        %v2400 = vmul.f32 %v2398, %v2399
        %v2401 = vsub.f32 1.0, %v2400
        %v2402 = vmul.f32 %v2399, %v2401
        %v2403 = vadd.f32 %v2399, %v2402
        %vm2404 = vweird.f32 %v2398
        %vm2405 = vweird.f32 %v2399
        %vm2406 = vmor %vm2404, %vm2405
        %v2407 = vsel %vm2406, %v2399, %v2403
        %v2408 = vand.u32 2147483647, %v2398
        %vm2409 = vcmp.eq.f32.partialorder %v2408, 8.507059e+37
        %v2410 = vand.u32 %v2398, 2147483648
        %v2411 = vor.u32 1.1754944e-38, %v2410
        %v2412 = vsel %vm2409, %v2411, %v2407
        %v2413 = vmul.f32 %v2388, %v2412
        %v2414 = vmin.f32 %v2413, 1.0
        %v2415 = vmax.f32 %v2414, -1.0
        %v2416 = vmul.f32 %v792, %v792
        %v2417 = vmin.f32 16.0, %v2416
        %v2418 = vmul.f32 %v2417, 2.1237322e-06
        %v2419 = vadd.f32 %v2418, 0.00028619796
        %v2420 = vmul.f32 %v2417, %v2419
        %v2421 = vadd.f32 %v2420, 0.0036580483
        %v2422 = vmul.f32 %v2417, %v2421
        %v2423 = vadd.f32 %v2422, 0.05243302
        %v2424 = vmul.f32 %v2417, %v2423
        %v2425 = vadd.f32 %v2424, 0.18741608
        %v2426 = vmul.f32 %v2417, %v2425
        %v2427 = vadd.f32 %v2426, 1.1283791
        %v2428 = vmul.f32 %v792, %v2427
        %v2429 = vmul.f32 %v2417, 3.8918573e-05
        %v2430 = vadd.f32 %v2429, 0.001143296
        %v2431 = vmul.f32 %v2417, %v2430
        %v2432 = vadd.f32 %v2431, 0.014752088
        %v2433 = vmul.f32 %v2417, %v2432
        %v2434 = vadd.f32 %v2433, 0.112945676
        %v2435 = vmul.f32 %v2417, %v2434
        %v2436 = vadd.f32 %v2435, 0.4994258
        %v2437 = vmul.f32 %v2417, %v2436
        %v2438 = vadd.f32 %v2437, 1.0
        %v2439 = vrcp.pop %v2438
        %v2440 = vmul.f32 %v2438, %v2439
        %v2441 = vsub.f32 1.0, %v2440
        %v2442 = vmul.f32 %v2439, %v2441
        %v2443 = vadd.f32 %v2439, %v2442
        %vm2444 = vweird.f32 %v2438
        %vm2445 = vweird.f32 %v2439
        %vm2446 = vmor %vm2444, %vm2445
        %v2447 = vsel %vm2446, %v2439, %v2443
        %v2448 = vand.u32 2147483647, %v2438
        %vm2449 = vcmp.eq.f32.partialorder %v2448, 8.507059e+37
        %v2450 = vand.u32 %v2438, 2147483648
        %v2451 = vor.u32 1.1754944e-38, %v2450
        %v2452 = vsel %vm2449, %v2451, %v2447
        %v2453 = vmul.f32 %v2428, %v2452
        %v2454 = vmin.f32 %v2453, 1.0
        %v2455 = vmax.f32 %v2454, -1.0
        %v2456 = vmul.f32 %v793, %v793
        %v2457 = vmin.f32 16.0, %v2456
        %v2458 = vmul.f32 %v2457, 2.1237322e-06
        %v2459 = vadd.f32 %v2458, 0.00028619796
        %v2460 = vmul.f32 %v2457, %v2459
        %v2461 = vadd.f32 %v2460, 0.0036580483
        %v2462 = vmul.f32 %v2457, %v2461
        %v2463 = vadd.f32 %v2462, 0.05243302
        %v2464 = vmul.f32 %v2457, %v2463
        %v2465 = vadd.f32 %v2464, 0.18741608
        %v2466 = vmul.f32 %v2457, %v2465
        %v2467 = vadd.f32 %v2466, 1.1283791
        %v2468 = vmul.f32 %v793, %v2467
        %v2469 = vmul.f32 %v2457, 3.8918573e-05
        %v2470 = vadd.f32 %v2469, 0.001143296
        %v2471 = vmul.f32 %v2457, %v2470
        %v2472 = vadd.f32 %v2471, 0.014752088
        %v2473 = vmul.f32 %v2457, %v2472
        %v2474 = vadd.f32 %v2473, 0.112945676
        %v2475 = vmul.f32 %v2457, %v2474
        %v2476 = vadd.f32 %v2475, 0.4994258
        %v2477 = vmul.f32 %v2457, %v2476
        %v2478 = vadd.f32 %v2477, 1.0
        %v2479 = vrcp.pop %v2478
        %v2480 = vmul.f32 %v2478, %v2479
        %v2481 = vsub.f32 1.0, %v2480
        %v2482 = vmul.f32 %v2479, %v2481
        %v2483 = vadd.f32 %v2479, %v2482
        %vm2484 = vweird.f32 %v2478
        %vm2485 = vweird.f32 %v2479
        %vm2486 = vmor %vm2484, %vm2485
        %v2487 = vsel %vm2486, %v2479, %v2483
        %v2488 = vand.u32 2147483647, %v2478
        %vm2489 = vcmp.eq.f32.partialorder %v2488, 8.507059e+37
        %v2490 = vand.u32 %v2478, 2147483648
        %v2491 = vor.u32 1.1754944e-38, %v2490
        %v2492 = vsel %vm2489, %v2491, %v2487
        %v2493 = vmul.f32 %v2468, %v2492
        %v2494 = vmin.f32 %v2493, 1.0
        %v2495 = vmax.f32 %v2494, -1.0
        %v2496 = vmul.f32 %v794, %v794
        %v2497 = vmin.f32 16.0, %v2496
        %v2498 = vmul.f32 %v2497, 2.1237322e-06
        %v2499 = vadd.f32 %v2498, 0.00028619796
        %v2500 = vmul.f32 %v2497, %v2499
        %v2501 = vadd.f32 %v2500, 0.0036580483
        %v2502 = vmul.f32 %v2497, %v2501
        %v2503 = vadd.f32 %v2502, 0.05243302
        %v2504 = vmul.f32 %v2497, %v2503
        %v2505 = vadd.f32 %v2504, 0.18741608
        %v2506 = vmul.f32 %v2497, %v2505
        %v2507 = vadd.f32 %v2506, 1.1283791
        %v2508 = vmul.f32 %v794, %v2507
        %v2509 = vmul.f32 %v2497, 3.8918573e-05
        %v2510 = vadd.f32 %v2509, 0.001143296
        %v2511 = vmul.f32 %v2497, %v2510
        %v2512 = vadd.f32 %v2511, 0.014752088
        %v2513 = vmul.f32 %v2497, %v2512
        %v2514 = vadd.f32 %v2513, 0.112945676
        %v2515 = vmul.f32 %v2497, %v2514
        %v2516 = vadd.f32 %v2515, 0.4994258
        %v2517 = vmul.f32 %v2497, %v2516
        %v2518 = vadd.f32 %v2517, 1.0
        %v2519 = vrcp.pop %v2518
        %v2520 = vmul.f32 %v2518, %v2519
        %v2521 = vsub.f32 1.0, %v2520
        %v2522 = vmul.f32 %v2519, %v2521
        %v2523 = vadd.f32 %v2519, %v2522
        %vm2524 = vweird.f32 %v2518
        %vm2525 = vweird.f32 %v2519
        %vm2526 = vmor %vm2524, %vm2525
        %v2527 = vsel %vm2526, %v2519, %v2523
        %v2528 = vand.u32 2147483647, %v2518
        %vm2529 = vcmp.eq.f32.partialorder %v2528, 8.507059e+37
        %v2530 = vand.u32 %v2518, 2147483648
        %v2531 = vor.u32 1.1754944e-38, %v2530
        %v2532 = vsel %vm2529, %v2531, %v2527
        %v2533 = vmul.f32 %v2508, %v2532
        %v2534 = vmin.f32 %v2533, 1.0
        %v2535 = vmax.f32 %v2534, -1.0
        %v2536 = vmul.f32 %v795, %v795
        %v2537 = vmin.f32 16.0, %v2536
        %v2538 = vmul.f32 %v2537, 2.1237322e-06
        %v2539 = vadd.f32 %v2538, 0.00028619796
        %v2540 = vmul.f32 %v2537, %v2539
        %v2541 = vadd.f32 %v2540, 0.0036580483
        %v2542 = vmul.f32 %v2537, %v2541
        %v2543 = vadd.f32 %v2542, 0.05243302
        %v2544 = vmul.f32 %v2537, %v2543
        %v2545 = vadd.f32 %v2544, 0.18741608
        %v2546 = vmul.f32 %v2537, %v2545
        %v2547 = vadd.f32 %v2546, 1.1283791
        %v2548 = vmul.f32 %v795, %v2547
        %v2549 = vmul.f32 %v2537, 3.8918573e-05
        %v2550 = vadd.f32 %v2549, 0.001143296
        %v2551 = vmul.f32 %v2537, %v2550
        %v2552 = vadd.f32 %v2551, 0.014752088
        %v2553 = vmul.f32 %v2537, %v2552
        %v2554 = vadd.f32 %v2553, 0.112945676
        %v2555 = vmul.f32 %v2537, %v2554
        %v2556 = vadd.f32 %v2555, 0.4994258
        %v2557 = vmul.f32 %v2537, %v2556
        %v2558 = vadd.f32 %v2557, 1.0
        %v2559 = vrcp.pop %v2558
        %v2560 = vmul.f32 %v2558, %v2559
        %v2561 = vsub.f32 1.0, %v2560
        %v2562 = vmul.f32 %v2559, %v2561
        %v2563 = vadd.f32 %v2559, %v2562
        %vm2564 = vweird.f32 %v2558
        %vm2565 = vweird.f32 %v2559
        %vm2566 = vmor %vm2564, %vm2565
        %v2567 = vsel %vm2566, %v2559, %v2563
        %v2568 = vand.u32 2147483647, %v2558
        %vm2569 = vcmp.eq.f32.partialorder %v2568, 8.507059e+37
        %v2570 = vand.u32 %v2558, 2147483648
        %v2571 = vor.u32 1.1754944e-38, %v2570
        %v2572 = vsel %vm2569, %v2571, %v2567
        %v2573 = vmul.f32 %v2548, %v2572
        %v2574 = vmin.f32 %v2573, 1.0
        %v2575 = vmax.f32 %v2574, -1.0
        %v2576 = vmul.f32 %v796, %v796
        %v2577 = vmin.f32 16.0, %v2576
        %v2578 = vmul.f32 %v2577, 2.1237322e-06
        %v2579 = vadd.f32 %v2578, 0.00028619796
        %v2580 = vmul.f32 %v2577, %v2579
        %v2581 = vadd.f32 %v2580, 0.0036580483
        %v2582 = vmul.f32 %v2577, %v2581
        %v2583 = vadd.f32 %v2582, 0.05243302
        %v2584 = vmul.f32 %v2577, %v2583
        %v2585 = vadd.f32 %v2584, 0.18741608
        %v2586 = vmul.f32 %v2577, %v2585
        %v2587 = vadd.f32 %v2586, 1.1283791
        %v2588 = vmul.f32 %v796, %v2587
        %v2589 = vmul.f32 %v2577, 3.8918573e-05
        %v2590 = vadd.f32 %v2589, 0.001143296
        %v2591 = vmul.f32 %v2577, %v2590
        %v2592 = vadd.f32 %v2591, 0.014752088
        %v2593 = vmul.f32 %v2577, %v2592
        %v2594 = vadd.f32 %v2593, 0.112945676
        %v2595 = vmul.f32 %v2577, %v2594
        %v2596 = vadd.f32 %v2595, 0.4994258
        %v2597 = vmul.f32 %v2577, %v2596
        %v2598 = vadd.f32 %v2597, 1.0
        %v2599 = vrcp.pop %v2598
        %v2600 = vmul.f32 %v2598, %v2599
        %v2601 = vsub.f32 1.0, %v2600
        %v2602 = vmul.f32 %v2599, %v2601
        %v2603 = vadd.f32 %v2599, %v2602
        %vm2604 = vweird.f32 %v2598
        %vm2605 = vweird.f32 %v2599
        %vm2606 = vmor %vm2604, %vm2605
        %v2607 = vsel %vm2606, %v2599, %v2603
        %v2608 = vand.u32 2147483647, %v2598
        %vm2609 = vcmp.eq.f32.partialorder %v2608, 8.507059e+37
        %v2610 = vand.u32 %v2598, 2147483648
        %v2611 = vor.u32 1.1754944e-38, %v2610
        %v2612 = vsel %vm2609, %v2611, %v2607
        %v2613 = vmul.f32 %v2588, %v2612
        %v2614 = vmin.f32 %v2613, 1.0
        %v2615 = vmax.f32 %v2614, -1.0
        %v2616 = vmul.f32 %v797, %v797
        %v2617 = vmin.f32 16.0, %v2616
        %v2618 = vmul.f32 %v2617, 2.1237322e-06
        %v2619 = vadd.f32 %v2618, 0.00028619796
        %v2620 = vmul.f32 %v2617, %v2619
        %v2621 = vadd.f32 %v2620, 0.0036580483
        %v2622 = vmul.f32 %v2617, %v2621
        %v2623 = vadd.f32 %v2622, 0.05243302
        %v2624 = vmul.f32 %v2617, %v2623
        %v2625 = vadd.f32 %v2624, 0.18741608
        %v2626 = vmul.f32 %v2617, %v2625
        %v2627 = vadd.f32 %v2626, 1.1283791
        %v2628 = vmul.f32 %v797, %v2627
        %v2629 = vmul.f32 %v2617, 3.8918573e-05
        %v2630 = vadd.f32 %v2629, 0.001143296
        %v2631 = vmul.f32 %v2617, %v2630
        %v2632 = vadd.f32 %v2631, 0.014752088
        %v2633 = vmul.f32 %v2617, %v2632
        %v2634 = vadd.f32 %v2633, 0.112945676
        %v2635 = vmul.f32 %v2617, %v2634
        %v2636 = vadd.f32 %v2635, 0.4994258
        %v2637 = vmul.f32 %v2617, %v2636
        %v2638 = vadd.f32 %v2637, 1.0
        %v2639 = vrcp.pop %v2638
        %v2640 = vmul.f32 %v2638, %v2639
        %v2641 = vsub.f32 1.0, %v2640
        %v2642 = vmul.f32 %v2639, %v2641
        %v2643 = vadd.f32 %v2639, %v2642
        %vm2644 = vweird.f32 %v2638
        %vm2645 = vweird.f32 %v2639
        %vm2646 = vmor %vm2644, %vm2645
        %v2647 = vsel %vm2646, %v2639, %v2643
        %v2648 = vand.u32 2147483647, %v2638
        %vm2649 = vcmp.eq.f32.partialorder %v2648, 8.507059e+37
        %v2650 = vand.u32 %v2638, 2147483648
        %v2651 = vor.u32 1.1754944e-38, %v2650
        %v2652 = vsel %vm2649, %v2651, %v2647
        %v2653 = vmul.f32 %v2628, %v2652
        %v2654 = vmin.f32 %v2653, 1.0
        %v2655 = vmax.f32 %v2654, -1.0
        %v2656 = vmul.f32 %v798, %v798
        %v2657 = vmin.f32 16.0, %v2656
        %v2658 = vmul.f32 %v2657, 2.1237322e-06
        %v2659 = vadd.f32 %v2658, 0.00028619796
        %v2660 = vmul.f32 %v2657, %v2659
        %v2661 = vadd.f32 %v2660, 0.0036580483
        %v2662 = vmul.f32 %v2657, %v2661
        %v2663 = vadd.f32 %v2662, 0.05243302
        %v2664 = vmul.f32 %v2657, %v2663
        %v2665 = vadd.f32 %v2664, 0.18741608
        %v2666 = vmul.f32 %v2657, %v2665
        %v2667 = vadd.f32 %v2666, 1.1283791
        %v2668 = vmul.f32 %v798, %v2667
        %v2669 = vmul.f32 %v2657, 3.8918573e-05
        %v2670 = vadd.f32 %v2669, 0.001143296
        %v2671 = vmul.f32 %v2657, %v2670
        %v2672 = vadd.f32 %v2671, 0.014752088
        %v2673 = vmul.f32 %v2657, %v2672
        %v2674 = vadd.f32 %v2673, 0.112945676
        %v2675 = vmul.f32 %v2657, %v2674
        %v2676 = vadd.f32 %v2675, 0.4994258
        %v2677 = vmul.f32 %v2657, %v2676
        %v2678 = vadd.f32 %v2677, 1.0
        %v2679 = vrcp.pop %v2678
        %v2680 = vmul.f32 %v2678, %v2679
        %v2681 = vsub.f32 1.0, %v2680
        %v2682 = vmul.f32 %v2679, %v2681
        %v2683 = vadd.f32 %v2679, %v2682
        %vm2684 = vweird.f32 %v2678
        %vm2685 = vweird.f32 %v2679
        %vm2686 = vmor %vm2684, %vm2685
        %v2687 = vsel %vm2686, %v2679, %v2683
        %v2688 = vand.u32 2147483647, %v2678
        %vm2689 = vcmp.eq.f32.partialorder %v2688, 8.507059e+37
        %v2690 = vand.u32 %v2678, 2147483648
        %v2691 = vor.u32 1.1754944e-38, %v2690
        %v2692 = vsel %vm2689, %v2691, %v2687
        %v2693 = vmul.f32 %v2668, %v2692
        %v2694 = vmin.f32 %v2693, 1.0
        %v2695 = vmax.f32 %v2694, -1.0
        %v2696 = vmul.f32 %v799, %v799
        %v2697 = vmin.f32 16.0, %v2696
        %v2698 = vmul.f32 %v2697, 2.1237322e-06
        %v2699 = vadd.f32 %v2698, 0.00028619796
        %v2700 = vmul.f32 %v2697, %v2699
        %v2701 = vadd.f32 %v2700, 0.0036580483
        %v2702 = vmul.f32 %v2697, %v2701
        %v2703 = vadd.f32 %v2702, 0.05243302
        %v2704 = vmul.f32 %v2697, %v2703
        %v2705 = vadd.f32 %v2704, 0.18741608
        %v2706 = vmul.f32 %v2697, %v2705
        %v2707 = vadd.f32 %v2706, 1.1283791
        %v2708 = vmul.f32 %v799, %v2707
        %v2709 = vmul.f32 %v2697, 3.8918573e-05
        %v2710 = vadd.f32 %v2709, 0.001143296
        %v2711 = vmul.f32 %v2697, %v2710
        %v2712 = vadd.f32 %v2711, 0.014752088
        %v2713 = vmul.f32 %v2697, %v2712
        %v2714 = vadd.f32 %v2713, 0.112945676
        %v2715 = vmul.f32 %v2697, %v2714
        %v2716 = vadd.f32 %v2715, 0.4994258
        %v2717 = vmul.f32 %v2697, %v2716
        %v2718 = vadd.f32 %v2717, 1.0
        %v2719 = vrcp.pop %v2718
        %v2720 = vmul.f32 %v2718, %v2719
        %v2721 = vsub.f32 1.0, %v2720
        %v2722 = vmul.f32 %v2719, %v2721
        %v2723 = vadd.f32 %v2719, %v2722
        %vm2724 = vweird.f32 %v2718
        %vm2725 = vweird.f32 %v2719
        %vm2726 = vmor %vm2724, %vm2725
        %v2727 = vsel %vm2726, %v2719, %v2723
        %v2728 = vand.u32 2147483647, %v2718
        %vm2729 = vcmp.eq.f32.partialorder %v2728, 8.507059e+37
        %v2730 = vand.u32 %v2718, 2147483648
        %v2731 = vor.u32 1.1754944e-38, %v2730
        %v2732 = vsel %vm2729, %v2731, %v2727
        %v2733 = vmul.f32 %v2708, %v2732
        %v2734 = vmin.f32 %v2733, 1.0
        %v2735 = vmax.f32 %v2734, -1.0
        %v2736 = vmul.f32 %v800, %v800
        %v2737 = vmin.f32 16.0, %v2736
        %v2738 = vmul.f32 %v2737, 2.1237322e-06
        %v2739 = vadd.f32 %v2738, 0.00028619796
        %v2740 = vmul.f32 %v2737, %v2739
        %v2741 = vadd.f32 %v2740, 0.0036580483
        %v2742 = vmul.f32 %v2737, %v2741
        %v2743 = vadd.f32 %v2742, 0.05243302
        %v2744 = vmul.f32 %v2737, %v2743
        %v2745 = vadd.f32 %v2744, 0.18741608
        %v2746 = vmul.f32 %v2737, %v2745
        %v2747 = vadd.f32 %v2746, 1.1283791
        %v2748 = vmul.f32 %v800, %v2747
        %v2749 = vmul.f32 %v2737, 3.8918573e-05
        %v2750 = vadd.f32 %v2749, 0.001143296
        %v2751 = vmul.f32 %v2737, %v2750
        %v2752 = vadd.f32 %v2751, 0.014752088
        %v2753 = vmul.f32 %v2737, %v2752
        %v2754 = vadd.f32 %v2753, 0.112945676
        %v2755 = vmul.f32 %v2737, %v2754
        %v2756 = vadd.f32 %v2755, 0.4994258
        %v2757 = vmul.f32 %v2737, %v2756
        %v2758 = vadd.f32 %v2757, 1.0
        %v2759 = vrcp.pop %v2758
        %v2760 = vmul.f32 %v2758, %v2759
        %v2761 = vsub.f32 1.0, %v2760
        %v2762 = vmul.f32 %v2759, %v2761
        %v2763 = vadd.f32 %v2759, %v2762
        %vm2764 = vweird.f32 %v2758
        %vm2765 = vweird.f32 %v2759
        %vm2766 = vmor %vm2764, %vm2765
        %v2767 = vsel %vm2766, %v2759, %v2763
        %v2768 = vand.u32 2147483647, %v2758
        %vm2769 = vcmp.eq.f32.partialorder %v2768, 8.507059e+37
        %v2770 = vand.u32 %v2758, 2147483648
        %v2771 = vor.u32 1.1754944e-38, %v2770
        %v2772 = vsel %vm2769, %v2771, %v2767
        %v2773 = vmul.f32 %v2748, %v2772
        %v2774 = vmin.f32 %v2773, 1.0
        %v2775 = vmax.f32 %v2774, -1.0
        %v2776 = vmul.f32 %v801, %v801
        %v2777 = vmin.f32 16.0, %v2776
        %v2778 = vmul.f32 %v2777, 2.1237322e-06
        %v2779 = vadd.f32 %v2778, 0.00028619796
        %v2780 = vmul.f32 %v2777, %v2779
        %v2781 = vadd.f32 %v2780, 0.0036580483
        %v2782 = vmul.f32 %v2777, %v2781
        %v2783 = vadd.f32 %v2782, 0.05243302
        %v2784 = vmul.f32 %v2777, %v2783
        %v2785 = vadd.f32 %v2784, 0.18741608
        %v2786 = vmul.f32 %v2777, %v2785
        %v2787 = vadd.f32 %v2786, 1.1283791
        %v2788 = vmul.f32 %v801, %v2787
        %v2789 = vmul.f32 %v2777, 3.8918573e-05
        %v2790 = vadd.f32 %v2789, 0.001143296
        %v2791 = vmul.f32 %v2777, %v2790
        %v2792 = vadd.f32 %v2791, 0.014752088
        %v2793 = vmul.f32 %v2777, %v2792
        %v2794 = vadd.f32 %v2793, 0.112945676
        %v2795 = vmul.f32 %v2777, %v2794
        %v2796 = vadd.f32 %v2795, 0.4994258
        %v2797 = vmul.f32 %v2777, %v2796
        %v2798 = vadd.f32 %v2797, 1.0
        %v2799 = vrcp.pop %v2798
        %v2800 = vmul.f32 %v2798, %v2799
        %v2801 = vsub.f32 1.0, %v2800
        %v2802 = vmul.f32 %v2799, %v2801
        %v2803 = vadd.f32 %v2799, %v2802
        %vm2804 = vweird.f32 %v2798
        %vm2805 = vweird.f32 %v2799
        %vm2806 = vmor %vm2804, %vm2805
        %v2807 = vsel %vm2806, %v2799, %v2803
        %v2808 = vand.u32 2147483647, %v2798
        %vm2809 = vcmp.eq.f32.partialorder %v2808, 8.507059e+37
        %v2810 = vand.u32 %v2798, 2147483648
        %v2811 = vor.u32 1.1754944e-38, %v2810
        %v2812 = vsel %vm2809, %v2811, %v2807
        %v2813 = vmul.f32 %v2788, %v2812
        %v2814 = vmin.f32 %v2813, 1.0
        %v2815 = vmax.f32 %v2814, -1.0
        %v2816 = vmul.f32 %v802, %v802
        %v2817 = vmin.f32 16.0, %v2816
        %v2818 = vmul.f32 %v2817, 2.1237322e-06
        %v2819 = vadd.f32 %v2818, 0.00028619796
        %v2820 = vmul.f32 %v2817, %v2819
        %v2821 = vadd.f32 %v2820, 0.0036580483
        %v2822 = vmul.f32 %v2817, %v2821
        %v2823 = vadd.f32 %v2822, 0.05243302
        %v2824 = vmul.f32 %v2817, %v2823
        %v2825 = vadd.f32 %v2824, 0.18741608
        %v2826 = vmul.f32 %v2817, %v2825
        %v2827 = vadd.f32 %v2826, 1.1283791
        %v2828 = vmul.f32 %v802, %v2827
        %v2829 = vmul.f32 %v2817, 3.8918573e-05
        %v2830 = vadd.f32 %v2829, 0.001143296
        %v2831 = vmul.f32 %v2817, %v2830
        %v2832 = vadd.f32 %v2831, 0.014752088
        %v2833 = vmul.f32 %v2817, %v2832
        %v2834 = vadd.f32 %v2833, 0.112945676
        %v2835 = vmul.f32 %v2817, %v2834
        %v2836 = vadd.f32 %v2835, 0.4994258
        %v2837 = vmul.f32 %v2817, %v2836
        %v2838 = vadd.f32 %v2837, 1.0
        %v2839 = vrcp.pop %v2838
        %v2840 = vmul.f32 %v2838, %v2839
        %v2841 = vsub.f32 1.0, %v2840
        %v2842 = vmul.f32 %v2839, %v2841
        %v2843 = vadd.f32 %v2839, %v2842
        %vm2844 = vweird.f32 %v2838
        %vm2845 = vweird.f32 %v2839
        %vm2846 = vmor %vm2844, %vm2845
        %v2847 = vsel %vm2846, %v2839, %v2843
        %v2848 = vand.u32 2147483647, %v2838
        %vm2849 = vcmp.eq.f32.partialorder %v2848, 8.507059e+37
        %v2850 = vand.u32 %v2838, 2147483648
        %v2851 = vor.u32 1.1754944e-38, %v2850
        %v2852 = vsel %vm2849, %v2851, %v2847
        %v2853 = vmul.f32 %v2828, %v2852
        %v2854 = vmin.f32 %v2853, 1.0
        %v2855 = vmax.f32 %v2854, -1.0
        %v2856 = vmul.f32 %v803, %v803
        %v2857 = vmin.f32 16.0, %v2856
        %v2858 = vmul.f32 %v2857, 2.1237322e-06
        %v2859 = vadd.f32 %v2858, 0.00028619796
        %v2860 = vmul.f32 %v2857, %v2859
        %v2861 = vadd.f32 %v2860, 0.0036580483
        %v2862 = vmul.f32 %v2857, %v2861
        %v2863 = vadd.f32 %v2862, 0.05243302
        %v2864 = vmul.f32 %v2857, %v2863
        %v2865 = vadd.f32 %v2864, 0.18741608
        %v2866 = vmul.f32 %v2857, %v2865
        %v2867 = vadd.f32 %v2866, 1.1283791
        %v2868 = vmul.f32 %v803, %v2867
        %v2869 = vmul.f32 %v2857, 3.8918573e-05
        %v2870 = vadd.f32 %v2869, 0.001143296
        %v2871 = vmul.f32 %v2857, %v2870
        %v2872 = vadd.f32 %v2871, 0.014752088
        %v2873 = vmul.f32 %v2857, %v2872
        %v2874 = vadd.f32 %v2873, 0.112945676
        %v2875 = vmul.f32 %v2857, %v2874
        %v2876 = vadd.f32 %v2875, 0.4994258
        %v2877 = vmul.f32 %v2857, %v2876
        %v2878 = vadd.f32 %v2877, 1.0
        %v2879 = vrcp.pop %v2878
        %v2880 = vmul.f32 %v2878, %v2879
        %v2881 = vsub.f32 1.0, %v2880
        %v2882 = vmul.f32 %v2879, %v2881
        %v2883 = vadd.f32 %v2879, %v2882
        %vm2884 = vweird.f32 %v2878
        %vm2885 = vweird.f32 %v2879
        %vm2886 = vmor %vm2884, %vm2885
        %v2887 = vsel %vm2886, %v2879, %v2883
        %v2888 = vand.u32 2147483647, %v2878
        %vm2889 = vcmp.eq.f32.partialorder %v2888, 8.507059e+37
        %v2890 = vand.u32 %v2878, 2147483648
        %v2891 = vor.u32 1.1754944e-38, %v2890
        %v2892 = vsel %vm2889, %v2891, %v2887
        %v2893 = vmul.f32 %v2868, %v2892
        %v2894 = vmin.f32 %v2893, 1.0
        %v2895 = vmax.f32 %v2894, -1.0
        %v2896 = vmul.f32 %v804, %v804
        %v2897 = vmin.f32 16.0, %v2896
        %v2898 = vmul.f32 %v2897, 2.1237322e-06
        %v2899 = vadd.f32 %v2898, 0.00028619796
        %v2900 = vmul.f32 %v2897, %v2899
        %v2901 = vadd.f32 %v2900, 0.0036580483
        %v2902 = vmul.f32 %v2897, %v2901
        %v2903 = vadd.f32 %v2902, 0.05243302
        %v2904 = vmul.f32 %v2897, %v2903
        %v2905 = vadd.f32 %v2904, 0.18741608
        %v2906 = vmul.f32 %v2897, %v2905
        %v2907 = vadd.f32 %v2906, 1.1283791
        %v2908 = vmul.f32 %v804, %v2907
        %v2909 = vmul.f32 %v2897, 3.8918573e-05
        %v2910 = vadd.f32 %v2909, 0.001143296
        %v2911 = vmul.f32 %v2897, %v2910
        %v2912 = vadd.f32 %v2911, 0.014752088
        %v2913 = vmul.f32 %v2897, %v2912
        %v2914 = vadd.f32 %v2913, 0.112945676
        %v2915 = vmul.f32 %v2897, %v2914
        %v2916 = vadd.f32 %v2915, 0.4994258
        %v2917 = vmul.f32 %v2897, %v2916
        %v2918 = vadd.f32 %v2917, 1.0
        %v2919 = vrcp.pop %v2918
        %v2920 = vmul.f32 %v2918, %v2919
        %v2921 = vsub.f32 1.0, %v2920
        %v2922 = vmul.f32 %v2919, %v2921
        %v2923 = vadd.f32 %v2919, %v2922
        %vm2924 = vweird.f32 %v2918
        %vm2925 = vweird.f32 %v2919
        %vm2926 = vmor %vm2924, %vm2925
        %v2927 = vsel %vm2926, %v2919, %v2923
        %v2928 = vand.u32 2147483647, %v2918
        %vm2929 = vcmp.eq.f32.partialorder %v2928, 8.507059e+37
        %v2930 = vand.u32 %v2918, 2147483648
        %v2931 = vor.u32 1.1754944e-38, %v2930
        %v2932 = vsel %vm2929, %v2931, %v2927
        %v2933 = vmul.f32 %v2908, %v2932
        %v2934 = vmin.f32 %v2933, 1.0
        %v2935 = vmax.f32 %v2934, -1.0
        %v2936 = vmul.f32 %v805, %v805
        %v2937 = vmin.f32 16.0, %v2936
        %v2938 = vmul.f32 %v2937, 2.1237322e-06
        %v2939 = vadd.f32 %v2938, 0.00028619796
        %v2940 = vmul.f32 %v2937, %v2939
        %v2941 = vadd.f32 %v2940, 0.0036580483
        %v2942 = vmul.f32 %v2937, %v2941
        %v2943 = vadd.f32 %v2942, 0.05243302
        %v2944 = vmul.f32 %v2937, %v2943
        %v2945 = vadd.f32 %v2944, 0.18741608
        %v2946 = vmul.f32 %v2937, %v2945
        %v2947 = vadd.f32 %v2946, 1.1283791
        %v2948 = vmul.f32 %v805, %v2947
        %v2949 = vmul.f32 %v2937, 3.8918573e-05
        %v2950 = vadd.f32 %v2949, 0.001143296
        %v2951 = vmul.f32 %v2937, %v2950
        %v2952 = vadd.f32 %v2951, 0.014752088
        %v2953 = vmul.f32 %v2937, %v2952
        %v2954 = vadd.f32 %v2953, 0.112945676
        %v2955 = vmul.f32 %v2937, %v2954
        %v2956 = vadd.f32 %v2955, 0.4994258
        %v2957 = vmul.f32 %v2937, %v2956
        %v2958 = vadd.f32 %v2957, 1.0
        %v2959 = vrcp.pop %v2958
        %v2960 = vmul.f32 %v2958, %v2959
        %v2961 = vsub.f32 1.0, %v2960
        %v2962 = vmul.f32 %v2959, %v2961
        %v2963 = vadd.f32 %v2959, %v2962
        %vm2964 = vweird.f32 %v2958
        %vm2965 = vweird.f32 %v2959
        %vm2966 = vmor %vm2964, %vm2965
        %v2967 = vsel %vm2966, %v2959, %v2963
        %v2968 = vand.u32 2147483647, %v2958
        %vm2969 = vcmp.eq.f32.partialorder %v2968, 8.507059e+37
        %v2970 = vand.u32 %v2958, 2147483648
        %v2971 = vor.u32 1.1754944e-38, %v2970
        %v2972 = vsel %vm2969, %v2971, %v2967
        %v2973 = vmul.f32 %v2948, %v2972
        %v2974 = vmin.f32 %v2973, 1.0
        %v2975 = vmax.f32 %v2974, -1.0
        %v2976 = vmul.f32 %v806, %v806
        %v2977 = vmin.f32 16.0, %v2976
        %v2978 = vmul.f32 %v2977, 2.1237322e-06
        %v2979 = vadd.f32 %v2978, 0.00028619796
        %v2980 = vmul.f32 %v2977, %v2979
        %v2981 = vadd.f32 %v2980, 0.0036580483
        %v2982 = vmul.f32 %v2977, %v2981
        %v2983 = vadd.f32 %v2982, 0.05243302
        %v2984 = vmul.f32 %v2977, %v2983
        %v2985 = vadd.f32 %v2984, 0.18741608
        %v2986 = vmul.f32 %v2977, %v2985
        %v2987 = vadd.f32 %v2986, 1.1283791
        %v2988 = vmul.f32 %v806, %v2987
        %v2989 = vmul.f32 %v2977, 3.8918573e-05
        %v2990 = vadd.f32 %v2989, 0.001143296
        %v2991 = vmul.f32 %v2977, %v2990
        %v2992 = vadd.f32 %v2991, 0.014752088
        %v2993 = vmul.f32 %v2977, %v2992
        %v2994 = vadd.f32 %v2993, 0.112945676
        %v2995 = vmul.f32 %v2977, %v2994
        %v2996 = vadd.f32 %v2995, 0.4994258
        %v2997 = vmul.f32 %v2977, %v2996
        %v2998 = vadd.f32 %v2997, 1.0
        %v2999 = vrcp.pop %v2998
        %v3000 = vmul.f32 %v2998, %v2999
        %v3001 = vsub.f32 1.0, %v3000
        %v3002 = vmul.f32 %v2999, %v3001
        %v3003 = vadd.f32 %v2999, %v3002
        %vm3004 = vweird.f32 %v2998
        %vm3005 = vweird.f32 %v2999
        %vm3006 = vmor %vm3004, %vm3005
        %v3007 = vsel %vm3006, %v2999, %v3003
        %v3008 = vand.u32 2147483647, %v2998
        %vm3009 = vcmp.eq.f32.partialorder %v3008, 8.507059e+37
        %v3010 = vand.u32 %v2998, 2147483648
        %v3011 = vor.u32 1.1754944e-38, %v3010
        %v3012 = vsel %vm3009, %v3011, %v3007
        %v3013 = vmul.f32 %v2988, %v3012
        %v3014 = vmin.f32 %v3013, 1.0
        %v3015 = vmax.f32 %v3014, -1.0
        %v3016 = vmul.f32 %v807, %v807
        %v3017 = vmin.f32 16.0, %v3016
        %v3018 = vmul.f32 %v3017, 2.1237322e-06
        %v3019 = vadd.f32 %v3018, 0.00028619796
        %v3020 = vmul.f32 %v3017, %v3019
        %v3021 = vadd.f32 %v3020, 0.0036580483
        %v3022 = vmul.f32 %v3017, %v3021
        %v3023 = vadd.f32 %v3022, 0.05243302
        %v3024 = vmul.f32 %v3017, %v3023
        %v3025 = vadd.f32 %v3024, 0.18741608
        %v3026 = vmul.f32 %v3017, %v3025
        %v3027 = vadd.f32 %v3026, 1.1283791
        %v3028 = vmul.f32 %v807, %v3027
        %v3029 = vmul.f32 %v3017, 3.8918573e-05
        %v3030 = vadd.f32 %v3029, 0.001143296
        %v3031 = vmul.f32 %v3017, %v3030
        %v3032 = vadd.f32 %v3031, 0.014752088
        %v3033 = vmul.f32 %v3017, %v3032
        %v3034 = vadd.f32 %v3033, 0.112945676
        %v3035 = vmul.f32 %v3017, %v3034
        %v3036 = vadd.f32 %v3035, 0.4994258
        %v3037 = vmul.f32 %v3017, %v3036
        %v3038 = vadd.f32 %v3037, 1.0
        %v3039 = vrcp.pop %v3038
        %v3040 = vmul.f32 %v3038, %v3039
        %v3041 = vsub.f32 1.0, %v3040
        %v3042 = vmul.f32 %v3039, %v3041
        %v3043 = vadd.f32 %v3039, %v3042
        %vm3044 = vweird.f32 %v3038
        %vm3045 = vweird.f32 %v3039
        %vm3046 = vmor %vm3044, %vm3045
        %v3047 = vsel %vm3046, %v3039, %v3043
        %v3048 = vand.u32 2147483647, %v3038
        %vm3049 = vcmp.eq.f32.partialorder %v3048, 8.507059e+37
        %v3050 = vand.u32 %v3038, 2147483648
        %v3051 = vor.u32 1.1754944e-38, %v3050
        %v3052 = vsel %vm3049, %v3051, %v3047
        %v3053 = vmul.f32 %v3028, %v3052
        %v3054 = vmin.f32 %v3053, 1.0
        %v3055 = vmax.f32 %v3054, -1.0
        %v3056 = vmul.f32 %v808, %v808
        %v3057 = vmin.f32 16.0, %v3056
        %v3058 = vmul.f32 %v3057, 2.1237322e-06
        %v3059 = vadd.f32 %v3058, 0.00028619796
        %v3060 = vmul.f32 %v3057, %v3059
        %v3061 = vadd.f32 %v3060, 0.0036580483
        %v3062 = vmul.f32 %v3057, %v3061
        %v3063 = vadd.f32 %v3062, 0.05243302
        %v3064 = vmul.f32 %v3057, %v3063
        %v3065 = vadd.f32 %v3064, 0.18741608
        %v3066 = vmul.f32 %v3057, %v3065
        %v3067 = vadd.f32 %v3066, 1.1283791
        %v3068 = vmul.f32 %v808, %v3067
        %v3069 = vmul.f32 %v3057, 3.8918573e-05
        %v3070 = vadd.f32 %v3069, 0.001143296
        %v3071 = vmul.f32 %v3057, %v3070
        %v3072 = vadd.f32 %v3071, 0.014752088
        %v3073 = vmul.f32 %v3057, %v3072
        %v3074 = vadd.f32 %v3073, 0.112945676
        %v3075 = vmul.f32 %v3057, %v3074
        %v3076 = vadd.f32 %v3075, 0.4994258
        %v3077 = vmul.f32 %v3057, %v3076
        %v3078 = vadd.f32 %v3077, 1.0
        %v3079 = vrcp.pop %v3078
        %v3080 = vmul.f32 %v3078, %v3079
        %v3081 = vsub.f32 1.0, %v3080
        %v3082 = vmul.f32 %v3079, %v3081
        %v3083 = vadd.f32 %v3079, %v3082
        %vm3084 = vweird.f32 %v3078
        %vm3085 = vweird.f32 %v3079
        %vm3086 = vmor %vm3084, %vm3085
        %v3087 = vsel %vm3086, %v3079, %v3083
        %v3088 = vand.u32 2147483647, %v3078
        %vm3089 = vcmp.eq.f32.partialorder %v3088, 8.507059e+37
        %v3090 = vand.u32 %v3078, 2147483648
        %v3091 = vor.u32 1.1754944e-38, %v3090
        %v3092 = vsel %vm3089, %v3091, %v3087
        %v3093 = vmul.f32 %v3068, %v3092
        %v3094 = vmin.f32 %v3093, 1.0
        %v3095 = vmax.f32 %v3094, -1.0
        %v3096 = vmul.f32 %v809, %v809
        %v3097 = vmin.f32 16.0, %v3096
        %v3098 = vmul.f32 %v3097, 2.1237322e-06
        %v3099 = vadd.f32 %v3098, 0.00028619796
        %v3100 = vmul.f32 %v3097, %v3099
        %v3101 = vadd.f32 %v3100, 0.0036580483
        %v3102 = vmul.f32 %v3097, %v3101
        %v3103 = vadd.f32 %v3102, 0.05243302
        %v3104 = vmul.f32 %v3097, %v3103
        %v3105 = vadd.f32 %v3104, 0.18741608
        %v3106 = vmul.f32 %v3097, %v3105
        %v3107 = vadd.f32 %v3106, 1.1283791
        %v3108 = vmul.f32 %v809, %v3107
        %v3109 = vmul.f32 %v3097, 3.8918573e-05
        %v3110 = vadd.f32 %v3109, 0.001143296
        %v3111 = vmul.f32 %v3097, %v3110
        %v3112 = vadd.f32 %v3111, 0.014752088
        %v3113 = vmul.f32 %v3097, %v3112
        %v3114 = vadd.f32 %v3113, 0.112945676
        %v3115 = vmul.f32 %v3097, %v3114
        %v3116 = vadd.f32 %v3115, 0.4994258
        %v3117 = vmul.f32 %v3097, %v3116
        %v3118 = vadd.f32 %v3117, 1.0
        %v3119 = vrcp.pop %v3118
        %v3120 = vmul.f32 %v3118, %v3119
        %v3121 = vsub.f32 1.0, %v3120
        %v3122 = vmul.f32 %v3119, %v3121
        %v3123 = vadd.f32 %v3119, %v3122
        %vm3124 = vweird.f32 %v3118
        %vm3125 = vweird.f32 %v3119
        %vm3126 = vmor %vm3124, %vm3125
        %v3127 = vsel %vm3126, %v3119, %v3123
        %v3128 = vand.u32 2147483647, %v3118
        %vm3129 = vcmp.eq.f32.partialorder %v3128, 8.507059e+37
        %v3130 = vand.u32 %v3118, 2147483648
        %v3131 = vor.u32 1.1754944e-38, %v3130
        %v3132 = vsel %vm3129, %v3131, %v3127
        %v3133 = vmul.f32 %v3108, %v3132
        %v3134 = vmin.f32 %v3133, 1.0
        %v3135 = vmax.f32 %v3134, -1.0
        %v3136 = vmul.f32 %v810, %v810
        %v3137 = vmin.f32 16.0, %v3136
        %v3138 = vmul.f32 %v3137, 2.1237322e-06
        %v3139 = vadd.f32 %v3138, 0.00028619796
        %v3140 = vmul.f32 %v3137, %v3139
        %v3141 = vadd.f32 %v3140, 0.0036580483
        %v3142 = vmul.f32 %v3137, %v3141
        %v3143 = vadd.f32 %v3142, 0.05243302
        %v3144 = vmul.f32 %v3137, %v3143
        %v3145 = vadd.f32 %v3144, 0.18741608
        %v3146 = vmul.f32 %v3137, %v3145
        %v3147 = vadd.f32 %v3146, 1.1283791
        %v3148 = vmul.f32 %v810, %v3147
        %v3149 = vmul.f32 %v3137, 3.8918573e-05
        %v3150 = vadd.f32 %v3149, 0.001143296
        %v3151 = vmul.f32 %v3137, %v3150
        %v3152 = vadd.f32 %v3151, 0.014752088
        %v3153 = vmul.f32 %v3137, %v3152
        %v3154 = vadd.f32 %v3153, 0.112945676
        %v3155 = vmul.f32 %v3137, %v3154
        %v3156 = vadd.f32 %v3155, 0.4994258
        %v3157 = vmul.f32 %v3137, %v3156
        %v3158 = vadd.f32 %v3157, 1.0
        %v3159 = vrcp.pop %v3158
        %v3160 = vmul.f32 %v3158, %v3159
        %v3161 = vsub.f32 1.0, %v3160
        %v3162 = vmul.f32 %v3159, %v3161
        %v3163 = vadd.f32 %v3159, %v3162
        %vm3164 = vweird.f32 %v3158
        %vm3165 = vweird.f32 %v3159
        %vm3166 = vmor %vm3164, %vm3165
        %v3167 = vsel %vm3166, %v3159, %v3163
        %v3168 = vand.u32 2147483647, %v3158
        %vm3169 = vcmp.eq.f32.partialorder %v3168, 8.507059e+37
        %v3170 = vand.u32 %v3158, 2147483648
        %v3171 = vor.u32 1.1754944e-38, %v3170
        %v3172 = vsel %vm3169, %v3171, %v3167
        %v3173 = vmul.f32 %v3148, %v3172
        %v3174 = vmin.f32 %v3173, 1.0
        %v3175 = vmax.f32 %v3174, -1.0
        %v3176 = vmul.f32 %v811, %v811
        %v3177 = vmin.f32 16.0, %v3176
        %v3178 = vmul.f32 %v3177, 2.1237322e-06
        %v3179 = vadd.f32 %v3178, 0.00028619796
        %v3180 = vmul.f32 %v3177, %v3179
        %v3181 = vadd.f32 %v3180, 0.0036580483
        %v3182 = vmul.f32 %v3177, %v3181
        %v3183 = vadd.f32 %v3182, 0.05243302
        %v3184 = vmul.f32 %v3177, %v3183
        %v3185 = vadd.f32 %v3184, 0.18741608
        %v3186 = vmul.f32 %v3177, %v3185
        %v3187 = vadd.f32 %v3186, 1.1283791
        %v3188 = vmul.f32 %v811, %v3187
        %v3189 = vmul.f32 %v3177, 3.8918573e-05
        %v3190 = vadd.f32 %v3189, 0.001143296
        %v3191 = vmul.f32 %v3177, %v3190
        %v3192 = vadd.f32 %v3191, 0.014752088
        %v3193 = vmul.f32 %v3177, %v3192
        %v3194 = vadd.f32 %v3193, 0.112945676
        %v3195 = vmul.f32 %v3177, %v3194
        %v3196 = vadd.f32 %v3195, 0.4994258
        %v3197 = vmul.f32 %v3177, %v3196
        %v3198 = vadd.f32 %v3197, 1.0
        %v3199 = vrcp.pop %v3198
        %v3200 = vmul.f32 %v3198, %v3199
        %v3201 = vsub.f32 1.0, %v3200
        %v3202 = vmul.f32 %v3199, %v3201
        %v3203 = vadd.f32 %v3199, %v3202
        %vm3204 = vweird.f32 %v3198
        %vm3205 = vweird.f32 %v3199
        %vm3206 = vmor %vm3204, %vm3205
        %v3207 = vsel %vm3206, %v3199, %v3203
        %v3208 = vand.u32 2147483647, %v3198
        %vm3209 = vcmp.eq.f32.partialorder %v3208, 8.507059e+37
        %v3210 = vand.u32 %v3198, 2147483648
        %v3211 = vor.u32 1.1754944e-38, %v3210
        %v3212 = vsel %vm3209, %v3211, %v3207
        %v3213 = vmul.f32 %v3188, %v3212
        %v3214 = vmin.f32 %v3213, 1.0
        %v3215 = vmax.f32 %v3214, -1.0
        %v3216 = vmul.f32 %v812, %v812
        %v3217 = vmin.f32 16.0, %v3216
        %v3218 = vmul.f32 %v3217, 2.1237322e-06
        %v3219 = vadd.f32 %v3218, 0.00028619796
        %v3220 = vmul.f32 %v3217, %v3219
        %v3221 = vadd.f32 %v3220, 0.0036580483
        %v3222 = vmul.f32 %v3217, %v3221
        %v3223 = vadd.f32 %v3222, 0.05243302
        %v3224 = vmul.f32 %v3217, %v3223
        %v3225 = vadd.f32 %v3224, 0.18741608
        %v3226 = vmul.f32 %v3217, %v3225
        %v3227 = vadd.f32 %v3226, 1.1283791
        %v3228 = vmul.f32 %v812, %v3227
        %v3229 = vmul.f32 %v3217, 3.8918573e-05
        %v3230 = vadd.f32 %v3229, 0.001143296
        %v3231 = vmul.f32 %v3217, %v3230
        %v3232 = vadd.f32 %v3231, 0.014752088
        %v3233 = vmul.f32 %v3217, %v3232
        %v3234 = vadd.f32 %v3233, 0.112945676
        %v3235 = vmul.f32 %v3217, %v3234
        %v3236 = vadd.f32 %v3235, 0.4994258
        %v3237 = vmul.f32 %v3217, %v3236
        %v3238 = vadd.f32 %v3237, 1.0
        %v3239 = vrcp.pop %v3238
        %v3240 = vmul.f32 %v3238, %v3239
        %v3241 = vsub.f32 1.0, %v3240
        %v3242 = vmul.f32 %v3239, %v3241
        %v3243 = vadd.f32 %v3239, %v3242
        %vm3244 = vweird.f32 %v3238
        %vm3245 = vweird.f32 %v3239
        %vm3246 = vmor %vm3244, %vm3245
        %v3247 = vsel %vm3246, %v3239, %v3243
        %v3248 = vand.u32 2147483647, %v3238
        %vm3249 = vcmp.eq.f32.partialorder %v3248, 8.507059e+37
        %v3250 = vand.u32 %v3238, 2147483648
        %v3251 = vor.u32 1.1754944e-38, %v3250
        %v3252 = vsel %vm3249, %v3251, %v3247
        %v3253 = vmul.f32 %v3228, %v3252
        %v3254 = vmin.f32 %v3253, 1.0
        %v3255 = vmax.f32 %v3254, -1.0
        %v3256 = vmul.f32 %v813, %v813
        %v3257 = vmin.f32 16.0, %v3256
        %v3258 = vmul.f32 %v3257, 2.1237322e-06
        %v3259 = vadd.f32 %v3258, 0.00028619796
        %v3260 = vmul.f32 %v3257, %v3259
        %v3261 = vadd.f32 %v3260, 0.0036580483
        %v3262 = vmul.f32 %v3257, %v3261
        %v3263 = vadd.f32 %v3262, 0.05243302
        %v3264 = vmul.f32 %v3257, %v3263
        %v3265 = vadd.f32 %v3264, 0.18741608
        %v3266 = vmul.f32 %v3257, %v3265
        %v3267 = vadd.f32 %v3266, 1.1283791
        %v3268 = vmul.f32 %v813, %v3267
        %v3269 = vmul.f32 %v3257, 3.8918573e-05
        %v3270 = vadd.f32 %v3269, 0.001143296
        %v3271 = vmul.f32 %v3257, %v3270
        %v3272 = vadd.f32 %v3271, 0.014752088
        %v3273 = vmul.f32 %v3257, %v3272
        %v3274 = vadd.f32 %v3273, 0.112945676
        %v3275 = vmul.f32 %v3257, %v3274
        %v3276 = vadd.f32 %v3275, 0.4994258
        %v3277 = vmul.f32 %v3257, %v3276
        %v3278 = vadd.f32 %v3277, 1.0
        %v3279 = vrcp.pop %v3278
        %v3280 = vmul.f32 %v3278, %v3279
        %v3281 = vsub.f32 1.0, %v3280
        %v3282 = vmul.f32 %v3279, %v3281
        %v3283 = vadd.f32 %v3279, %v3282
        %vm3284 = vweird.f32 %v3278
        %vm3285 = vweird.f32 %v3279
        %vm3286 = vmor %vm3284, %vm3285
        %v3287 = vsel %vm3286, %v3279, %v3283
        %v3288 = vand.u32 2147483647, %v3278
        %vm3289 = vcmp.eq.f32.partialorder %v3288, 8.507059e+37
        %v3290 = vand.u32 %v3278, 2147483648
        %v3291 = vor.u32 1.1754944e-38, %v3290
        %v3292 = vsel %vm3289, %v3291, %v3287
        %v3293 = vmul.f32 %v3268, %v3292
        %v3294 = vmin.f32 %v3293, 1.0
        %v3295 = vmax.f32 %v3294, -1.0
        %v3296 = vmul.f32 %v814, %v814
        %v3297 = vmin.f32 16.0, %v3296
        %v3298 = vmul.f32 %v3297, 2.1237322e-06
        %v3299 = vadd.f32 %v3298, 0.00028619796
        %v3300 = vmul.f32 %v3297, %v3299
        %v3301 = vadd.f32 %v3300, 0.0036580483
        %v3302 = vmul.f32 %v3297, %v3301
        %v3303 = vadd.f32 %v3302, 0.05243302
        %v3304 = vmul.f32 %v3297, %v3303
        %v3305 = vadd.f32 %v3304, 0.18741608
        %v3306 = vmul.f32 %v3297, %v3305
        %v3307 = vadd.f32 %v3306, 1.1283791
        %v3308 = vmul.f32 %v814, %v3307
        %v3309 = vmul.f32 %v3297, 3.8918573e-05
        %v3310 = vadd.f32 %v3309, 0.001143296
        %v3311 = vmul.f32 %v3297, %v3310
        %v3312 = vadd.f32 %v3311, 0.014752088
        %v3313 = vmul.f32 %v3297, %v3312
        %v3314 = vadd.f32 %v3313, 0.112945676
        %v3315 = vmul.f32 %v3297, %v3314
        %v3316 = vadd.f32 %v3315, 0.4994258
        %v3317 = vmul.f32 %v3297, %v3316
        %v3318 = vadd.f32 %v3317, 1.0
        %v3319 = vrcp.pop %v3318
        %v3320 = vmul.f32 %v3318, %v3319
        %v3321 = vsub.f32 1.0, %v3320
        %v3322 = vmul.f32 %v3319, %v3321
        %v3323 = vadd.f32 %v3319, %v3322
        %vm3324 = vweird.f32 %v3318
        %vm3325 = vweird.f32 %v3319
        %vm3326 = vmor %vm3324, %vm3325
        %v3327 = vsel %vm3326, %v3319, %v3323
        %v3328 = vand.u32 2147483647, %v3318
        %vm3329 = vcmp.eq.f32.partialorder %v3328, 8.507059e+37
        %v3330 = vand.u32 %v3318, 2147483648
        %v3331 = vor.u32 1.1754944e-38, %v3330
        %v3332 = vsel %vm3329, %v3331, %v3327
        %v3333 = vmul.f32 %v3308, %v3332
        %v3334 = vmin.f32 %v3333, 1.0
        %v3335 = vmax.f32 %v3334, -1.0
        %v3336 = vmul.f32 %v815, %v815
        %v3337 = vmin.f32 16.0, %v3336
        %v3338 = vmul.f32 %v3337, 2.1237322e-06
        %v3339 = vadd.f32 %v3338, 0.00028619796
        %v3340 = vmul.f32 %v3337, %v3339
        %v3341 = vadd.f32 %v3340, 0.0036580483
        %v3342 = vmul.f32 %v3337, %v3341
        %v3343 = vadd.f32 %v3342, 0.05243302
        %v3344 = vmul.f32 %v3337, %v3343
        %v3345 = vadd.f32 %v3344, 0.18741608
        %v3346 = vmul.f32 %v3337, %v3345
        %v3347 = vadd.f32 %v3346, 1.1283791
        %v3348 = vmul.f32 %v815, %v3347
        %v3349 = vmul.f32 %v3337, 3.8918573e-05
        %v3350 = vadd.f32 %v3349, 0.001143296
        %v3351 = vmul.f32 %v3337, %v3350
        %v3352 = vadd.f32 %v3351, 0.014752088
        %v3353 = vmul.f32 %v3337, %v3352
        %v3354 = vadd.f32 %v3353, 0.112945676
        %v3355 = vmul.f32 %v3337, %v3354
        %v3356 = vadd.f32 %v3355, 0.4994258
        %v3357 = vmul.f32 %v3337, %v3356
        %v3358 = vadd.f32 %v3357, 1.0
        %v3359 = vrcp.pop %v3358
        %v3360 = vmul.f32 %v3358, %v3359
        %v3361 = vsub.f32 1.0, %v3360
        %v3362 = vmul.f32 %v3359, %v3361
        %v3363 = vadd.f32 %v3359, %v3362
        %vm3364 = vweird.f32 %v3358
        %vm3365 = vweird.f32 %v3359
        %vm3366 = vmor %vm3364, %vm3365
        %v3367 = vsel %vm3366, %v3359, %v3363
        %v3368 = vand.u32 2147483647, %v3358
        %vm3369 = vcmp.eq.f32.partialorder %v3368, 8.507059e+37
        %v3370 = vand.u32 %v3358, 2147483648
        %v3371 = vor.u32 1.1754944e-38, %v3370
        %v3372 = vsel %vm3369, %v3371, %v3367
        %v3373 = vmul.f32 %v3348, %v3372
        %v3374 = vmin.f32 %v3373, 1.0
        %v3375 = vmax.f32 %v3374, -1.0
        %v3376 = vadd.f32 %v855, 1.0
        %v3377 = vadd.f32 %v895, 1.0
        %v3378 = vadd.f32 %v935, 1.0
        %v3379 = vadd.f32 %v975, 1.0
        %v3380 = vadd.f32 %v1015, 1.0
        %v3381 = vadd.f32 %v1055, 1.0
        %v3382 = vadd.f32 %v1095, 1.0
        %v3383 = vadd.f32 %v1135, 1.0
        %v3384 = vadd.f32 %v1175, 1.0
        %v3385 = vadd.f32 %v1215, 1.0
        %v3386 = vadd.f32 %v1255, 1.0
        %v3387 = vadd.f32 %v1295, 1.0
        %v3388 = vadd.f32 %v1335, 1.0
        %v3389 = vadd.f32 %v1375, 1.0
        %v3390 = vadd.f32 %v1415, 1.0
        %v3391 = vadd.f32 %v1455, 1.0
        %v3392 = vadd.f32 %v1495, 1.0
        %v3393 = vadd.f32 %v1535, 1.0
        %v3394 = vadd.f32 %v1575, 1.0
        %v3395 = vadd.f32 %v1615, 1.0
        %v3396 = vadd.f32 %v1655, 1.0
        %v3397 = vadd.f32 %v1695, 1.0
        %v3398 = vadd.f32 %v1735, 1.0
        %v3399 = vadd.f32 %v1775, 1.0
        %v3400 = vadd.f32 %v1815, 1.0
        %v3401 = vadd.f32 %v1855, 1.0
        %v3402 = vadd.f32 %v1895, 1.0
        %v3403 = vadd.f32 %v1935, 1.0
        %v3404 = vadd.f32 %v1975, 1.0
        %v3405 = vadd.f32 %v2015, 1.0
        %v3406 = vadd.f32 %v2055, 1.0
        %v3407 = vadd.f32 %v2095, 1.0
        %v3408 = vadd.f32 %v2135, 1.0
        %v3409 = vadd.f32 %v2175, 1.0
        %v3410 = vadd.f32 %v2215, 1.0
        %v3411 = vadd.f32 %v2255, 1.0
        %v3412 = vadd.f32 %v2295, 1.0
        %v3413 = vadd.f32 %v2335, 1.0
        %v3414 = vadd.f32 %v2375, 1.0
        %v3415 = vadd.f32 %v2415, 1.0
        %v3416 = vadd.f32 %v2455, 1.0
        %v3417 = vadd.f32 %v2495, 1.0
        %v3418 = vadd.f32 %v2535, 1.0
        %v3419 = vadd.f32 %v2575, 1.0
        %v3420 = vadd.f32 %v2615, 1.0
        %v3421 = vadd.f32 %v2655, 1.0
        %v3422 = vadd.f32 %v2695, 1.0
        %v3423 = vadd.f32 %v2735, 1.0
        %v3424 = vadd.f32 %v2775, 1.0
        %v3425 = vadd.f32 %v2815, 1.0
        %v3426 = vadd.f32 %v2855, 1.0
        %v3427 = vadd.f32 %v2895, 1.0
        %v3428 = vadd.f32 %v2935, 1.0
        %v3429 = vadd.f32 %v2975, 1.0
        %v3430 = vadd.f32 %v3015, 1.0
        %v3431 = vadd.f32 %v3055, 1.0
        %v3432 = vadd.f32 %v3095, 1.0
        %v3433 = vadd.f32 %v3135, 1.0
        %v3434 = vadd.f32 %v3175, 1.0
        %v3435 = vadd.f32 %v3215, 1.0
        %v3436 = vadd.f32 %v3255, 1.0
        %v3437 = vadd.f32 %v3295, 1.0
        %v3438 = vadd.f32 %v3335, 1.0
        %v3439 = vadd.f32 %v3375, 1.0
        %v3440 = vmul.f32 %v688, %v3376
        %v3441 = vmul.f32 %v689, %v3377
        %v3442 = vmul.f32 %v690, %v3378
        %v3443 = vmul.f32 %v691, %v3379
        %v3444 = vmul.f32 %v692, %v3380
        %v3445 = vmul.f32 %v693, %v3381
        %v3446 = vmul.f32 %v694, %v3382
        %v3447 = vmul.f32 %v695, %v3383
        %v3448 = vmul.f32 %v696, %v3384
        %v3449 = vmul.f32 %v697, %v3385
        %v3450 = vmul.f32 %v698, %v3386
        %v3451 = vmul.f32 %v699, %v3387
        %v3452 = vmul.f32 %v700, %v3388
        %v3453 = vmul.f32 %v701, %v3389
        %v3454 = vmul.f32 %v702, %v3390
        %v3455 = vmul.f32 %v703, %v3391
        %v3456 = vmul.f32 %v704, %v3392
        %v3457 = vmul.f32 %v705, %v3393
        %v3458 = vmul.f32 %v706, %v3394
        %v3459 = vmul.f32 %v707, %v3395
        %v3460 = vmul.f32 %v708, %v3396
        %v3461 = vmul.f32 %v709, %v3397
        %v3462 = vmul.f32 %v710, %v3398
        %v3463 = vmul.f32 %v711, %v3399
        %v3464 = vmul.f32 %v712, %v3400
        %v3465 = vmul.f32 %v713, %v3401
        %v3466 = vmul.f32 %v714, %v3402
        %v3467 = vmul.f32 %v715, %v3403
        %v3468 = vmul.f32 %v716, %v3404
        %v3469 = vmul.f32 %v717, %v3405
        %v3470 = vmul.f32 %v718, %v3406
        %v3471 = vmul.f32 %v719, %v3407
        %v3472 = vmul.f32 %v720, %v3408
        %v3473 = vmul.f32 %v721, %v3409
        %v3474 = vmul.f32 %v722, %v3410
        %v3475 = vmul.f32 %v723, %v3411
        %v3476 = vmul.f32 %v724, %v3412
        %v3477 = vmul.f32 %v725, %v3413
        %v3478 = vmul.f32 %v726, %v3414
        %v3479 = vmul.f32 %v727, %v3415
        %v3480 = vmul.f32 %v728, %v3416
        %v3481 = vmul.f32 %v729, %v3417
        %v3482 = vmul.f32 %v730, %v3418
        %v3483 = vmul.f32 %v731, %v3419
        %v3484 = vmul.f32 %v732, %v3420
        %v3485 = vmul.f32 %v733, %v3421
        %v3486 = vmul.f32 %v734, %v3422
        %v3487 = vmul.f32 %v735, %v3423
        %v3488 = vmul.f32 %v736, %v3424
        %v3489 = vmul.f32 %v737, %v3425
        %v3490 = vmul.f32 %v738, %v3426
        %v3491 = vmul.f32 %v739, %v3427
        %v3492 = vmul.f32 %v740, %v3428
        %v3493 = vmul.f32 %v741, %v3429
        %v3494 = vmul.f32 %v742, %v3430
        %v3495 = vmul.f32 %v743, %v3431
        %v3496 = vmul.f32 %v744, %v3432
        %v3497 = vmul.f32 %v745, %v3433
        %v3498 = vmul.f32 %v746, %v3434
        %v3499 = vmul.f32 %v747, %v3435
        %v3500 = vmul.f32 %v748, %v3436
        %v3501 = vmul.f32 %v749, %v3437
        %v3502 = vmul.f32 %v750, %v3438
        %v3503 = vmul.f32 %v751, %v3439
        %v3504 = vpack.c.bf16 %v3444, %v3440
        %v3505 = vpack.c.bf16 %v3445, %v3441
        %v3506 = vpack.c.bf16 %v3446, %v3442
        %v3507 = vpack.c.bf16 %v3447, %v3443
        %v3508 = vpack.c.bf16 %v3452, %v3448
        %v3509 = vpack.c.bf16 %v3453, %v3449
        %v3510 = vpack.c.bf16 %v3454, %v3450
        %v3511 = vpack.c.bf16 %v3455, %v3451
        %v3512 = vpack.c.bf16 %v3460, %v3456
        %v3513 = vpack.c.bf16 %v3461, %v3457
        %v3514 = vpack.c.bf16 %v3462, %v3458
        %v3515 = vpack.c.bf16 %v3463, %v3459
        %v3516 = vpack.c.bf16 %v3468, %v3464
        %v3517 = vpack.c.bf16 %v3469, %v3465
        %v3518 = vpack.c.bf16 %v3470, %v3466
        %v3519 = vpack.c.bf16 %v3471, %v3467
        %v3520 = vpack.c.bf16 %v3476, %v3472
        %v3521 = vpack.c.bf16 %v3477, %v3473
        %v3522 = vpack.c.bf16 %v3478, %v3474
        %v3523 = vpack.c.bf16 %v3479, %v3475
        %v3524 = vpack.c.bf16 %v3484, %v3480
        %v3525 = vpack.c.bf16 %v3485, %v3481
        %v3526 = vpack.c.bf16 %v3486, %v3482
        %v3527 = vpack.c.bf16 %v3487, %v3483
        %v3528 = vpack.c.bf16 %v3492, %v3488
        %v3529 = vpack.c.bf16 %v3493, %v3489
        %v3530 = vpack.c.bf16 %v3494, %v3490
        %v3531 = vpack.c.bf16 %v3495, %v3491
        %v3532 = vpack.c.bf16 %v3500, %v3496
        %v3533 = vpack.c.bf16 %v3501, %v3497
        %v3534 = vpack.c.bf16 %v3502, %v3498
        %v3535 = vpack.c.bf16 %v3503, %v3499
        %v3536 = vld [vmem:[%s3] sm:$0xf]
        %v3537 = vld [vmem:[%s3 + $0x4] sm:$0xf]
        %v3538 = vld [vmem:[%s3 + $0x8] sm:$0xf]
        %v3539 = vld [vmem:[%s3 + $0xc] sm:$0xf]
        %v3540 = vld [vmem:[%s3 + $0x10] sm:$0xf]
        %v3541 = vld [vmem:[%s3 + $0x14] sm:$0xf]
        %v3542 = vld [vmem:[%s3 + $0x18] sm:$0xf]
        %v3543 = vld [vmem:[%s3 + $0x1c] sm:$0xf]
        %v3544 = vld [vmem:[%s3 + $0x20] sm:$0xf]
        %v3545 = vld [vmem:[%s3 + $0x24] sm:$0xf]
        %v3546 = vld [vmem:[%s3 + $0x28] sm:$0xf]
        %v3547 = vld [vmem:[%s3 + $0x2c] sm:$0xf]
        %v3548 = vld [vmem:[%s3 + $0x30] sm:$0xf]
        %v3549 = vld [vmem:[%s3 + $0x34] sm:$0xf]
        %v3550 = vld [vmem:[%s3 + $0x38] sm:$0xf]
        %v3551 = vld [vmem:[%s3 + $0x3c] sm:$0xf]
        %v3552 = vld [vmem:[%s3 + $0x40] sm:$0xf]
        %v3553 = vld [vmem:[%s3 + $0x44] sm:$0xf]
        %v3554 = vld [vmem:[%s3 + $0x48] sm:$0xf]
        %v3555 = vld [vmem:[%s3 + $0x4c] sm:$0xf]
        %v3556 = vld [vmem:[%s3 + $0x50] sm:$0xf]
        %v3557 = vld [vmem:[%s3 + $0x54] sm:$0xf]
        %v3558 = vld [vmem:[%s3 + $0x58] sm:$0xf]
        %v3559 = vld [vmem:[%s3 + $0x5c] sm:$0xf]
        %v3560 = vld [vmem:[%s3 + $0x60] sm:$0xf]
        %v3561 = vld [vmem:[%s3 + $0x64] sm:$0xf]
        %v3562 = vld [vmem:[%s3 + $0x68] sm:$0xf]
        %v3563 = vld [vmem:[%s3 + $0x6c] sm:$0xf]
        %v3564 = vld [vmem:[%s3 + $0x70] sm:$0xf]
        %v3565 = vld [vmem:[%s3 + $0x74] sm:$0xf]
        %v3566 = vld [vmem:[%s3 + $0x78] sm:$0xf]
        %v3567 = vld [vmem:[%s3 + $0x7c] sm:$0xf]
        %v3568 = vld [vmem:[%s3 + $0x80] sm:$0xf]
        %v3569 = vld [vmem:[%s3 + $0x84] sm:$0xf]
        %v3570 = vld [vmem:[%s3 + $0x88] sm:$0xf]
        %v3571 = vld [vmem:[%s3 + $0x8c] sm:$0xf]
        %v3572 = vld [vmem:[%s3 + $0x90] sm:$0xf]
        %v3573 = vld [vmem:[%s3 + $0x94] sm:$0xf]
        %v3574 = vld [vmem:[%s3 + $0x98] sm:$0xf]
        %v3575 = vld [vmem:[%s3 + $0x9c] sm:$0xf]
        %v3576 = vld [vmem:[%s3 + $0xa0] sm:$0xf]
        %v3577 = vld [vmem:[%s3 + $0xa4] sm:$0xf]
        %v3578 = vld [vmem:[%s3 + $0xa8] sm:$0xf]
        %v3579 = vld [vmem:[%s3 + $0xac] sm:$0xf]
        %v3580 = vld [vmem:[%s3 + $0xb0] sm:$0xf]
        %v3581 = vld [vmem:[%s3 + $0xb4] sm:$0xf]
        %v3582 = vld [vmem:[%s3 + $0xb8] sm:$0xf]
        %v3583 = vld [vmem:[%s3 + $0xbc] sm:$0xf]
        %v3584 = vld [vmem:[%s3 + $0xc0] sm:$0xf]
        %v3585 = vld [vmem:[%s3 + $0xc4] sm:$0xf]
        %v3586 = vld [vmem:[%s3 + $0xc8] sm:$0xf]
        %v3587 = vld [vmem:[%s3 + $0xcc] sm:$0xf]
        %v3588 = vld [vmem:[%s3 + $0xd0] sm:$0xf]
        %v3589 = vld [vmem:[%s3 + $0xd4] sm:$0xf]
        %v3590 = vld [vmem:[%s3 + $0xd8] sm:$0xf]
        %v3591 = vld [vmem:[%s3 + $0xdc] sm:$0xf]
        %v3592 = vld [vmem:[%s3 + $0xe0] sm:$0xf]
        %v3593 = vld [vmem:[%s3 + $0xe4] sm:$0xf]
        %v3594 = vld [vmem:[%s3 + $0xe8] sm:$0xf]
        %v3595 = vld [vmem:[%s3 + $0xec] sm:$0xf]
        %v3596 = vld [vmem:[%s3 + $0xf0] sm:$0xf]
        %v3597 = vld [vmem:[%s3 + $0xf4] sm:$0xf]
        %v3598 = vld [vmem:[%s3 + $0xf8] sm:$0xf]
        %v3599 = vld [vmem:[%s3 + $0xfc] sm:$0xf]
        %v3600 = vld [vmem:[%s4] sm:$0x1]
        %v3602 = vperm.slane %v3600, 0
        %v3668 = vunpack.c.l.b16 %v3536
        %v3669 = vunpack.c.l.b16 %v3537
        %v3670 = vunpack.c.l.b16 %v3538
        %v3671 = vunpack.c.l.b16 %v3539
        %v3672 = vunpack.c.l.b16 %v3540
        %v3673 = vunpack.c.l.b16 %v3541
        %v3674 = vunpack.c.l.b16 %v3542
        %v3675 = vunpack.c.l.b16 %v3543
        %v3676 = vunpack.c.l.b16 %v3544
        %v3677 = vunpack.c.l.b16 %v3545
        %v3678 = vunpack.c.l.b16 %v3546
        %v3679 = vunpack.c.l.b16 %v3547
        %v3680 = vunpack.c.l.b16 %v3548
        %v3681 = vunpack.c.l.b16 %v3549
        %v3682 = vunpack.c.l.b16 %v3550
        %v3683 = vunpack.c.l.b16 %v3551
        %v3684 = vunpack.c.l.b16 %v3552
        %v3685 = vunpack.c.l.b16 %v3553
        %v3686 = vunpack.c.l.b16 %v3554
        %v3687 = vunpack.c.l.b16 %v3555
        %v3688 = vunpack.c.l.b16 %v3556
        %v3689 = vunpack.c.l.b16 %v3557
        %v3690 = vunpack.c.l.b16 %v3558
        %v3691 = vunpack.c.l.b16 %v3559
        %v3692 = vunpack.c.l.b16 %v3560
        %v3693 = vunpack.c.l.b16 %v3561
        %v3694 = vunpack.c.l.b16 %v3562
        %v3695 = vunpack.c.l.b16 %v3563
        %v3696 = vunpack.c.l.b16 %v3564
        %v3697 = vunpack.c.l.b16 %v3565
        %v3698 = vunpack.c.l.b16 %v3566
        %v3699 = vunpack.c.l.b16 %v3567
        %v3700 = vunpack.c.l.b16 %v3568
        %v3701 = vunpack.c.l.b16 %v3569
        %v3702 = vunpack.c.l.b16 %v3570
        %v3703 = vunpack.c.l.b16 %v3571
        %v3704 = vunpack.c.l.b16 %v3572
        %v3705 = vunpack.c.l.b16 %v3573
        %v3706 = vunpack.c.l.b16 %v3574
        %v3707 = vunpack.c.l.b16 %v3575
        %v3708 = vunpack.c.l.b16 %v3576
        %v3709 = vunpack.c.l.b16 %v3577
        %v3710 = vunpack.c.l.b16 %v3578
        %v3711 = vunpack.c.l.b16 %v3579
        %v3712 = vunpack.c.l.b16 %v3580
        %v3713 = vunpack.c.l.b16 %v3581
        %v3714 = vunpack.c.l.b16 %v3582
        %v3715 = vunpack.c.l.b16 %v3583
        %v3716 = vunpack.c.l.b16 %v3584
        %v3717 = vunpack.c.l.b16 %v3585
        %v3718 = vunpack.c.l.b16 %v3586
        %v3719 = vunpack.c.l.b16 %v3587
        %v3720 = vunpack.c.l.b16 %v3588
        %v3721 = vunpack.c.l.b16 %v3589
        %v3722 = vunpack.c.l.b16 %v3590
        %v3723 = vunpack.c.l.b16 %v3591
        %v3724 = vunpack.c.l.b16 %v3592
        %v3725 = vunpack.c.l.b16 %v3593
        %v3726 = vunpack.c.l.b16 %v3594
        %v3727 = vunpack.c.l.b16 %v3595
        %v3728 = vunpack.c.l.b16 %v3596
        %v3729 = vunpack.c.l.b16 %v3597
        %v3730 = vunpack.c.l.b16 %v3598
        %v3731 = vunpack.c.l.b16 %v3599
        %v3732 = vpack.c.b16 %v3669, %v3668
        %v3733 = vpack.c.b16 %v3671, %v3670
        %v3734 = vpack.c.b16 %v3673, %v3672
        %v3735 = vpack.c.b16 %v3675, %v3674
        %v3736 = vpack.c.b16 %v3677, %v3676
        %v3737 = vpack.c.b16 %v3679, %v3678
        %v3738 = vpack.c.b16 %v3681, %v3680
        %v3739 = vpack.c.b16 %v3683, %v3682
        %v3740 = vpack.c.b16 %v3685, %v3684
        %v3741 = vpack.c.b16 %v3687, %v3686
        %v3742 = vpack.c.b16 %v3689, %v3688
        %v3743 = vpack.c.b16 %v3691, %v3690
        %v3744 = vpack.c.b16 %v3693, %v3692
        %v3745 = vpack.c.b16 %v3695, %v3694
        %v3746 = vpack.c.b16 %v3697, %v3696
        %v3747 = vpack.c.b16 %v3699, %v3698
        %v3748 = vpack.c.b16 %v3701, %v3700
        %v3749 = vpack.c.b16 %v3703, %v3702
        %v3750 = vpack.c.b16 %v3705, %v3704
        %v3751 = vpack.c.b16 %v3707, %v3706
        %v3752 = vpack.c.b16 %v3709, %v3708
        %v3753 = vpack.c.b16 %v3711, %v3710
        %v3754 = vpack.c.b16 %v3713, %v3712
        %v3755 = vpack.c.b16 %v3715, %v3714
        %v3756 = vpack.c.b16 %v3717, %v3716
        %v3757 = vpack.c.b16 %v3719, %v3718
        %v3758 = vpack.c.b16 %v3721, %v3720
        %v3759 = vpack.c.b16 %v3723, %v3722
        %v3760 = vpack.c.b16 %v3725, %v3724
        %v3761 = vpack.c.b16 %v3727, %v3726
        %v3762 = vpack.c.b16 %v3729, %v3728
        %v3763 = vpack.c.b16 %v3731, %v3730
        %3796 = vmatpush.bf16.msra.mxu0 %v3739
        %3797 = vmatpush.bf16.msra.mxu0 %v3738
        %3798 = vmatpush.bf16.msra.mxu0 %v3737
        %3799 = vmatpush.bf16.msra.mxu0 %v3736
        %3800 = vmatpush.bf16.msra.mxu0 %v3735
        %3801 = vmatpush.bf16.msra.mxu0 %v3734
        %3802 = vmatpush.bf16.msra.mxu0 %v3733
        %3803 = vmatpush.bf16.msra.mxu0 %v3732
        %3804 = vmatmul.bf16.gmra.mxu0 %v3504
        %v3805 = vpop.f32.mrf.mxu0
        %v3806 = vadd.f32 %v3602, %v3805
        %v3807 = vpop.f32.mrf.mxu0
        %v3808 = vadd.f32 %v3602, %v3807
        %3809 = vmatmul.bf16.gmra.mxu0 %v3508
        %v3810 = vpop.f32.mrf.mxu0
        %v3811 = vadd.f32 %v3602, %v3810
        %v3812 = vpop.f32.mrf.mxu0
        %v3813 = vadd.f32 %v3602, %v3812
        %3814 = vmatmul.bf16.gmra.mxu0 %v3512
        %v3815 = vpop.f32.mrf.mxu0
        %v3816 = vadd.f32 %v3602, %v3815
        %v3817 = vpop.f32.mrf.mxu0
        %v3818 = vadd.f32 %v3602, %v3817
        %3819 = vmatmul.bf16.gmra.mxu0 %v3516
        %v3820 = vpop.f32.mrf.mxu0
        %v3821 = vadd.f32 %v3602, %v3820
        %v3822 = vpop.f32.mrf.mxu0
        %v3823 = vadd.f32 %v3602, %v3822
        %3824 = vmatmul.bf16.gmra.mxu0 %v3520
        %v3825 = vpop.f32.mrf.mxu0
        %v3826 = vadd.f32 %v3602, %v3825
        %v3827 = vpop.f32.mrf.mxu0
        %v3828 = vadd.f32 %v3602, %v3827
        %3829 = vmatmul.bf16.gmra.mxu0 %v3524
        %v3830 = vpop.f32.mrf.mxu0
        %v3831 = vadd.f32 %v3602, %v3830
        %v3832 = vpop.f32.mrf.mxu0
        %v3833 = vadd.f32 %v3602, %v3832
        %3834 = vmatmul.bf16.gmra.mxu0 %v3528
        %v3835 = vpop.f32.mrf.mxu0
        %v3836 = vadd.f32 %v3602, %v3835
        %v3837 = vpop.f32.mrf.mxu0
        %v3838 = vadd.f32 %v3602, %v3837
        %3839 = vmatmul.bf16.gmra.mxu0 %v3532
        %v3840 = vpop.f32.mrf.mxu0
        %v3841 = vadd.f32 %v3602, %v3840
        %v3842 = vpop.f32.mrf.mxu0
        %v3843 = vadd.f32 %v3602, %v3842
        %3844 = vdwg.mxu0
        %3845 = vmatpush.bf16.msra.mxu0 %v3747
        %3846 = vmatpush.bf16.msra.mxu0 %v3746
        %3847 = vmatpush.bf16.msra.mxu0 %v3745
        %3848 = vmatpush.bf16.msra.mxu0 %v3744
        %3849 = vmatpush.bf16.msra.mxu0 %v3743
        %3850 = vmatpush.bf16.msra.mxu0 %v3742
        %3851 = vmatpush.bf16.msra.mxu0 %v3741
        %3852 = vmatpush.bf16.msra.mxu0 %v3740
        %3853 = vmatmul.bf16.gmra.mxu0 %v3505
        %v3854 = vpop.f32.mrf.mxu0
        %v3855 = vadd.f32 %v3806, %v3854
        %v3856 = vpop.f32.mrf.mxu0
        %v3857 = vadd.f32 %v3808, %v3856
        %3858 = vmatmul.bf16.gmra.mxu0 %v3509
        %v3859 = vpop.f32.mrf.mxu0
        %v3860 = vadd.f32 %v3811, %v3859
        %v3861 = vpop.f32.mrf.mxu0
        %v3862 = vadd.f32 %v3813, %v3861
        %3863 = vmatmul.bf16.gmra.mxu0 %v3513
        %v3864 = vpop.f32.mrf.mxu0
        %v3865 = vadd.f32 %v3816, %v3864
        %v3866 = vpop.f32.mrf.mxu0
        %v3867 = vadd.f32 %v3818, %v3866
        %3868 = vmatmul.bf16.gmra.mxu0 %v3517
        %v3869 = vpop.f32.mrf.mxu0
        %v3870 = vadd.f32 %v3821, %v3869
        %v3871 = vpop.f32.mrf.mxu0
        %v3872 = vadd.f32 %v3823, %v3871
        %3873 = vmatmul.bf16.gmra.mxu0 %v3521
        %v3874 = vpop.f32.mrf.mxu0
        %v3875 = vadd.f32 %v3826, %v3874
        %v3876 = vpop.f32.mrf.mxu0
        %v3877 = vadd.f32 %v3828, %v3876
        %3878 = vmatmul.bf16.gmra.mxu0 %v3525
        %v3879 = vpop.f32.mrf.mxu0
        %v3880 = vadd.f32 %v3831, %v3879
        %v3881 = vpop.f32.mrf.mxu0
        %v3882 = vadd.f32 %v3833, %v3881
        %3883 = vmatmul.bf16.gmra.mxu0 %v3529
        %v3884 = vpop.f32.mrf.mxu0
        %v3885 = vadd.f32 %v3836, %v3884
        %v3886 = vpop.f32.mrf.mxu0
        %v3887 = vadd.f32 %v3838, %v3886
        %3888 = vmatmul.bf16.gmra.mxu0 %v3533
        %v3889 = vpop.f32.mrf.mxu0
        %v3890 = vadd.f32 %v3841, %v3889
        %v3891 = vpop.f32.mrf.mxu0
        %v3892 = vadd.f32 %v3843, %v3891
        %3893 = vdwg.mxu0
        %3894 = vmatpush.bf16.msra.mxu0 %v3755
        %3895 = vmatpush.bf16.msra.mxu0 %v3754
        %3896 = vmatpush.bf16.msra.mxu0 %v3753
        %3897 = vmatpush.bf16.msra.mxu0 %v3752
        %3898 = vmatpush.bf16.msra.mxu0 %v3751
        %3899 = vmatpush.bf16.msra.mxu0 %v3750
        %3900 = vmatpush.bf16.msra.mxu0 %v3749
        %3901 = vmatpush.bf16.msra.mxu0 %v3748
        %3902 = vmatmul.bf16.gmra.mxu0 %v3506
        %v3903 = vpop.f32.mrf.mxu0
        %v3904 = vadd.f32 %v3855, %v3903
        %v3905 = vpop.f32.mrf.mxu0
        %v3906 = vadd.f32 %v3857, %v3905
        %3907 = vmatmul.bf16.gmra.mxu0 %v3510
        %v3908 = vpop.f32.mrf.mxu0
        %v3909 = vadd.f32 %v3860, %v3908
        %v3910 = vpop.f32.mrf.mxu0
        %v3911 = vadd.f32 %v3862, %v3910
        %3912 = vmatmul.bf16.gmra.mxu0 %v3514
        %v3913 = vpop.f32.mrf.mxu0
        %v3914 = vadd.f32 %v3865, %v3913
        %v3915 = vpop.f32.mrf.mxu0
        %v3916 = vadd.f32 %v3867, %v3915
        %3917 = vmatmul.bf16.gmra.mxu0 %v3518
        %v3918 = vpop.f32.mrf.mxu0
        %v3919 = vadd.f32 %v3870, %v3918
        %v3920 = vpop.f32.mrf.mxu0
        %v3921 = vadd.f32 %v3872, %v3920
        %3922 = vmatmul.bf16.gmra.mxu0 %v3522
        %v3923 = vpop.f32.mrf.mxu0
        %v3924 = vadd.f32 %v3875, %v3923
        %v3925 = vpop.f32.mrf.mxu0
        %v3926 = vadd.f32 %v3877, %v3925
        %3927 = vmatmul.bf16.gmra.mxu0 %v3526
        %v3928 = vpop.f32.mrf.mxu0
        %v3929 = vadd.f32 %v3880, %v3928
        %v3930 = vpop.f32.mrf.mxu0
        %v3931 = vadd.f32 %v3882, %v3930
        %3932 = vmatmul.bf16.gmra.mxu0 %v3530
        %v3933 = vpop.f32.mrf.mxu0
        %v3934 = vadd.f32 %v3885, %v3933
        %v3935 = vpop.f32.mrf.mxu0
        %v3936 = vadd.f32 %v3887, %v3935
        %3937 = vmatmul.bf16.gmra.mxu0 %v3534
        %v3938 = vpop.f32.mrf.mxu0
        %v3939 = vadd.f32 %v3890, %v3938
        %v3940 = vpop.f32.mrf.mxu0
        %v3941 = vadd.f32 %v3892, %v3940
        %3942 = vdwg.mxu0
        %3943 = vmatpush.bf16.msra.mxu0 %v3763
        %3944 = vmatpush.bf16.msra.mxu0 %v3762
        %3945 = vmatpush.bf16.msra.mxu0 %v3761
        %3946 = vmatpush.bf16.msra.mxu0 %v3760
        %3947 = vmatpush.bf16.msra.mxu0 %v3759
        %3948 = vmatpush.bf16.msra.mxu0 %v3758
        %3949 = vmatpush.bf16.msra.mxu0 %v3757
        %3950 = vmatpush.bf16.msra.mxu0 %v3756
        %3951 = vmatmul.bf16.gmra.mxu0 %v3507
        %v3952 = vpop.f32.mrf.mxu0
        %v3953 = vadd.f32 %v3904, %v3952
        %v3954 = vpop.f32.mrf.mxu0
        %v3955 = vadd.f32 %v3906, %v3954
        %3956 = vmatmul.bf16.gmra.mxu0 %v3511
        %v3957 = vpop.f32.mrf.mxu0
        %v3958 = vadd.f32 %v3909, %v3957
        %v3959 = vpop.f32.mrf.mxu0
        %v3960 = vadd.f32 %v3911, %v3959
        %3961 = vmatmul.bf16.gmra.mxu0 %v3515
        %v3962 = vpop.f32.mrf.mxu0
        %v3963 = vadd.f32 %v3914, %v3962
        %v3964 = vpop.f32.mrf.mxu0
        %v3965 = vadd.f32 %v3916, %v3964
        %3966 = vmatmul.bf16.gmra.mxu0 %v3519
        %v3967 = vpop.f32.mrf.mxu0
        %v3968 = vadd.f32 %v3919, %v3967
        %v3969 = vpop.f32.mrf.mxu0
        %v3970 = vadd.f32 %v3921, %v3969
        %3971 = vmatmul.bf16.gmra.mxu0 %v3523
        %v3972 = vpop.f32.mrf.mxu0
        %v3973 = vadd.f32 %v3924, %v3972
        %v3974 = vpop.f32.mrf.mxu0
        %v3975 = vadd.f32 %v3926, %v3974
        %3976 = vmatmul.bf16.gmra.mxu0 %v3527
        %v3977 = vpop.f32.mrf.mxu0
        %v3978 = vadd.f32 %v3929, %v3977
        %v3979 = vpop.f32.mrf.mxu0
        %v3980 = vadd.f32 %v3931, %v3979
        %3981 = vmatmul.bf16.gmra.mxu0 %v3531
        %v3982 = vpop.f32.mrf.mxu0
        %v3983 = vadd.f32 %v3934, %v3982
        %v3984 = vpop.f32.mrf.mxu0
        %v3985 = vadd.f32 %v3936, %v3984
        %3986 = vmatmul.bf16.gmra.mxu0 %v3535
        %v3987 = vpop.f32.mrf.mxu0
        %v3988 = vadd.f32 %v3939, %v3987
        %v3989 = vpop.f32.mrf.mxu0
        %v3990 = vadd.f32 %v3941, %v3989
        %3991 = vdwg.mxu0
        %3992 = vst [vmem:[%s218] sm:$0xff] %v3953
        %3993 = vst [vmem:[%s218 + $0x8] sm:$0xff] %v3955
        %3994 = vst [vmem:[%s218 + $0x10] sm:$0xff] %v3958
        %3995 = vst [vmem:[%s218 + $0x18] sm:$0xff] %v3960
        %3996 = vst [vmem:[%s218 + $0x20] sm:$0xff] %v3963
        %3997 = vst [vmem:[%s218 + $0x28] sm:$0xff] %v3965
        %3998 = vst [vmem:[%s218 + $0x30] sm:$0xff] %v3968
        %3999 = vst [vmem:[%s218 + $0x38] sm:$0xff] %v3970
        %4000 = vst [vmem:[%s218 + $0x40] sm:$0xff] %v3973
        %4001 = vst [vmem:[%s218 + $0x48] sm:$0xff] %v3975
        %4002 = vst [vmem:[%s218 + $0x50] sm:$0xff] %v3978
        %4003 = vst [vmem:[%s218 + $0x58] sm:$0xff] %v3980
        %4004 = vst [vmem:[%s218 + $0x60] sm:$0xff] %v3983
        %4005 = vst [vmem:[%s218 + $0x68] sm:$0xff] %v3985
        %4006 = vst [vmem:[%s218 + $0x70] sm:$0xff] %v3988
        %4007 = vst [vmem:[%s218 + $0x78] sm:$0xff] %v3990
        %s4008 = sand.u32 %s137, 1
        %s4009 = scalar_lea.sflag [#allocation3], %s4008
        %s4010 = sand.u32 %s137, 1
        %s4011 = smul.addr %s4010, 128
        %s4012 = scalar_lea.vmem [#allocation2], %s4011
        // Predicated region
        $region41: #{mlp_pallas.1} parent=39 // pred_check
          %p4013 = pneg %p147
        $region42: #{mlp_pallas.1} parent=39 // pred_check_branch
          %4015 = sbr.rel (%p4013) target = $region44
        $region43: #{mlp_pallas.1} parent=39 // pred_region
          %s4016 = smul.u32 16, %s19
          %4018 = vsyncadd %s4009, 0
          %s4019 = smul.addr %s4016, 8
          %s4020 = scalar_lea.hbm %s5, %s4019
          %s4021 = sshll.u32 %s4012, 4
          %s4022 = int_to_ptr.vmem [resolvable:$true] %s4021
          %s4023 = sshll.u32 %s4020, 4
          %s4024 = int_to_ptr.hbm [resolvable:$true] %s4023
          %4029 = dma.vmem_to_hbm [thread:$0]  %s4022, 2048, %s4024, %s4009, 128, 128, 8
        $region44: #{mlp_pallas.1} parent=39 // pred_fallthru
          _
      $region40: #{mlp_pallas.1} parent=5 // pred_fallthru
        _
      %p4030 = scmp.le.s32.totalorder 2, %s14
      // Predicated region
      $region45: #{mlp_pallas.1} parent=5 // pred_check
        %p4031 = pneg %p4030
      $region46: #{mlp_pallas.1} parent=5 // pred_check_branch
        %4033 = sbr.rel (%p4031) target = $region48
      $region47: #{mlp_pallas.1} parent=5 // pred_region
        %s4034 = ssub.s32 %s14, 2
        // Predicated region
        $region49: #{mlp_pallas.1} parent=47 // pred_check
          %p4035 = pneg %p153
        $region50: #{mlp_pallas.1} parent=47 // pred_check_branch
          %4037 = sbr.rel (%p4035) target = $region52
        $region51: #{mlp_pallas.1} parent=47 // pred_region
          %s4038 = sand.u32 %s138, 1
          %s4039 = scalar_lea.sflag [#allocation3], %s4038
          %s4040 = sand.u32 %s138, 1
          %s4041 = smul.addr %s4040, 128
          %s4042 = scalar_lea.vmem [#allocation2], %s4041
          %4044 = dma.done %s4039, 2048
        $region52: #{mlp_pallas.1} parent=47 // pred_fallthru
          _
      $region48: #{mlp_pallas.1} parent=5 // pred_fallthru
        _
    $region6: #{mlp_pallas.1} parent=1 // loop_footer
      %s18 = sadd.s32 1, %s14
    $region7: #{mlp_pallas.1} parent=1 // loop_footer_branch
      %13 = sbr.rel target = $region3
    $region8: #{mlp_pallas.1} parent=1 // loop_exit
      _
    %4045 = vsyncpa [#allocation3], 1
    %s4046 = scalar_lea.sflag [#allocation3], 1
    %4047 = vsyncpa %s4046, 1

</llo_original>
